<compile_context>
chip_gen: v6e
topology: v6e:2x2x1
jax: 0.10.0
libtpu: 0.0.40
codegen_flags: <defaults>
</compile_context>

<pallas_src>
import jax
import jax.numpy as jnp
from jax.experimental import pallas as pl
from jax.experimental.pallas import tpu as pltpu

LANE = 128  # TPU lane width; final-layer output is padded to a multiple of this


# ----------------------------------------------------------------------------
# Kernel: both heads of the module, fully fused in one program.
# ----------------------------------------------------------------------------
def _fused_heads_kernel(
    stacked_ref, joint_ref,
    uw1_ref, ub1_ref, uw2q_ref, us2_ref, ub2_ref, uw3_ref, ub3_ref, uw4_ref, ub4_ref,
    mw1_ref, mb1_ref, mw2q_hbm_ref, ms2_ref, mb2_ref, mw3_ref, mb3_ref, mw4_ref, mb4_ref,
    u_out_ref, m_out_ref,
    mw2_vmem, mw2_sem,
):
    # Kick off the big m_head layer-2 weight fetch (int8, ~1 MiB) immediately;
    # it streams in while u_head (4 dots) and m_head layer 1 run.
    mw2_copy = pltpu.make_async_copy(mw2q_hbm_ref, mw2_vmem, mw2_sem)
    mw2_copy.start()

    two_b = stacked_ref.shape[0]
    b = two_b // 2

    # ---- u_head, run ONCE on the pre-stacked [2B, D] batch (img rows, pt rows)
    h = stacked_ref[...].astype(jnp.bfloat16)
    h = jnp.dot(h, uw1_ref[...], preferred_element_type=jnp.float32) + ub1_ref[...]
    h = jnp.maximum(h, 0.0).astype(jnp.bfloat16)
    # int8-stored weight: integers <= 127 are exact in bf16; per-column scale is
    # applied to the f32 accumulator, so the MXU still sees a plain bf16 dot.
    uw2 = uw2q_ref[...].astype(jnp.float32).astype(jnp.bfloat16)
    h = (jnp.dot(h, uw2, preferred_element_type=jnp.float32) * us2_ref[...]
         + ub2_ref[...])
    h = jnp.maximum(h, 0.0).astype(jnp.bfloat16)
    h = jnp.dot(h, uw3_ref[...], preferred_element_type=jnp.float32) + ub3_ref[...]
    h = jnp.maximum(h, 0.0).astype(jnp.bfloat16)
    h = jnp.dot(h, uw4_ref[...], preferred_element_type=jnp.float32) + ub4_ref[...]
    h = h.astype(u_out_ref.dtype)
    u_out_ref[0] = h[:b]     # img rows
    u_out_ref[1] = h[b:]     # pt rows

    # ---- m_head on the wrapper-built joint [B, 2D] input (single dot layer 1)
    g = joint_ref[...].astype(jnp.bfloat16)
    g = jnp.dot(g, mw1_ref[...], preferred_element_type=jnp.float32) + mb1_ref[...]
    g = jnp.maximum(g, 0.0).astype(jnp.bfloat16)

    mw2_copy.wait()          # fetch is hidden behind everything above
    mw2 = mw2_vmem[...].astype(jnp.float32).astype(jnp.bfloat16)
    g = (jnp.dot(g, mw2, preferred_element_type=jnp.float32) * ms2_ref[...]
         + mb2_ref[...])
    g = jnp.maximum(g, 0.0).astype(jnp.bfloat16)
    g = jnp.dot(g, mw3_ref[...], preferred_element_type=jnp.float32) + mb3_ref[...]
    g = jnp.maximum(g, 0.0).astype(jnp.bfloat16)
    g = jnp.dot(g, mw4_ref[...], preferred_element_type=jnp.float32) + mb4_ref[...]
    m_out_ref[...] = g.astype(m_out_ref.dtype)


# ----------------------------------------------------------------------------
# Wrapper: one pallas_call for the whole module forward.
# ----------------------------------------------------------------------------
def headnet_imgtext_fused_forward(img_feat, pt_feat, u_kparams, m_kparams,
                                  *, num_classes):
    """Semantics of HeadNet_imgtext_fused.forward:
         img_pred   = u_head(img_feat)
         pt_pred    = u_head(pt_feat)
         joint_pred = m_head(concat([img_feat, pt_feat], axis=-1))
    """
    assert img_feat.shape == pt_feat.shape, "shared u_head: img/pt shapes must match"
    B, D = img_feat.shape
    M = u_kparams["w1"].shape[1]
    c_pad = u_kparams["w4"].shape[1]

    stacked = jnp.concatenate([img_feat, pt_feat], axis=0)    # [2B, D]  (u_head input)
    joint = jnp.concatenate([img_feat, pt_feat], axis=-1)     # [B, 2D]  (m_head input)

    # Advisory cost estimate so XLA schedules the (small) custom call sensibly.
    flops = (
        2 * (2 * B) * (D * M + M * M + M * D + D * c_pad)                          # u_head
        + 2 * B * (2 * D * 2 * M + 2 * M * 2 * M + 2 * M * 2 * D + 2 * D * c_pad)  # m_head
    )
    param_bytes = sum(int(x.size) * x.dtype.itemsize
                      for x in jax.tree_util.tree_leaves((u_kparams, m_kparams)))
    io_bytes = (int(stacked.size) + int(joint.size)) * 4 + 3 * B * c_pad * 4
    cost = pl.CostEstimate(flops=int(flops), transcendentals=0,
                           bytes_accessed=int(param_bytes + io_bytes))

    vmem_spec = pl.BlockSpec()                    # whole array, auto-copied to VMEM
    hbm_spec = pl.BlockSpec(memory_space=pl.ANY)  # stays in HBM; manual async copy
    in_specs = (
        [vmem_spec, vmem_spec]            # stacked, joint
        + [vmem_spec] * 9                 # u_head: w1,b1,w2q,s2,b2,w3,b3,w4,b4
        + [vmem_spec, vmem_spec,          # m_head: w1, b1
           hbm_spec,                      #          w2q (fetched by in-kernel DMA)
           vmem_spec, vmem_spec,          #          s2, b2
           vmem_spec, vmem_spec,          #          w3, b3
           vmem_spec, vmem_spec]          #          w4, b4
    )

    u_out, m_out = pl.pallas_call(
        _fused_heads_kernel,
        out_shape=(
            jax.ShapeDtypeStruct((2, B, c_pad), jnp.float32),  # [img; pt] u_head logits
            jax.ShapeDtypeStruct((B, c_pad), jnp.float32),     # m_head logits
        ),
        in_specs=in_specs,
        scratch_shapes=[
            pltpu.VMEM(m_kparams["w2q"].shape, m_kparams["w2q"].dtype),  # mw2 landing buf
            pltpu.SemaphoreType.DMA,
        ],
        cost_estimate=cost,
        compiler_params=pltpu.CompilerParams(vmem_limit_bytes=8 * 1024 * 1024),
    )(
        stacked, joint,
        u_kparams["w1"], u_kparams["b1"], u_kparams["w2q"], u_kparams["s2"],
        u_kparams["b2"], u_kparams["w3"], u_kparams["b3"], u_kparams["w4"],
        u_kparams["b4"],
        m_kparams["w1"], m_kparams["b1"], m_kparams["w2q"], m_kparams["s2"],
        m_kparams["b2"], m_kparams["w3"], m_kparams["b3"], m_kparams["w4"],
        m_kparams["b4"],
    )

    # TODO(synk): if downstream can consume the 128-wide padded logits, drop
    # these lane slices and return u_out / m_out directly.
    img_pred = u_out[0, :, :num_classes]
    pt_pred = u_out[1, :, :num_classes]
    joint_pred = m_out[:, :num_classes]
    return img_pred, pt_pred, joint_pred


# ----------------------------------------------------------------------------
# Parameter construction (deterministic, synthetic — mirrors nn.Linear shapes
# in HeadNet_imgtext_fused.__init__ with mid_num = 512).
# ----------------------------------------------------------------------------
def _linear_params(key, fan_in, fan_out):
    kw, kb = jax.random.split(key)
    bound = 1.0 / jnp.sqrt(jnp.float32(fan_in))
    w = jax.random.uniform(kw, (fan_in, fan_out), jnp.float32, -bound, bound)
    b = jax.random.uniform(kb, (1, fan_out), jnp.float32, -bound, bound)
    return w, b


def make_head_params(key, in_dim, mid, num_classes):
    """Linear(in,mid) ReLU Linear(mid,mid) ReLU Linear(mid,in) ReLU Linear(in,C)."""
    keys = jax.random.split(key, 4)
    return (
        _linear_params(keys[0], in_dim, mid),
        _linear_params(keys[1], mid, mid),
        _linear_params(keys[2], mid, in_dim),
        _linear_params(keys[3], in_dim, num_classes),
    )


def _quantize_per_column_int8(w):
    amax = jnp.max(jnp.abs(w), axis=0, keepdims=True)            # [1, N]
    scale = jnp.where(amax > 0.0, amax / 127.0, 1.0).astype(jnp.float32)
    wq = jnp.clip(jnp.round(w / scale), -127.0, 127.0).astype(jnp.int8)
    return wq, scale


def prepare_head_params(params, lane_pad=LANE):
    """Reference f32 params -> kernel format:
       layers 1/3: bf16 weights; layer 2 (the big one): int8 weights +
       per-output-column f32 scale; layer 4: bf16 weights zero-padded to a
       lane-dense (multiple of 128) output width.  Biases stay f32."""
    (w1, b1), (w2, b2), (w3, b3), (w4, b4) = params
    c = w4.shape[1]
    c_pad = ((c + lane_pad - 1) // lane_pad) * lane_pad
    w4p = jnp.zeros((w4.shape[0], c_pad), jnp.float32).at[:, :c].set(w4)
    b4p = jnp.zeros((1, c_pad), jnp.float32).at[:, :c].set(b4)
    w2q, s2 = _quantize_per_column_int8(w2)
    return dict(
        w1=w1.astype(jnp.bfloat16), b1=b1,
        w2q=w2q, s2=s2, b2=b2,
        w3=w3.astype(jnp.bfloat16), b3=b3,
        w4=w4p.astype(jnp.bfloat16), b4=b4p,
    )


if __name__ == "__main__":
    # Small, module-consistent shapes:
    #   args.output_dim = 32, num_classes = 8, num_modals = 2, batch = 8
    #   mid_num = 512 (hard-coded in the PyTorch module)
    batch = 8
    output_dim = 32
    mid_num = 512
    num_classes = 8
    num_modals = 2

    root = jax.random.PRNGKey(0)
    k_img, k_pt, k_u, k_m = jax.random.split(root, 4)

    img_feat = jax.random.normal(k_img, (batch, output_dim), jnp.float32)
    pt_feat = jax.random.normal(k_pt, (batch, output_dim), jnp.float32)

    # u_head: 32 -> 512 -> 512 -> 32 -> 8 ; m_head: 64 -> 1024 -> 1024 -> 64 -> 8
    u_params = make_head_params(k_u, output_dim, mid_num, num_classes)
    m_params = make_head_params(
        k_m, output_dim * num_modals, mid_num * num_modals, num_classes
    )
    u_kparams = prepare_head_params(u_params)
    m_kparams = prepare_head_params(m_params)

    fwd = jax.jit(headnet_imgtext_fused_forward, static_argnames="num_classes")
    img_pred, pt_pred, joint_pred = fwd(
        img_feat, pt_feat, u_kparams, m_kparams, num_classes=num_classes
    )
    jax.block_until_ready((img_pred, pt_pred, joint_pred))

    # --- Reference 1: plain-JAX MLP emulating the kernel's exact arithmetic
    #     (bf16 casts, int8 weight + post-accumulate scale, f32 accumulation). ---
    def ref_head_kernel_arith(x, p, c):
        h = x.astype(jnp.bfloat16)
        h = jnp.dot(h, p["w1"], preferred_element_type=jnp.float32) + p["b1"]
        h = jnp.maximum(h, 0.0).astype(jnp.bfloat16)
        w2 = p["w2q"].astype(jnp.float32).astype(jnp.bfloat16)
        h = (jnp.dot(h, w2, preferred_element_type=jnp.float32) * p["s2"] + p["b2"])
        h = jnp.maximum(h, 0.0).astype(jnp.bfloat16)
        h = jnp.dot(h, p["w3"], preferred_element_type=jnp.float32) + p["b3"]
        h = jnp.maximum(h, 0.0).astype(jnp.bfloat16)
        h = jnp.dot(h, p["w4"], preferred_element_type=jnp.float32) + p["b4"]
        return h[:, :c]

    ref_img = ref_head_kernel_arith(img_feat, u_kparams, num_classes)
    ref_pt = ref_head_kernel_arith(pt_feat, u_kparams, num_classes)
    ref_joint = ref_head_kernel_arith(
        jnp.concatenate([img_feat, pt_feat], axis=-1), m_kparams, num_classes
    )

    assert img_pred.shape == (batch, num_classes)
    assert pt_pred.shape == (batch, num_classes)
    assert joint_pred.shape == (batch, num_classes)
    assert jnp.allclose(img_pred, ref_img, atol=2e-2, rtol=2e-2)
    assert jnp.allclose(pt_pred, ref_pt, atol=2e-2, rtol=2e-2)
    assert jnp.allclose(joint_pred, ref_joint, atol=2e-2, rtol=2e-2)

    # --- Reference 2: exact f32 PyTorch-equivalent (loose tolerance: bf16 /
    #     int8 weight storage is an intentional precision trade). ---
    def ref_head_f32(x, params):
        h = x
        for i, (w, b) in enumerate(params):
            h = h @ w + b
            if i < 3:
                h = jnp.maximum(h, 0.0)
        return h

    assert jnp.allclose(img_pred, ref_head_f32(img_feat, u_params),
                        atol=1e-1, rtol=1e-1)
    assert jnp.allclose(pt_pred, ref_head_f32(pt_feat, u_params),
                        atol=1e-1, rtol=1e-1)
    assert jnp.allclose(joint_pred,
                        ref_head_f32(jnp.concatenate([img_feat, pt_feat], -1),
                                     m_params),
                        atol=1e-1, rtol=1e-1)

    print("KERNEL_OK")
</pallas_src>

<mosaic_0001>
module attributes {stable_mosaic.version = 11 : i64} {
  func.func @_fused_heads_kernel(%arg0: memref<16x32xf32, #tpu.memory_space<vmem>>, %arg1: memref<8x64xf32, #tpu.memory_space<vmem>>, %arg2: memref<32x512xbf16, #tpu.memory_space<vmem>>, %arg3: memref<1x512xf32, #tpu.memory_space<vmem>>, %arg4: memref<512x512xi8, #tpu.memory_space<vmem>>, %arg5: memref<1x512xf32, #tpu.memory_space<vmem>>, %arg6: memref<1x512xf32, #tpu.memory_space<vmem>>, %arg7: memref<512x32xbf16, #tpu.memory_space<vmem>>, %arg8: memref<1x32xf32, #tpu.memory_space<vmem>>, %arg9: memref<32x128xbf16, #tpu.memory_space<vmem>>, %arg10: memref<1x128xf32, #tpu.memory_space<vmem>>, %arg11: memref<64x1024xbf16, #tpu.memory_space<vmem>>, %arg12: memref<1x1024xf32, #tpu.memory_space<vmem>>, %arg13: memref<1024x1024xi8, #tpu.memory_space<any>>, %arg14: memref<1x1024xf32, #tpu.memory_space<vmem>>, %arg15: memref<1x1024xf32, #tpu.memory_space<vmem>>, %arg16: memref<1024x64xbf16, #tpu.memory_space<vmem>>, %arg17: memref<1x64xf32, #tpu.memory_space<vmem>>, %arg18: memref<64x128xbf16, #tpu.memory_space<vmem>>, %arg19: memref<1x128xf32, #tpu.memory_space<vmem>>, %arg20: memref<2x8x128xf32, #tpu.memory_space<vmem>>, %arg21: memref<8x128xf32, #tpu.memory_space<vmem>>, %arg22: memref<1024x1024xi8, #tpu.memory_space<vmem>>, %arg23: memref<!tpu.dma_semaphore, #tpu.memory_space<semaphore_mem>>) attributes {dimension_semantics = [], scalar_prefetch = 0 : i64, scratch_operands = 2 : i64, tpu.core_type = #tpu.core_type<tc>} {
    tpu.enqueue_dma source(%arg13 : memref<1024x1024xi8, #tpu.memory_space<any>>) target(%arg22 : memref<1024x1024xi8, #tpu.memory_space<vmem>>) target_semaphore(%arg23 : memref<!tpu.dma_semaphore, #tpu.memory_space<semaphore_mem>>)
    %c0 = arith.constant 0 : index
    %c0_0 = arith.constant 0 : index
    %0 = vector.load %arg0[%c0, %c0_0] : memref<16x32xf32, #tpu.memory_space<vmem>>, vector<16x32xf32>
    %1 = arith.truncf %0 : vector<16x32xf32> to vector<16x32xbf16>
    %c0_1 = arith.constant 0 : index
    %c0_2 = arith.constant 0 : index
    %2 = vector.load %arg2[%c0_1, %c0_2] : memref<32x512xbf16, #tpu.memory_space<vmem>>, vector<32x512xbf16>
    %cst = arith.constant dense<0.000000e+00> : vector<16x512xf32>
    %3 = tpu.matmul %1, %2, %cst {dimension_numbers = #tpu.dot_dimension_numbers<[1], [0], [0], [1], [0, 0, 1, 1], [], []>} : vector<16x32xbf16>, vector<32x512xbf16>, vector<16x512xf32> -> vector<16x512xf32>
    %c0_3 = arith.constant 0 : index
    %c0_4 = arith.constant 0 : index
    %4 = vector.load %arg3[%c0_3, %c0_4] : memref<1x512xf32, #tpu.memory_space<vmem>>, vector<1x512xf32>
    %5 = vector.broadcast %4 : vector<1x512xf32> to vector<16x512xf32>
    %6 = arith.addf %3, %5 : vector<16x512xf32>
    %cst_5 = arith.constant 0.000000e+00 : f32
    %7 = vector.broadcast %cst_5 : f32 to vector<16x512xf32>
    %8 = arith.maximumf %6, %7 : vector<16x512xf32>
    %9 = arith.truncf %8 : vector<16x512xf32> to vector<16x512xbf16>
    %c0_6 = arith.constant 0 : index
    %c0_7 = arith.constant 0 : index
    %10 = vector.load %arg4[%c0_6, %c0_7] : memref<512x512xi8, #tpu.memory_space<vmem>>, vector<512x512xi8>
    %11 = arith.sitofp %10 : vector<512x512xi8> to vector<512x512xf32>
    %12 = arith.truncf %11 : vector<512x512xf32> to vector<512x512xbf16>
    %cst_8 = arith.constant dense<0.000000e+00> : vector<16x512xf32>
    %13 = tpu.matmul %9, %12, %cst_8 {dimension_numbers = #tpu.dot_dimension_numbers<[1], [0], [0], [1], [0, 0, 1, 1], [], []>} : vector<16x512xbf16>, vector<512x512xbf16>, vector<16x512xf32> -> vector<16x512xf32>
    %c0_9 = arith.constant 0 : index
    %c0_10 = arith.constant 0 : index
    %14 = vector.load %arg5[%c0_9, %c0_10] : memref<1x512xf32, #tpu.memory_space<vmem>>, vector<1x512xf32>
    %15 = vector.broadcast %14 : vector<1x512xf32> to vector<16x512xf32>
    %16 = arith.mulf %13, %15 : vector<16x512xf32>
    %c0_11 = arith.constant 0 : index
    %c0_12 = arith.constant 0 : index
    %17 = vector.load %arg6[%c0_11, %c0_12] : memref<1x512xf32, #tpu.memory_space<vmem>>, vector<1x512xf32>
    %18 = vector.broadcast %17 : vector<1x512xf32> to vector<16x512xf32>
    %19 = arith.addf %16, %18 : vector<16x512xf32>
    %cst_13 = arith.constant 0.000000e+00 : f32
    %20 = vector.broadcast %cst_13 : f32 to vector<16x512xf32>
    %21 = arith.maximumf %19, %20 : vector<16x512xf32>
    %22 = arith.truncf %21 : vector<16x512xf32> to vector<16x512xbf16>
    %c0_14 = arith.constant 0 : index
    %c0_15 = arith.constant 0 : index
    %23 = vector.load %arg7[%c0_14, %c0_15] : memref<512x32xbf16, #tpu.memory_space<vmem>>, vector<512x32xbf16>
    %cst_16 = arith.constant dense<0.000000e+00> : vector<16x32xf32>
    %24 = tpu.matmul %22, %23, %cst_16 {dimension_numbers = #tpu.dot_dimension_numbers<[1], [0], [0], [1], [0, 0, 1, 1], [], []>} : vector<16x512xbf16>, vector<512x32xbf16>, vector<16x32xf32> -> vector<16x32xf32>
    %c0_17 = arith.constant 0 : index
    %c0_18 = arith.constant 0 : index
    %25 = vector.load %arg8[%c0_17, %c0_18] : memref<1x32xf32, #tpu.memory_space<vmem>>, vector<1x32xf32>
    %26 = vector.broadcast %25 : vector<1x32xf32> to vector<16x32xf32>
    %27 = arith.addf %24, %26 : vector<16x32xf32>
    %cst_19 = arith.constant 0.000000e+00 : f32
    %28 = vector.broadcast %cst_19 : f32 to vector<16x32xf32>
    %29 = arith.maximumf %27, %28 : vector<16x32xf32>
    %30 = arith.truncf %29 : vector<16x32xf32> to vector<16x32xbf16>
    %c0_20 = arith.constant 0 : index
    %c0_21 = arith.constant 0 : index
    %31 = vector.load %arg9[%c0_20, %c0_21] : memref<32x128xbf16, #tpu.memory_space<vmem>>, vector<32x128xbf16>
    %cst_22 = arith.constant dense<0.000000e+00> : vector<16x128xf32>
    %32 = tpu.matmul %30, %31, %cst_22 {dimension_numbers = #tpu.dot_dimension_numbers<[1], [0], [0], [1], [0, 0, 1, 1], [], []>} : vector<16x32xbf16>, vector<32x128xbf16>, vector<16x128xf32> -> vector<16x128xf32>
    %c0_23 = arith.constant 0 : index
    %c0_24 = arith.constant 0 : index
    %33 = vector.load %arg10[%c0_23, %c0_24] : memref<1x128xf32, #tpu.memory_space<vmem>>, vector<1x128xf32>
    %34 = vector.broadcast %33 : vector<1x128xf32> to vector<16x128xf32>
    %35 = arith.addf %32, %34 : vector<16x128xf32>
    %36 = vector.extract_strided_slice %35 {offsets = [0, 0], sizes = [8, 128], strides = [1, 1]} : vector<16x128xf32> to vector<8x128xf32>
    %c0_25 = arith.constant 0 : index
    %c0_26 = arith.constant 0 : index
    %c0_27 = arith.constant 0 : index
    %37 = vector.load %arg20[%c0_25, %c0_26, %c0_27] : memref<2x8x128xf32, #tpu.memory_space<vmem>>, vector<1x8x128xf32>
    %38 = vector.shape_cast %37 : vector<1x8x128xf32> to vector<8x128xf32>
    %39 = vector.shape_cast %36 : vector<8x128xf32> to vector<1x8x128xf32>
    tpu.vector_store %arg20[%c0_25, %c0_26, %c0_27], %39 {strides = array<i32>} : memref<2x8x128xf32, #tpu.memory_space<vmem>>, vector<1x8x128xf32>,
    %40 = vector.extract_strided_slice %35 {offsets = [8, 0], sizes = [8, 128], strides = [1, 1]} : vector<16x128xf32> to vector<8x128xf32>
    %c1 = arith.constant 1 : index
    %c0_28 = arith.constant 0 : index
    %c0_29 = arith.constant 0 : index
    %41 = vector.load %arg20[%c1, %c0_28, %c0_29] : memref<2x8x128xf32, #tpu.memory_space<vmem>>, vector<1x8x128xf32>
    %42 = vector.shape_cast %41 : vector<1x8x128xf32> to vector<8x128xf32>
    %43 = vector.shape_cast %40 : vector<8x128xf32> to vector<1x8x128xf32>
    tpu.vector_store %arg20[%c1, %c0_28, %c0_29], %43 {strides = array<i32>} : memref<2x8x128xf32, #tpu.memory_space<vmem>>, vector<1x8x128xf32>,
    %c0_30 = arith.constant 0 : index
    %c0_31 = arith.constant 0 : index
    %44 = vector.load %arg1[%c0_30, %c0_31] : memref<8x64xf32, #tpu.memory_space<vmem>>, vector<8x64xf32>
    %45 = arith.truncf %44 : vector<8x64xf32> to vector<8x64xbf16>
    %c0_32 = arith.constant 0 : index
    %c0_33 = arith.constant 0 : index
    %46 = vector.load %arg11[%c0_32, %c0_33] : memref<64x1024xbf16, #tpu.memory_space<vmem>>, vector<64x1024xbf16>
    %cst_34 = arith.constant dense<0.000000e+00> : vector<8x1024xf32>
    %47 = tpu.matmul %45, %46, %cst_34 {dimension_numbers = #tpu.dot_dimension_numbers<[1], [0], [0], [1], [0, 0, 1, 1], [], []>} : vector<8x64xbf16>, vector<64x1024xbf16>, vector<8x1024xf32> -> vector<8x1024xf32>
    %c0_35 = arith.constant 0 : index
    %c0_36 = arith.constant 0 : index
    %48 = vector.load %arg12[%c0_35, %c0_36] : memref<1x1024xf32, #tpu.memory_space<vmem>>, vector<1x1024xf32>
    %49 = vector.broadcast %48 : vector<1x1024xf32> to vector<8x1024xf32>
    %50 = arith.addf %47, %49 : vector<8x1024xf32>
    %cst_37 = arith.constant 0.000000e+00 : f32
    %51 = vector.broadcast %cst_37 : f32 to vector<8x1024xf32>
    %52 = arith.maximumf %50, %51 : vector<8x1024xf32>
    %53 = arith.truncf %52 : vector<8x1024xf32> to vector<8x1024xbf16>
    tpu.wait_dma2 semaphore(%arg23 : memref<!tpu.dma_semaphore, #tpu.memory_space<semaphore_mem>>) src(%arg13 : memref<1024x1024xi8, #tpu.memory_space<any>>) dst(%arg22 : memref<1024x1024xi8, #tpu.memory_space<vmem>>)
    %c0_38 = arith.constant 0 : index
    %c0_39 = arith.constant 0 : index
    %54 = vector.load %arg22[%c0_38, %c0_39] : memref<1024x1024xi8, #tpu.memory_space<vmem>>, vector<1024x1024xi8>
    %55 = arith.sitofp %54 : vector<1024x1024xi8> to vector<1024x1024xf32>
    %56 = arith.truncf %55 : vector<1024x1024xf32> to vector<1024x1024xbf16>
    %cst_40 = arith.constant dense<0.000000e+00> : vector<8x1024xf32>
    %57 = tpu.matmul %53, %56, %cst_40 {dimension_numbers = #tpu.dot_dimension_numbers<[1], [0], [0], [1], [0, 0, 1, 1], [], []>} : vector<8x1024xbf16>, vector<1024x1024xbf16>, vector<8x1024xf32> -> vector<8x1024xf32>
    %c0_41 = arith.constant 0 : index
    %c0_42 = arith.constant 0 : index
    %58 = vector.load %arg14[%c0_41, %c0_42] : memref<1x1024xf32, #tpu.memory_space<vmem>>, vector<1x1024xf32>
    %59 = vector.broadcast %58 : vector<1x1024xf32> to vector<8x1024xf32>
    %60 = arith.mulf %57, %59 : vector<8x1024xf32>
    %c0_43 = arith.constant 0 : index
    %c0_44 = arith.constant 0 : index
    %61 = vector.load %arg15[%c0_43, %c0_44] : memref<1x1024xf32, #tpu.memory_space<vmem>>, vector<1x1024xf32>
    %62 = vector.broadcast %61 : vector<1x1024xf32> to vector<8x1024xf32>
    %63 = arith.addf %60, %62 : vector<8x1024xf32>
    %cst_45 = arith.constant 0.000000e+00 : f32
    %64 = vector.broadcast %cst_45 : f32 to vector<8x1024xf32>
    %65 = arith.maximumf %63, %64 : vector<8x1024xf32>
    %66 = arith.truncf %65 : vector<8x1024xf32> to vector<8x1024xbf16>
    %c0_46 = arith.constant 0 : index
    %c0_47 = arith.constant 0 : index
    %67 = vector.load %arg16[%c0_46, %c0_47] : memref<1024x64xbf16, #tpu.memory_space<vmem>>, vector<1024x64xbf16>
    %cst_48 = arith.constant dense<0.000000e+00> : vector<8x64xf32>
    %68 = tpu.matmul %66, %67, %cst_48 {dimension_numbers = #tpu.dot_dimension_numbers<[1], [0], [0], [1], [0, 0, 1, 1], [], []>} : vector<8x1024xbf16>, vector<1024x64xbf16>, vector<8x64xf32> -> vector<8x64xf32>
    %c0_49 = arith.constant 0 : index
    %c0_50 = arith.constant 0 : index
    %69 = vector.load %arg17[%c0_49, %c0_50] : memref<1x64xf32, #tpu.memory_space<vmem>>, vector<1x64xf32>
    %70 = vector.broadcast %69 : vector<1x64xf32> to vector<8x64xf32>
    %71 = arith.addf %68, %70 : vector<8x64xf32>
    %cst_51 = arith.constant 0.000000e+00 : f32
    %72 = vector.broadcast %cst_51 : f32 to vector<8x64xf32>
    %73 = arith.maximumf %71, %72 : vector<8x64xf32>
    %74 = arith.truncf %73 : vector<8x64xf32> to vector<8x64xbf16>
    %c0_52 = arith.constant 0 : index
    %c0_53 = arith.constant 0 : index
    %75 = vector.load %arg18[%c0_52, %c0_53] : memref<64x128xbf16, #tpu.memory_space<vmem>>, vector<64x128xbf16>
    %cst_54 = arith.constant dense<0.000000e+00> : vector<8x128xf32>
    %76 = tpu.matmul %74, %75, %cst_54 {dimension_numbers = #tpu.dot_dimension_numbers<[1], [0], [0], [1], [0, 0, 1, 1], [], []>} : vector<8x64xbf16>, vector<64x128xbf16>, vector<8x128xf32> -> vector<8x128xf32>
    %c0_55 = arith.constant 0 : index
    %c0_56 = arith.constant 0 : index
    %77 = vector.load %arg19[%c0_55, %c0_56] : memref<1x128xf32, #tpu.memory_space<vmem>>, vector<1x128xf32>
    %78 = vector.broadcast %77 : vector<1x128xf32> to vector<8x128xf32>
    %79 = arith.addf %76, %78 : vector<8x128xf32>
    %c0_57 = arith.constant 0 : index
    %c0_58 = arith.constant 0 : index
    %80 = vector.load %arg21[%c0_57, %c0_58] : memref<8x128xf32, #tpu.memory_space<vmem>>, vector<8x128xf32>
    tpu.vector_store %arg21[%c0_57, %c0_58], %79 {strides = array<i32>} : memref<8x128xf32, #tpu.memory_space<vmem>>, vector<8x128xf32>,
    return
  }
}

</mosaic_0001>

<llo_original>
// kernel: headnet_imgtext_fused_forward.1
$region0: #{headnet_imgtext_fused_forward.1}
  #allocation0 [shape = 'u32[]', space=smem, size = 0x4, offset = 0x4, fixed_abs, tag = 'smem constant byte address 0x4 - core index']
  #allocation1 [shape = 'u32[144,128]{1,0:T(1,128)}', space=vmem, size = 0x12000, scoped, tag = 'internal scratch']
  #allocation2 [shape = 's8[1024,1024]{1,0:T(32,128)(4,1)}', space=vmem, size = 0x100000, scoped, tag = 'scratch operand']
  #allocation3 [shape = 's32[1]{0}', space=sflag, size = 0x4, scoped, tag = 'scratch operand']
  #allocation13 [shape = 's32[]', space=sflag, size = 0x4, offset = 0, fixed_abs, tag = 'sflag constant byte address 0x0 - dummy sync flag']
  #allocation14 [shape = 's32[]', space=sflag, size = 0x4, offset = 0, fixed_abs, tag = 'sflag constant byte address 0x0 - dummy sync flag']
  #allocation15 [shape = 'u32[]', space=smem, size = 0x4, offset = 0x44, fixed_abs, tag = 'smem constant byte address 0x44 - assertion arg 0']
  #allocation16 [shape = 'u32[]', space=smem, size = 0x4, offset = 0x48, fixed_abs, tag = 'smem constant byte address 0x48 - assertion arg 1']
  %s0 = inlined_call_operand.vmem [shape: f32[16,32], index: 0, kind: input, shape index: {}]
  %s1 = inlined_call_operand.vmem [shape: f32[8,64], index: 1, kind: input, shape index: {}]
  %s2 = inlined_call_operand.vmem [shape: bf16[32,512], index: 2, kind: input, shape index: {}]
  %s3 = inlined_call_operand.vmem [shape: f32[1,512], index: 3, kind: input, shape index: {}]
  %s4 = inlined_call_operand.vmem [shape: s8[512,512], index: 4, kind: input, shape index: {}]
  %s5 = inlined_call_operand.hbm [shape: f32[1,512], index: 5, kind: input, shape index: {}]
  %s6 = inlined_call_operand.hbm [shape: f32[1,512], index: 6, kind: input, shape index: {}]
  %s7 = inlined_call_operand.vmem [shape: bf16[512,32], index: 7, kind: input, shape index: {}]
  %s8 = inlined_call_operand.vmem [shape: f32[1,32], index: 8, kind: input, shape index: {}]
  %s9 = inlined_call_operand.vmem [shape: bf16[32,128], index: 9, kind: input, shape index: {}]
  %s10 = inlined_call_operand.vmem [shape: f32[1,128], index: 10, kind: input, shape index: {}]
  %s11 = inlined_call_operand.vmem [shape: bf16[64,1024], index: 11, kind: input, shape index: {}]
  %s12 = inlined_call_operand.vmem [shape: f32[1,1024], index: 12, kind: input, shape index: {}]
  %s13 = inlined_call_operand.hbm [shape: s8[1024,1024], index: 13, kind: input, shape index: {}]
  %s14 = inlined_call_operand.vmem [shape: f32[1,1024], index: 14, kind: input, shape index: {}]
  %s15 = inlined_call_operand.hbm [shape: f32[1,1024], index: 15, kind: input, shape index: {}]
  %s16 = inlined_call_operand.vmem [shape: bf16[1024,64], index: 16, kind: input, shape index: {}]
  %s17 = inlined_call_operand.vmem [shape: f32[1,64], index: 17, kind: input, shape index: {}]
  %s18 = inlined_call_operand.vmem [shape: bf16[64,128], index: 18, kind: input, shape index: {}]
  %s19 = inlined_call_operand.hbm [shape: f32[1,128], index: 19, kind: input, shape index: {}]
  %s20 = inlined_call_operand.vmem [shape: f32[2,8,128], index: 20, kind: output, shape index: {0}]
  %s21 = inlined_call_operand.hbm [shape: f32[8,128], index: 21, kind: output, shape index: {1}]
  %22 = xla_tuple %s20, %s21
  %s23 = sld [smem:[#allocation0]]
  $region114: #{headnet_imgtext_fused_forward.1} parent=0
    _
  %s25 = ssub.s32 1, %s23
  %s26 = scalar_select 0, %s25, %s23
  $region1: #{headnet_imgtext_fused_forward.1} parent=0
    #allocation4 [shape = 'u8[2048]{0}', space=vmem, size = 0x800, scoped, tag = 'input window, operand 5, single buffered']
    #allocation5 [shape = 's32[1]{0}', space=sflag, size = 0x4, scoped, tag = 'scoped memory for headnet_imgtext_fused_forward.1']
    #allocation6 [shape = 's32[1]{0}', space=sflag, size = 0x4, scoped, tag = 'scoped memory for headnet_imgtext_fused_forward.1']
    #allocation7 [shape = 'u8[2048]{0}', space=vmem, size = 0x800, scoped, tag = 'input window, operand 6, single buffered']
    #allocation8 [shape = 's32[1]{0}', space=sflag, size = 0x4, scoped, tag = 'scoped memory for headnet_imgtext_fused_forward.1']
    #allocation9 [shape = 'u8[4096]{0}', space=vmem, size = 0x1000, scoped, tag = 'input window, operand 15, single buffered']
    #allocation10 [shape = 'u8[512]{0}', space=vmem, size = 0x400, scoped, tag = 'input window, operand 19, single buffered']
    #allocation11 [shape = 's32[1]{0}', space=sflag, size = 0x4, scoped, tag = 'scoped memory for headnet_imgtext_fused_forward.1']
    #allocation12 [shape = 'u8[4096]{0}', space=vmem, size = 0x1000, scoped, tag = 'output window, operand 1, single buffered']
    %27 = vsyncpa [#allocation5], 0
    %28 = vsyncpa [#allocation8], 0
    %29 = vsyncpa [#allocation11], 0
    %30 = vsyncpa [#allocation6], 0
    // Predicated region
    $region2: #{headnet_imgtext_fused_forward.1} parent=1 // pred_check
      _
    $region3: #{headnet_imgtext_fused_forward.1} parent=1 // pred_check_branch
      %32 = sbr.rel (0) target = $region5
    $region4: #{headnet_imgtext_fused_forward.1} parent=1 // pred_region
      _
    $region5: #{headnet_imgtext_fused_forward.1} parent=1 // pred_fallthru
      _
    // Predicated region
    $region6: #{headnet_imgtext_fused_forward.1} parent=1 // pred_check
      _
    $region7: #{headnet_imgtext_fused_forward.1} parent=1 // pred_check_branch
      %34 = sbr.rel (0) target = $region9
    $region8: #{headnet_imgtext_fused_forward.1} parent=1 // pred_region
      _
    $region9: #{headnet_imgtext_fused_forward.1} parent=1 // pred_fallthru
      _
    // Predicated region
    $region10: #{headnet_imgtext_fused_forward.1} parent=1 // pred_check
      _
    $region11: #{headnet_imgtext_fused_forward.1} parent=1 // pred_check_branch
      %36 = sbr.rel (0) target = $region13
    $region12: #{headnet_imgtext_fused_forward.1} parent=1 // pred_region
      _
    $region13: #{headnet_imgtext_fused_forward.1} parent=1 // pred_fallthru
      _
    // Predicated region
    $region14: #{headnet_imgtext_fused_forward.1} parent=1 // pred_check
      _
    $region15: #{headnet_imgtext_fused_forward.1} parent=1 // pred_check_branch
      %38 = sbr.rel (0) target = $region17
    $region16: #{headnet_imgtext_fused_forward.1} parent=1 // pred_region
      _
    $region17: #{headnet_imgtext_fused_forward.1} parent=1 // pred_fallthru
      _
    // Predicated region
    $region18: #{headnet_imgtext_fused_forward.1} parent=1 // pred_check
      _
    $region19: #{headnet_imgtext_fused_forward.1} parent=1 // pred_check_branch
      %40 = sbr.rel (0) target = $region21
    $region20: #{headnet_imgtext_fused_forward.1} parent=1 // pred_region
      _
    $region21: #{headnet_imgtext_fused_forward.1} parent=1 // pred_fallthru
      _
    // Predicated region
    $region22: #{headnet_imgtext_fused_forward.1} parent=1 // pred_check
      _
    $region23: #{headnet_imgtext_fused_forward.1} parent=1 // pred_check_branch
      %42 = sbr.rel (0) target = $region25
    $region24: #{headnet_imgtext_fused_forward.1} parent=1 // pred_region
      %s44 = ssub.s32 64, 64
      %45 = vsyncadd [#allocation5], %s44
      %s47 = sshll.u32 [#allocation4], 4
      %s48 = int_to_ptr.vmem [resolvable:$true] %s47
      %50 = dma.hbm_to_vmem [thread:$0]  %s5, 64, %s48, [#allocation5]
    $region25: #{headnet_imgtext_fused_forward.1} parent=1 // pred_fallthru
      _
    // Predicated region
    $region26: #{headnet_imgtext_fused_forward.1} parent=1 // pred_check
      _
    $region27: #{headnet_imgtext_fused_forward.1} parent=1 // pred_check_branch
      %52 = sbr.rel (0) target = $region29
    $region28: #{headnet_imgtext_fused_forward.1} parent=1 // pred_region
      %s54 = ssub.s32 64, 64
      %55 = vsyncadd [#allocation8], %s54
      %s57 = sshll.u32 [#allocation7], 4
      %s58 = int_to_ptr.vmem [resolvable:$true] %s57
      %60 = dma.hbm_to_vmem [thread:$0]  %s6, 64, %s58, [#allocation8]
    $region29: #{headnet_imgtext_fused_forward.1} parent=1 // pred_fallthru
      _
    // Predicated region
    $region30: #{headnet_imgtext_fused_forward.1} parent=1 // pred_check
      _
    $region31: #{headnet_imgtext_fused_forward.1} parent=1 // pred_check_branch
      %62 = sbr.rel (0) target = $region33
    $region32: #{headnet_imgtext_fused_forward.1} parent=1 // pred_region
      _
    $region33: #{headnet_imgtext_fused_forward.1} parent=1 // pred_fallthru
      _
    // Predicated region
    $region34: #{headnet_imgtext_fused_forward.1} parent=1 // pred_check
      _
    $region35: #{headnet_imgtext_fused_forward.1} parent=1 // pred_check_branch
      %64 = sbr.rel (0) target = $region37
    $region36: #{headnet_imgtext_fused_forward.1} parent=1 // pred_region
      _
    $region37: #{headnet_imgtext_fused_forward.1} parent=1 // pred_fallthru
      _
    // Predicated region
    $region38: #{headnet_imgtext_fused_forward.1} parent=1 // pred_check
      _
    $region39: #{headnet_imgtext_fused_forward.1} parent=1 // pred_check_branch
      %66 = sbr.rel (0) target = $region41
    $region40: #{headnet_imgtext_fused_forward.1} parent=1 // pred_region
      _
    $region41: #{headnet_imgtext_fused_forward.1} parent=1 // pred_fallthru
      _
    // Predicated region
    $region42: #{headnet_imgtext_fused_forward.1} parent=1 // pred_check
      _
    $region43: #{headnet_imgtext_fused_forward.1} parent=1 // pred_check_branch
      %68 = sbr.rel (0) target = $region45
    $region44: #{headnet_imgtext_fused_forward.1} parent=1 // pred_region
      _
    $region45: #{headnet_imgtext_fused_forward.1} parent=1 // pred_fallthru
      _
    // Predicated region
    $region46: #{headnet_imgtext_fused_forward.1} parent=1 // pred_check
      _
    $region47: #{headnet_imgtext_fused_forward.1} parent=1 // pred_check_branch
      %70 = sbr.rel (0) target = $region49
    $region48: #{headnet_imgtext_fused_forward.1} parent=1 // pred_region
      _
    $region49: #{headnet_imgtext_fused_forward.1} parent=1 // pred_fallthru
      _
    // Predicated region
    $region50: #{headnet_imgtext_fused_forward.1} parent=1 // pred_check
      _
    $region51: #{headnet_imgtext_fused_forward.1} parent=1 // pred_check_branch
      %72 = sbr.rel (0) target = $region53
    $region52: #{headnet_imgtext_fused_forward.1} parent=1 // pred_region
      _
    $region53: #{headnet_imgtext_fused_forward.1} parent=1 // pred_fallthru
      _
    // Predicated region
    $region54: #{headnet_imgtext_fused_forward.1} parent=1 // pred_check
      _
    $region55: #{headnet_imgtext_fused_forward.1} parent=1 // pred_check_branch
      %74 = sbr.rel (0) target = $region57
    $region56: #{headnet_imgtext_fused_forward.1} parent=1 // pred_region
      _
    $region57: #{headnet_imgtext_fused_forward.1} parent=1 // pred_fallthru
      _
    // Predicated region
    $region58: #{headnet_imgtext_fused_forward.1} parent=1 // pred_check
      _
    $region59: #{headnet_imgtext_fused_forward.1} parent=1 // pred_check_branch
      %76 = sbr.rel (0) target = $region61
    $region60: #{headnet_imgtext_fused_forward.1} parent=1 // pred_region
      %s78 = ssub.s32 128, 128
      %79 = vsyncadd [#allocation8], %s78
      %s81 = sshll.u32 [#allocation9], 4
      %s82 = int_to_ptr.vmem [resolvable:$true] %s81
      %84 = dma.hbm_to_vmem [thread:$0]  %s15, 128, %s82, [#allocation8]
    $region61: #{headnet_imgtext_fused_forward.1} parent=1 // pred_fallthru
      _
    // Predicated region
    $region62: #{headnet_imgtext_fused_forward.1} parent=1 // pred_check
      _
    $region63: #{headnet_imgtext_fused_forward.1} parent=1 // pred_check_branch
      %86 = sbr.rel (0) target = $region65
    $region64: #{headnet_imgtext_fused_forward.1} parent=1 // pred_region
      _
    $region65: #{headnet_imgtext_fused_forward.1} parent=1 // pred_fallthru
      _
    // Predicated region
    $region66: #{headnet_imgtext_fused_forward.1} parent=1 // pred_check
      _
    $region67: #{headnet_imgtext_fused_forward.1} parent=1 // pred_check_branch
      %88 = sbr.rel (0) target = $region69
    $region68: #{headnet_imgtext_fused_forward.1} parent=1 // pred_region
      _
    $region69: #{headnet_imgtext_fused_forward.1} parent=1 // pred_fallthru
      _
    // Predicated region
    $region70: #{headnet_imgtext_fused_forward.1} parent=1 // pred_check
      _
    $region71: #{headnet_imgtext_fused_forward.1} parent=1 // pred_check_branch
      %90 = sbr.rel (0) target = $region73
    $region72: #{headnet_imgtext_fused_forward.1} parent=1 // pred_region
      _
    $region73: #{headnet_imgtext_fused_forward.1} parent=1 // pred_fallthru
      _
    // Predicated region
    $region74: #{headnet_imgtext_fused_forward.1} parent=1 // pred_check
      _
    $region75: #{headnet_imgtext_fused_forward.1} parent=1 // pred_check_branch
      %92 = sbr.rel (0) target = $region77
    $region76: #{headnet_imgtext_fused_forward.1} parent=1 // pred_region
      %s94 = ssub.s32 16, 16
      %95 = vsyncadd [#allocation11], %s94
      %s97 = sshll.u32 [#allocation10], 4
      %s98 = int_to_ptr.vmem [resolvable:$true] %s97
      %100 = dma.hbm_to_vmem [thread:$0]  %s19, 16, %s98, [#allocation11]
    $region77: #{headnet_imgtext_fused_forward.1} parent=1 // pred_fallthru
      _
    // Predicated region
    $region78: #{headnet_imgtext_fused_forward.1} parent=1 // pred_check
      _
    $region79: #{headnet_imgtext_fused_forward.1} parent=1 // pred_check_branch
      %102 = sbr.rel (0) target = $region81
    $region80: #{headnet_imgtext_fused_forward.1} parent=1 // pred_region
      %103 = dma.done [#allocation5], 64
    $region81: #{headnet_imgtext_fused_forward.1} parent=1 // pred_fallthru
      _
    // Predicated region
    $region82: #{headnet_imgtext_fused_forward.1} parent=1 // pred_check
      _
    $region83: #{headnet_imgtext_fused_forward.1} parent=1 // pred_check_branch
      %105 = sbr.rel (0) target = $region85
    $region84: #{headnet_imgtext_fused_forward.1} parent=1 // pred_region
      %106 = dma.done [#allocation8], 64
    $region85: #{headnet_imgtext_fused_forward.1} parent=1 // pred_fallthru
      _
    // Predicated region
    $region86: #{headnet_imgtext_fused_forward.1} parent=1 // pred_check
      _
    $region87: #{headnet_imgtext_fused_forward.1} parent=1 // pred_check_branch
      %108 = sbr.rel (0) target = $region89
    $region88: #{headnet_imgtext_fused_forward.1} parent=1 // pred_region
      %109 = dma.done [#allocation8], 128
    $region89: #{headnet_imgtext_fused_forward.1} parent=1 // pred_fallthru
      _
    // Predicated region
    $region90: #{headnet_imgtext_fused_forward.1} parent=1 // pred_check
      _
    $region91: #{headnet_imgtext_fused_forward.1} parent=1 // pred_check_branch
      %111 = sbr.rel (0) target = $region93
    $region92: #{headnet_imgtext_fused_forward.1} parent=1 // pred_region
      %112 = dma.done [#allocation11], 16
    $region93: #{headnet_imgtext_fused_forward.1} parent=1 // pred_fallthru
      _
    // Predicated region
    $region94: #{headnet_imgtext_fused_forward.1} parent=1 // pred_check
      _
    $region95: #{headnet_imgtext_fused_forward.1} parent=1 // pred_check_branch
      %115 = sbr.rel target = $region97
    $region96: #{headnet_imgtext_fused_forward.1} parent=1 // pred_region
      %116 = sst [smem:[#allocation15]] [#allocation14]
      %117 = sst [smem:[#allocation16]] [#allocation13]
    $region97: #{headnet_imgtext_fused_forward.1} parent=1 // pred_fallthru
      _
    %119 = shalt.err (0)
    %s121 = sshll.u32 [#allocation2], 4
    %s122 = int_to_ptr.vmem [resolvable:$true] %s121
    %124 = dma.hbm_to_vmem [thread:$0]  %s13, 32768, %s122, [#allocation3]
    %v125 = vld [vmem:[%s0] sm:$0xff]
    %v126 = vld [vmem:[%s0 + $0x8] sm:$0xff]
    %v127 = vpack.c.bf16 %v126, %v125
    %v128 = vld [vmem:[%s2] sm:$0xff]
    %v129 = vld [vmem:[%s2 + $0x8] sm:$0xff]
    %v130 = vld [vmem:[%s2 + $0x10] sm:$0xff]
    %v131 = vld [vmem:[%s2 + $0x18] sm:$0xff]
    %v132 = vld [vmem:[%s2 + $0x20] sm:$0xff]
    %v133 = vld [vmem:[%s2 + $0x28] sm:$0xff]
    %v134 = vld [vmem:[%s2 + $0x30] sm:$0xff]
    %v135 = vld [vmem:[%s2 + $0x38] sm:$0xff]
    %v136 = vld [vmem:[%s3] sm:$0xf]
    %v138 = vlaneseq
    %v139 = vshrl.u32 %v138, 7
    %v140 = vsub.s32 0, %v139
    %v141 = vrot.slane %v136, %v140
    %v142 = vlaneseq
    %v143 = vshrl.u32 %v142, 7
    %v144 = vsub.s32 1, %v143
    %v145 = vrot.slane %v136, %v144
    %v146 = vlaneseq
    %v147 = vshrl.u32 %v146, 7
    %v148 = vsub.s32 2, %v147
    %v149 = vrot.slane %v136, %v148
    %v150 = vlaneseq
    %v151 = vshrl.u32 %v150, 7
    %v152 = vsub.s32 3, %v151
    %v153 = vrot.slane %v136, %v152
    %v166 = vunpack.c.l.b16 %v128
    %v167 = vunpack.c.h.b16 %v128
    %v168 = vunpack.c.l.b16 %v129
    %v169 = vunpack.c.h.b16 %v129
    %v170 = vunpack.c.l.b16 %v130
    %v171 = vunpack.c.h.b16 %v130
    %v172 = vunpack.c.l.b16 %v131
    %v173 = vunpack.c.h.b16 %v131
    %v174 = vunpack.c.l.b16 %v132
    %v175 = vunpack.c.h.b16 %v132
    %v176 = vunpack.c.l.b16 %v133
    %v177 = vunpack.c.h.b16 %v133
    %v178 = vunpack.c.l.b16 %v134
    %v179 = vunpack.c.h.b16 %v134
    %v180 = vunpack.c.l.b16 %v135
    %v181 = vunpack.c.h.b16 %v135
    %v182 = vpack.c.b16 %v170, %v166
    %v183 = vpack.c.b16 %v171, %v167
    %v184 = vpack.c.b16 %v172, %v168
    %v185 = vpack.c.b16 %v173, %v169
    %v186 = vpack.c.b16 %v178, %v174
    %v187 = vpack.c.b16 %v179, %v175
    %v188 = vpack.c.b16 %v180, %v176
    %v189 = vpack.c.b16 %v181, %v177
    %vm198 = vcmask 261120
    %v200 = vsel %vm198, %v127, 0
    %202 = vmatprep.subr.bf16.mxu0 0
    %203 = vmatpush1.bf16.msra.mxu0 0
    %204 = vmatprep.subr.bf16.mxu0 0
    %205 = vmatpush1.bf16.msra.mxu0 0
    %206 = vmatprep.subr.bf16.mxu0 0
    %207 = vmatpush1.bf16.msra.mxu0 0
    %208 = vmatprep.subr.bf16.mxu0 0
    %209 = vmatpush1.bf16.msra.mxu0 0
    %210 = vmatprep.subr.bf16.mxu0 0
    %211 = vmatpush1.bf16.msra.mxu0 0
    %212 = vmatprep.subr.bf16.mxu0 0
    %213 = vmatpush1.bf16.msra.mxu0 0
    %214 = vmatprep.subr.bf16.mxu0 %v187
    %215 = vmatpush1.bf16.msra.mxu0 %v186
    %216 = vmatprep.subr.bf16.mxu0 %v183
    %217 = vmatpush1.bf16.msra.mxu0 %v182
    %218 = vmatprep.subr.bf16.mxu0 0
    %219 = vmatpush2.bf16.msra.mxu0 0
    %220 = vmatprep.subr.bf16.mxu0 0
    %221 = vmatpush2.bf16.msra.mxu0 0
    %222 = vmatprep.subr.bf16.mxu0 0
    %223 = vmatpush2.bf16.msra.mxu0 0
    %224 = vmatprep.subr.bf16.mxu0 0
    %225 = vmatpush2.bf16.msra.mxu0 0
    %226 = vmatprep.subr.bf16.mxu0 0
    %227 = vmatpush2.bf16.msra.mxu0 0
    %228 = vmatprep.subr.bf16.mxu0 0
    %229 = vmatpush2.bf16.msra.mxu0 0
    %230 = vmatprep.subr.bf16.mxu0 0
    %231 = vmatpush2.bf16.msra.mxu0 0
    %232 = vmatprep.subr.bf16.mxu0 0
    %233 = vmatpush2.bf16.msra.mxu0 0
    %234 = vmatprep.mubr.bf16.mxu0 0
    %235 = vmatmul.mubr.bf16.gmra.mxu0 %v200
    %v236 = vpop.f32.mrf.mxu0
    %v237 = vadd.f32 %v141, %v236
    %v238 = vpop.f32.mrf.mxu0
    %v239 = vadd.f32 %v145, %v238
    %v240 = vpop.f32.mrf.mxu0
    %v241 = vadd.f32 %v141, %v240
    %v242 = vpop.f32.mrf.mxu0
    %v243 = vadd.f32 %v145, %v242
    %244 = vdwg.mxu0
    %245 = vmatprep.subr.bf16.mxu0 0
    %246 = vmatpush1.bf16.msra.mxu0 0
    %247 = vmatprep.subr.bf16.mxu0 0
    %248 = vmatpush1.bf16.msra.mxu0 0
    %249 = vmatprep.subr.bf16.mxu0 0
    %250 = vmatpush1.bf16.msra.mxu0 0
    %251 = vmatprep.subr.bf16.mxu0 0
    %252 = vmatpush1.bf16.msra.mxu0 0
    %253 = vmatprep.subr.bf16.mxu0 0
    %254 = vmatpush1.bf16.msra.mxu0 0
    %255 = vmatprep.subr.bf16.mxu0 0
    %256 = vmatpush1.bf16.msra.mxu0 0
    %257 = vmatprep.subr.bf16.mxu0 %v189
    %258 = vmatpush1.bf16.msra.mxu0 %v188
    %259 = vmatprep.subr.bf16.mxu0 %v185
    %260 = vmatpush1.bf16.msra.mxu0 %v184
    %261 = vmatprep.subr.bf16.mxu0 0
    %262 = vmatpush2.bf16.msra.mxu0 0
    %263 = vmatprep.subr.bf16.mxu0 0
    %264 = vmatpush2.bf16.msra.mxu0 0
    %265 = vmatprep.subr.bf16.mxu0 0
    %266 = vmatpush2.bf16.msra.mxu0 0
    %267 = vmatprep.subr.bf16.mxu0 0
    %268 = vmatpush2.bf16.msra.mxu0 0
    %269 = vmatprep.subr.bf16.mxu0 0
    %270 = vmatpush2.bf16.msra.mxu0 0
    %271 = vmatprep.subr.bf16.mxu0 0
    %272 = vmatpush2.bf16.msra.mxu0 0
    %273 = vmatprep.subr.bf16.mxu0 0
    %274 = vmatpush2.bf16.msra.mxu0 0
    %275 = vmatprep.subr.bf16.mxu0 0
    %276 = vmatpush2.bf16.msra.mxu0 0
    %277 = vmatprep.mubr.bf16.mxu0 0
    %278 = vmatmul.mubr.bf16.gmra.mxu0 %v200
    %v279 = vpop.f32.mrf.mxu0
    %v280 = vadd.f32 %v149, %v279
    %v281 = vpop.f32.mrf.mxu0
    %v282 = vadd.f32 %v153, %v281
    %v283 = vpop.f32.mrf.mxu0
    %v284 = vadd.f32 %v149, %v283
    %v285 = vpop.f32.mrf.mxu0
    %v286 = vadd.f32 %v153, %v285
    %287 = vdwg.mxu0
    %v288 = vmax.f32 %v237, 0.0
    %v289 = vmax.f32 %v239, 0.0
    %v290 = vmax.f32 %v280, 0.0
    %v291 = vmax.f32 %v282, 0.0
    %v292 = vmax.f32 %v241, 0.0
    %v293 = vmax.f32 %v243, 0.0
    %v294 = vmax.f32 %v284, 0.0
    %v295 = vmax.f32 %v286, 0.0
    %v296 = vpack.c.bf16 %v292, %v288
    %v297 = vpack.c.bf16 %v293, %v289
    %v298 = vpack.c.bf16 %v294, %v290
    %v299 = vpack.c.bf16 %v295, %v291
    %v300 = vld [vmem:[%s4] sm:$0xff]
    %v301 = vld [vmem:[%s4 + $0x8] sm:$0xff]
    %v302 = vld [vmem:[%s4 + $0x10] sm:$0xff]
    %v303 = vld [vmem:[%s4 + $0x18] sm:$0xff]
    %v304 = vld [vmem:[%s4 + $0x20] sm:$0xff]
    %v305 = vld [vmem:[%s4 + $0x28] sm:$0xff]
    %v306 = vld [vmem:[%s4 + $0x30] sm:$0xff]
    %v307 = vld [vmem:[%s4 + $0x38] sm:$0xff]
    %v308 = vld [vmem:[%s4 + $0x40] sm:$0xff]
    %v309 = vld [vmem:[%s4 + $0x48] sm:$0xff]
    %v310 = vld [vmem:[%s4 + $0x50] sm:$0xff]
    %v311 = vld [vmem:[%s4 + $0x58] sm:$0xff]
    %v312 = vld [vmem:[%s4 + $0x60] sm:$0xff]
    %v313 = vld [vmem:[%s4 + $0x68] sm:$0xff]
    %v314 = vld [vmem:[%s4 + $0x70] sm:$0xff]
    %v315 = vld [vmem:[%s4 + $0x78] sm:$0xff]
    %v316 = vld [vmem:[%s4 + $0x80] sm:$0xff]
    %v317 = vld [vmem:[%s4 + $0x88] sm:$0xff]
    %v318 = vld [vmem:[%s4 + $0x90] sm:$0xff]
    %v319 = vld [vmem:[%s4 + $0x98] sm:$0xff]
    %v320 = vld [vmem:[%s4 + $0xa0] sm:$0xff]
    %v321 = vld [vmem:[%s4 + $0xa8] sm:$0xff]
    %v322 = vld [vmem:[%s4 + $0xb0] sm:$0xff]
    %v323 = vld [vmem:[%s4 + $0xb8] sm:$0xff]
    %v324 = vld [vmem:[%s4 + $0xc0] sm:$0xff]
    %v325 = vld [vmem:[%s4 + $0xc8] sm:$0xff]
    %v326 = vld [vmem:[%s4 + $0xd0] sm:$0xff]
    %v327 = vld [vmem:[%s4 + $0xd8] sm:$0xff]
    %v328 = vld [vmem:[%s4 + $0xe0] sm:$0xff]
    %v329 = vld [vmem:[%s4 + $0xe8] sm:$0xff]
    %v330 = vld [vmem:[%s4 + $0xf0] sm:$0xff]
    %v331 = vld [vmem:[%s4 + $0xf8] sm:$0xff]
    %v332 = vld [vmem:[%s4 + $0x100] sm:$0xff]
    %v333 = vld [vmem:[%s4 + $0x108] sm:$0xff]
    %v334 = vld [vmem:[%s4 + $0x110] sm:$0xff]
    %v335 = vld [vmem:[%s4 + $0x118] sm:$0xff]
    %v336 = vld [vmem:[%s4 + $0x120] sm:$0xff]
    %v337 = vld [vmem:[%s4 + $0x128] sm:$0xff]
    %v338 = vld [vmem:[%s4 + $0x130] sm:$0xff]
    %v339 = vld [vmem:[%s4 + $0x138] sm:$0xff]
    %v340 = vld [vmem:[%s4 + $0x140] sm:$0xff]
    %v341 = vld [vmem:[%s4 + $0x148] sm:$0xff]
    %v342 = vld [vmem:[%s4 + $0x150] sm:$0xff]
    %v343 = vld [vmem:[%s4 + $0x158] sm:$0xff]
    %v344 = vld [vmem:[%s4 + $0x160] sm:$0xff]
    %v345 = vld [vmem:[%s4 + $0x168] sm:$0xff]
    %v346 = vld [vmem:[%s4 + $0x170] sm:$0xff]
    %v347 = vld [vmem:[%s4 + $0x178] sm:$0xff]
    %v348 = vld [vmem:[%s4 + $0x180] sm:$0xff]
    %v349 = vld [vmem:[%s4 + $0x188] sm:$0xff]
    %v350 = vld [vmem:[%s4 + $0x190] sm:$0xff]
    %v351 = vld [vmem:[%s4 + $0x198] sm:$0xff]
    %v352 = vld [vmem:[%s4 + $0x1a0] sm:$0xff]
    %v353 = vld [vmem:[%s4 + $0x1a8] sm:$0xff]
    %v354 = vld [vmem:[%s4 + $0x1b0] sm:$0xff]
    %v355 = vld [vmem:[%s4 + $0x1b8] sm:$0xff]
    %v356 = vld [vmem:[%s4 + $0x1c0] sm:$0xff]
    %v357 = vld [vmem:[%s4 + $0x1c8] sm:$0xff]
    %v358 = vld [vmem:[%s4 + $0x1d0] sm:$0xff]
    %v359 = vld [vmem:[%s4 + $0x1d8] sm:$0xff]
    %v360 = vld [vmem:[%s4 + $0x1e0] sm:$0xff]
    %v361 = vld [vmem:[%s4 + $0x1e8] sm:$0xff]
    %v362 = vld [vmem:[%s4 + $0x1f0] sm:$0xff]
    %v363 = vld [vmem:[%s4 + $0x1f8] sm:$0xff]
    %v364 = vunpack.c.l.s8.bf16 %v300
    %v365 = vunpack.c.l.s8.bf16 %v301
    %v366 = vunpack.c.l.s8.bf16 %v302
    %v367 = vunpack.c.l.s8.bf16 %v303
    %v368 = vunpack.c.h.s8.bf16 %v300
    %v369 = vunpack.c.h.s8.bf16 %v301
    %v370 = vunpack.c.h.s8.bf16 %v302
    %v371 = vunpack.c.h.s8.bf16 %v303
    %v372 = vunpack.c.l.s8.bf16 %v304
    %v373 = vunpack.c.l.s8.bf16 %v305
    %v374 = vunpack.c.l.s8.bf16 %v306
    %v375 = vunpack.c.l.s8.bf16 %v307
    %v376 = vunpack.c.h.s8.bf16 %v304
    %v377 = vunpack.c.h.s8.bf16 %v305
    %v378 = vunpack.c.h.s8.bf16 %v306
    %v379 = vunpack.c.h.s8.bf16 %v307
    %v380 = vunpack.c.l.s8.bf16 %v308
    %v381 = vunpack.c.l.s8.bf16 %v309
    %v382 = vunpack.c.l.s8.bf16 %v310
    %v383 = vunpack.c.l.s8.bf16 %v311
    %v384 = vunpack.c.h.s8.bf16 %v308
    %v385 = vunpack.c.h.s8.bf16 %v309
    %v386 = vunpack.c.h.s8.bf16 %v310
    %v387 = vunpack.c.h.s8.bf16 %v311
    %v388 = vunpack.c.l.s8.bf16 %v312
    %v389 = vunpack.c.l.s8.bf16 %v313
    %v390 = vunpack.c.l.s8.bf16 %v314
    %v391 = vunpack.c.l.s8.bf16 %v315
    %v392 = vunpack.c.h.s8.bf16 %v312
    %v393 = vunpack.c.h.s8.bf16 %v313
    %v394 = vunpack.c.h.s8.bf16 %v314
    %v395 = vunpack.c.h.s8.bf16 %v315
    %v396 = vunpack.c.l.s8.bf16 %v316
    %v397 = vunpack.c.l.s8.bf16 %v317
    %v398 = vunpack.c.l.s8.bf16 %v318
    %v399 = vunpack.c.l.s8.bf16 %v319
    %v400 = vunpack.c.h.s8.bf16 %v316
    %v401 = vunpack.c.h.s8.bf16 %v317
    %v402 = vunpack.c.h.s8.bf16 %v318
    %v403 = vunpack.c.h.s8.bf16 %v319
    %v404 = vunpack.c.l.s8.bf16 %v320
    %v405 = vunpack.c.l.s8.bf16 %v321
    %v406 = vunpack.c.l.s8.bf16 %v322
    %v407 = vunpack.c.l.s8.bf16 %v323
    %v408 = vunpack.c.h.s8.bf16 %v320
    %v409 = vunpack.c.h.s8.bf16 %v321
    %v410 = vunpack.c.h.s8.bf16 %v322
    %v411 = vunpack.c.h.s8.bf16 %v323
    %v412 = vunpack.c.l.s8.bf16 %v324
    %v413 = vunpack.c.l.s8.bf16 %v325
    %v414 = vunpack.c.l.s8.bf16 %v326
    %v415 = vunpack.c.l.s8.bf16 %v327
    %v416 = vunpack.c.h.s8.bf16 %v324
    %v417 = vunpack.c.h.s8.bf16 %v325
    %v418 = vunpack.c.h.s8.bf16 %v326
    %v419 = vunpack.c.h.s8.bf16 %v327
    %v420 = vunpack.c.l.s8.bf16 %v328
    %v421 = vunpack.c.l.s8.bf16 %v329
    %v422 = vunpack.c.l.s8.bf16 %v330
    %v423 = vunpack.c.l.s8.bf16 %v331
    %v424 = vunpack.c.h.s8.bf16 %v328
    %v425 = vunpack.c.h.s8.bf16 %v329
    %v426 = vunpack.c.h.s8.bf16 %v330
    %v427 = vunpack.c.h.s8.bf16 %v331
    %v428 = vunpack.c.l.s8.bf16 %v332
    %v429 = vunpack.c.l.s8.bf16 %v333
    %v430 = vunpack.c.l.s8.bf16 %v334
    %v431 = vunpack.c.l.s8.bf16 %v335
    %v432 = vunpack.c.h.s8.bf16 %v332
    %v433 = vunpack.c.h.s8.bf16 %v333
    %v434 = vunpack.c.h.s8.bf16 %v334
    %v435 = vunpack.c.h.s8.bf16 %v335
    %v436 = vunpack.c.l.s8.bf16 %v336
    %v437 = vunpack.c.l.s8.bf16 %v337
    %v438 = vunpack.c.l.s8.bf16 %v338
    %v439 = vunpack.c.l.s8.bf16 %v339
    %v440 = vunpack.c.h.s8.bf16 %v336
    %v441 = vunpack.c.h.s8.bf16 %v337
    %v442 = vunpack.c.h.s8.bf16 %v338
    %v443 = vunpack.c.h.s8.bf16 %v339
    %v444 = vunpack.c.l.s8.bf16 %v340
    %v445 = vunpack.c.l.s8.bf16 %v341
    %v446 = vunpack.c.l.s8.bf16 %v342
    %v447 = vunpack.c.l.s8.bf16 %v343
    %v448 = vunpack.c.h.s8.bf16 %v340
    %v449 = vunpack.c.h.s8.bf16 %v341
    %v450 = vunpack.c.h.s8.bf16 %v342
    %v451 = vunpack.c.h.s8.bf16 %v343
    %v452 = vunpack.c.l.s8.bf16 %v344
    %v453 = vunpack.c.l.s8.bf16 %v345
    %v454 = vunpack.c.l.s8.bf16 %v346
    %v455 = vunpack.c.l.s8.bf16 %v347
    %v456 = vunpack.c.h.s8.bf16 %v344
    %v457 = vunpack.c.h.s8.bf16 %v345
    %v458 = vunpack.c.h.s8.bf16 %v346
    %v459 = vunpack.c.h.s8.bf16 %v347
    %v460 = vunpack.c.l.s8.bf16 %v348
    %v461 = vunpack.c.l.s8.bf16 %v349
    %v462 = vunpack.c.l.s8.bf16 %v350
    %v463 = vunpack.c.l.s8.bf16 %v351
    %v464 = vunpack.c.h.s8.bf16 %v348
    %v465 = vunpack.c.h.s8.bf16 %v349
    %v466 = vunpack.c.h.s8.bf16 %v350
    %v467 = vunpack.c.h.s8.bf16 %v351
    %v468 = vunpack.c.l.s8.bf16 %v352
    %v469 = vunpack.c.l.s8.bf16 %v353
    %v470 = vunpack.c.l.s8.bf16 %v354
    %v471 = vunpack.c.l.s8.bf16 %v355
    %v472 = vunpack.c.h.s8.bf16 %v352
    %v473 = vunpack.c.h.s8.bf16 %v353
    %v474 = vunpack.c.h.s8.bf16 %v354
    %v475 = vunpack.c.h.s8.bf16 %v355
    %v476 = vunpack.c.l.s8.bf16 %v356
    %v477 = vunpack.c.l.s8.bf16 %v357
    %v478 = vunpack.c.l.s8.bf16 %v358
    %v479 = vunpack.c.l.s8.bf16 %v359
    %v480 = vunpack.c.h.s8.bf16 %v356
    %v481 = vunpack.c.h.s8.bf16 %v357
    %v482 = vunpack.c.h.s8.bf16 %v358
    %v483 = vunpack.c.h.s8.bf16 %v359
    %v484 = vunpack.c.l.s8.bf16 %v360
    %v485 = vunpack.c.l.s8.bf16 %v361
    %v486 = vunpack.c.l.s8.bf16 %v362
    %v487 = vunpack.c.l.s8.bf16 %v363
    %v488 = vunpack.c.h.s8.bf16 %v360
    %v489 = vunpack.c.h.s8.bf16 %v361
    %v490 = vunpack.c.h.s8.bf16 %v362
    %v491 = vunpack.c.h.s8.bf16 %v363
    %492 = vmatprep.subr.bf16.mxu0 %v393
    %493 = vmatpush1.bf16.msra.mxu0 %v392
    %494 = vmatprep.subr.bf16.mxu0 %v389
    %495 = vmatpush1.bf16.msra.mxu0 %v388
    %496 = vmatprep.subr.bf16.mxu0 %v385
    %497 = vmatpush1.bf16.msra.mxu0 %v384
    %498 = vmatprep.subr.bf16.mxu0 %v381
    %499 = vmatpush1.bf16.msra.mxu0 %v380
    %500 = vmatprep.subr.bf16.mxu0 %v377
    %501 = vmatpush1.bf16.msra.mxu0 %v376
    %502 = vmatprep.subr.bf16.mxu0 %v373
    %503 = vmatpush1.bf16.msra.mxu0 %v372
    %504 = vmatprep.subr.bf16.mxu0 %v369
    %505 = vmatpush1.bf16.msra.mxu0 %v368
    %506 = vmatprep.subr.bf16.mxu0 %v365
    %507 = vmatpush1.bf16.msra.mxu0 %v364
    %508 = vmatprep.subr.bf16.mxu0 %v425
    %509 = vmatpush2.bf16.msra.mxu0 %v424
    %510 = vmatprep.subr.bf16.mxu0 %v421
    %511 = vmatpush2.bf16.msra.mxu0 %v420
    %512 = vmatprep.subr.bf16.mxu0 %v417
    %513 = vmatpush2.bf16.msra.mxu0 %v416
    %514 = vmatprep.subr.bf16.mxu0 %v413
    %515 = vmatpush2.bf16.msra.mxu0 %v412
    %516 = vmatprep.subr.bf16.mxu0 %v409
    %517 = vmatpush2.bf16.msra.mxu0 %v408
    %518 = vmatprep.subr.bf16.mxu0 %v405
    %519 = vmatpush2.bf16.msra.mxu0 %v404
    %520 = vmatprep.subr.bf16.mxu0 %v401
    %521 = vmatpush2.bf16.msra.mxu0 %v400
    %522 = vmatprep.subr.bf16.mxu0 %v397
    %523 = vmatpush2.bf16.msra.mxu0 %v396
    %524 = vmatprep.mubr.bf16.mxu0 %v297
    %525 = vmatmul.mubr.bf16.gmra.mxu0 %v296
    %v526 = vpop.f32.mrf.mxu0
    %v527 = vadd.f32 0.0, %v526
    %v528 = vpop.f32.mrf.mxu0
    %v529 = vadd.f32 0.0, %v528
    %v530 = vpop.f32.mrf.mxu0
    %v531 = vadd.f32 0.0, %v530
    %v532 = vpop.f32.mrf.mxu0
    %v533 = vadd.f32 0.0, %v532
    %534 = vdwg.mxu0
    %535 = vmatprep.subr.bf16.mxu0 %v457
    %536 = vmatpush1.bf16.msra.mxu0 %v456
    %537 = vmatprep.subr.bf16.mxu0 %v453
    %538 = vmatpush1.bf16.msra.mxu0 %v452
    %539 = vmatprep.subr.bf16.mxu0 %v449
    %540 = vmatpush1.bf16.msra.mxu0 %v448
    %541 = vmatprep.subr.bf16.mxu0 %v445
    %542 = vmatpush1.bf16.msra.mxu0 %v444
    %543 = vmatprep.subr.bf16.mxu0 %v441
    %544 = vmatpush1.bf16.msra.mxu0 %v440
    %545 = vmatprep.subr.bf16.mxu0 %v437
    %546 = vmatpush1.bf16.msra.mxu0 %v436
    %547 = vmatprep.subr.bf16.mxu0 %v433
    %548 = vmatpush1.bf16.msra.mxu0 %v432
    %549 = vmatprep.subr.bf16.mxu0 %v429
    %550 = vmatpush1.bf16.msra.mxu0 %v428
    %551 = vmatprep.subr.bf16.mxu0 %v489
    %552 = vmatpush2.bf16.msra.mxu0 %v488
    %553 = vmatprep.subr.bf16.mxu0 %v485
    %554 = vmatpush2.bf16.msra.mxu0 %v484
    %555 = vmatprep.subr.bf16.mxu0 %v481
    %556 = vmatpush2.bf16.msra.mxu0 %v480
    %557 = vmatprep.subr.bf16.mxu0 %v477
    %558 = vmatpush2.bf16.msra.mxu0 %v476
    %559 = vmatprep.subr.bf16.mxu0 %v473
    %560 = vmatpush2.bf16.msra.mxu0 %v472
    %561 = vmatprep.subr.bf16.mxu0 %v469
    %562 = vmatpush2.bf16.msra.mxu0 %v468
    %563 = vmatprep.subr.bf16.mxu0 %v465
    %564 = vmatpush2.bf16.msra.mxu0 %v464
    %565 = vmatprep.subr.bf16.mxu0 %v461
    %566 = vmatpush2.bf16.msra.mxu0 %v460
    %567 = vmatprep.mubr.bf16.mxu0 %v299
    %568 = vmatmul.mubr.bf16.gmra.mxu0 %v298
    %v569 = vpop.f32.mrf.mxu0
    %v570 = vadd.f32 %v527, %v569
    %v571 = vpop.f32.mrf.mxu0
    %v572 = vadd.f32 %v529, %v571
    %v573 = vpop.f32.mrf.mxu0
    %v574 = vadd.f32 %v531, %v573
    %v575 = vpop.f32.mrf.mxu0
    %v576 = vadd.f32 %v533, %v575
    %577 = vdwg.mxu0
    %578 = vmatprep.subr.bf16.mxu0 %v395
    %579 = vmatpush1.bf16.msra.mxu0 %v394
    %580 = vmatprep.subr.bf16.mxu0 %v391
    %581 = vmatpush1.bf16.msra.mxu0 %v390
    %582 = vmatprep.subr.bf16.mxu0 %v387
    %583 = vmatpush1.bf16.msra.mxu0 %v386
    %584 = vmatprep.subr.bf16.mxu0 %v383
    %585 = vmatpush1.bf16.msra.mxu0 %v382
    %586 = vmatprep.subr.bf16.mxu0 %v379
    %587 = vmatpush1.bf16.msra.mxu0 %v378
    %588 = vmatprep.subr.bf16.mxu0 %v375
    %589 = vmatpush1.bf16.msra.mxu0 %v374
    %590 = vmatprep.subr.bf16.mxu0 %v371
    %591 = vmatpush1.bf16.msra.mxu0 %v370
    %592 = vmatprep.subr.bf16.mxu0 %v367
    %593 = vmatpush1.bf16.msra.mxu0 %v366
    %594 = vmatprep.subr.bf16.mxu0 %v427
    %595 = vmatpush2.bf16.msra.mxu0 %v426
    %596 = vmatprep.subr.bf16.mxu0 %v423
    %597 = vmatpush2.bf16.msra.mxu0 %v422
    %598 = vmatprep.subr.bf16.mxu0 %v419
    %599 = vmatpush2.bf16.msra.mxu0 %v418
    %600 = vmatprep.subr.bf16.mxu0 %v415
    %601 = vmatpush2.bf16.msra.mxu0 %v414
    %602 = vmatprep.subr.bf16.mxu0 %v411
    %603 = vmatpush2.bf16.msra.mxu0 %v410
    %604 = vmatprep.subr.bf16.mxu0 %v407
    %605 = vmatpush2.bf16.msra.mxu0 %v406
    %606 = vmatprep.subr.bf16.mxu0 %v403
    %607 = vmatpush2.bf16.msra.mxu0 %v402
    %608 = vmatprep.subr.bf16.mxu0 %v399
    %609 = vmatpush2.bf16.msra.mxu0 %v398
    %610 = vmatprep.mubr.bf16.mxu0 %v297
    %611 = vmatmul.mubr.bf16.gmra.mxu0 %v296
    %v612 = vpop.f32.mrf.mxu0
    %v613 = vadd.f32 0.0, %v612
    %v614 = vpop.f32.mrf.mxu0
    %v615 = vadd.f32 0.0, %v614
    %v616 = vpop.f32.mrf.mxu0
    %v617 = vadd.f32 0.0, %v616
    %v618 = vpop.f32.mrf.mxu0
    %v619 = vadd.f32 0.0, %v618
    %620 = vdwg.mxu0
    %621 = vmatprep.subr.bf16.mxu0 %v459
    %622 = vmatpush1.bf16.msra.mxu0 %v458
    %623 = vmatprep.subr.bf16.mxu0 %v455
    %624 = vmatpush1.bf16.msra.mxu0 %v454
    %625 = vmatprep.subr.bf16.mxu0 %v451
    %626 = vmatpush1.bf16.msra.mxu0 %v450
    %627 = vmatprep.subr.bf16.mxu0 %v447
    %628 = vmatpush1.bf16.msra.mxu0 %v446
    %629 = vmatprep.subr.bf16.mxu0 %v443
    %630 = vmatpush1.bf16.msra.mxu0 %v442
    %631 = vmatprep.subr.bf16.mxu0 %v439
    %632 = vmatpush1.bf16.msra.mxu0 %v438
    %633 = vmatprep.subr.bf16.mxu0 %v435
    %634 = vmatpush1.bf16.msra.mxu0 %v434
    %635 = vmatprep.subr.bf16.mxu0 %v431
    %636 = vmatpush1.bf16.msra.mxu0 %v430
    %637 = vmatprep.subr.bf16.mxu0 %v491
    %638 = vmatpush2.bf16.msra.mxu0 %v490
    %639 = vmatprep.subr.bf16.mxu0 %v487
    %640 = vmatpush2.bf16.msra.mxu0 %v486
    %641 = vmatprep.subr.bf16.mxu0 %v483
    %642 = vmatpush2.bf16.msra.mxu0 %v482
    %643 = vmatprep.subr.bf16.mxu0 %v479
    %644 = vmatpush2.bf16.msra.mxu0 %v478
    %645 = vmatprep.subr.bf16.mxu0 %v475
    %646 = vmatpush2.bf16.msra.mxu0 %v474
    %647 = vmatprep.subr.bf16.mxu0 %v471
    %648 = vmatpush2.bf16.msra.mxu0 %v470
    %649 = vmatprep.subr.bf16.mxu0 %v467
    %650 = vmatpush2.bf16.msra.mxu0 %v466
    %651 = vmatprep.subr.bf16.mxu0 %v463
    %652 = vmatpush2.bf16.msra.mxu0 %v462
    %653 = vmatprep.mubr.bf16.mxu0 %v299
    %654 = vmatmul.mubr.bf16.gmra.mxu0 %v298
    %v655 = vpop.f32.mrf.mxu0
    %v656 = vadd.f32 %v613, %v655
    %v657 = vpop.f32.mrf.mxu0
    %v658 = vadd.f32 %v615, %v657
    %v659 = vpop.f32.mrf.mxu0
    %v660 = vadd.f32 %v617, %v659
    %v661 = vpop.f32.mrf.mxu0
    %v662 = vadd.f32 %v619, %v661
    %663 = vdwg.mxu0
    %v664 = vld [vmem:[#allocation4] sm:$0xf]
    %v666 = vlaneseq
    %v667 = vshrl.u32 %v666, 7
    %v668 = vsub.s32 0, %v667
    %v669 = vrot.slane %v664, %v668
    %v670 = vlaneseq
    %v671 = vshrl.u32 %v670, 7
    %v672 = vsub.s32 1, %v671
    %v673 = vrot.slane %v664, %v672
    %v674 = vlaneseq
    %v675 = vshrl.u32 %v674, 7
    %v676 = vsub.s32 2, %v675
    %v677 = vrot.slane %v664, %v676
    %v678 = vlaneseq
    %v679 = vshrl.u32 %v678, 7
    %v680 = vsub.s32 3, %v679
    %v681 = vrot.slane %v664, %v680
    %v686 = vmul.f32 %v570, %v669
    %v687 = vmul.f32 %v572, %v673
    %v688 = vmul.f32 %v656, %v677
    %v689 = vmul.f32 %v658, %v681
    %v690 = vmul.f32 %v574, %v669
    %v691 = vmul.f32 %v576, %v673
    %v692 = vmul.f32 %v660, %v677
    %v693 = vmul.f32 %v662, %v681
    %v694 = vld [vmem:[#allocation7] sm:$0xf]
    %v696 = vlaneseq
    %v697 = vshrl.u32 %v696, 7
    %v698 = vsub.s32 0, %v697
    %v699 = vrot.slane %v694, %v698
    %v700 = vlaneseq
    %v701 = vshrl.u32 %v700, 7
    %v702 = vsub.s32 1, %v701
    %v703 = vrot.slane %v694, %v702
    %v704 = vlaneseq
    %v705 = vshrl.u32 %v704, 7
    %v706 = vsub.s32 2, %v705
    %v707 = vrot.slane %v694, %v706
    %v708 = vlaneseq
    %v709 = vshrl.u32 %v708, 7
    %v710 = vsub.s32 3, %v709
    %v711 = vrot.slane %v694, %v710
    %v716 = vadd.f32 %v686, %v699
    %v717 = vadd.f32 %v687, %v703
    %v718 = vadd.f32 %v688, %v707
    %v719 = vadd.f32 %v689, %v711
    %v720 = vadd.f32 %v690, %v699
    %v721 = vadd.f32 %v691, %v703
    %v722 = vadd.f32 %v692, %v707
    %v723 = vadd.f32 %v693, %v711
    %v724 = vmax.f32 %v716, 0.0
    %v725 = vmax.f32 %v717, 0.0
    %v726 = vmax.f32 %v718, 0.0
    %v727 = vmax.f32 %v719, 0.0
    %v728 = vmax.f32 %v720, 0.0
    %v729 = vmax.f32 %v721, 0.0
    %v730 = vmax.f32 %v722, 0.0
    %v731 = vmax.f32 %v723, 0.0
    %v732 = vpack.c.bf16 %v728, %v724
    %v733 = vpack.c.bf16 %v729, %v725
    %v734 = vpack.c.bf16 %v730, %v726
    %v735 = vpack.c.bf16 %v731, %v727
    %v736 = vld [vmem:[%s7] sm:$0xf]
    %v737 = vld [vmem:[%s7 + $0x4] sm:$0xf]
    %v738 = vld [vmem:[%s7 + $0x8] sm:$0xf]
    %v739 = vld [vmem:[%s7 + $0xc] sm:$0xf]
    %v740 = vld [vmem:[%s7 + $0x10] sm:$0xf]
    %v741 = vld [vmem:[%s7 + $0x14] sm:$0xf]
    %v742 = vld [vmem:[%s7 + $0x18] sm:$0xf]
    %v743 = vld [vmem:[%s7 + $0x1c] sm:$0xf]
    %v744 = vld [vmem:[%s7 + $0x20] sm:$0xf]
    %v745 = vld [vmem:[%s7 + $0x24] sm:$0xf]
    %v746 = vld [vmem:[%s7 + $0x28] sm:$0xf]
    %v747 = vld [vmem:[%s7 + $0x2c] sm:$0xf]
    %v748 = vld [vmem:[%s7 + $0x30] sm:$0xf]
    %v749 = vld [vmem:[%s7 + $0x34] sm:$0xf]
    %v750 = vld [vmem:[%s7 + $0x38] sm:$0xf]
    %v751 = vld [vmem:[%s7 + $0x3c] sm:$0xf]
    %v752 = vld [vmem:[%s7 + $0x40] sm:$0xf]
    %v753 = vld [vmem:[%s7 + $0x44] sm:$0xf]
    %v754 = vld [vmem:[%s7 + $0x48] sm:$0xf]
    %v755 = vld [vmem:[%s7 + $0x4c] sm:$0xf]
    %v756 = vld [vmem:[%s7 + $0x50] sm:$0xf]
    %v757 = vld [vmem:[%s7 + $0x54] sm:$0xf]
    %v758 = vld [vmem:[%s7 + $0x58] sm:$0xf]
    %v759 = vld [vmem:[%s7 + $0x5c] sm:$0xf]
    %v760 = vld [vmem:[%s7 + $0x60] sm:$0xf]
    %v761 = vld [vmem:[%s7 + $0x64] sm:$0xf]
    %v762 = vld [vmem:[%s7 + $0x68] sm:$0xf]
    %v763 = vld [vmem:[%s7 + $0x6c] sm:$0xf]
    %v764 = vld [vmem:[%s7 + $0x70] sm:$0xf]
    %v765 = vld [vmem:[%s7 + $0x74] sm:$0xf]
    %v766 = vld [vmem:[%s7 + $0x78] sm:$0xf]
    %v767 = vld [vmem:[%s7 + $0x7c] sm:$0xf]
    %v768 = vld [vmem:[%s7 + $0x80] sm:$0xf]
    %v769 = vld [vmem:[%s7 + $0x84] sm:$0xf]
    %v770 = vld [vmem:[%s7 + $0x88] sm:$0xf]
    %v771 = vld [vmem:[%s7 + $0x8c] sm:$0xf]
    %v772 = vld [vmem:[%s7 + $0x90] sm:$0xf]
    %v773 = vld [vmem:[%s7 + $0x94] sm:$0xf]
    %v774 = vld [vmem:[%s7 + $0x98] sm:$0xf]
    %v775 = vld [vmem:[%s7 + $0x9c] sm:$0xf]
    %v776 = vld [vmem:[%s7 + $0xa0] sm:$0xf]
    %v777 = vld [vmem:[%s7 + $0xa4] sm:$0xf]
    %v778 = vld [vmem:[%s7 + $0xa8] sm:$0xf]
    %v779 = vld [vmem:[%s7 + $0xac] sm:$0xf]
    %v780 = vld [vmem:[%s7 + $0xb0] sm:$0xf]
    %v781 = vld [vmem:[%s7 + $0xb4] sm:$0xf]
    %v782 = vld [vmem:[%s7 + $0xb8] sm:$0xf]
    %v783 = vld [vmem:[%s7 + $0xbc] sm:$0xf]
    %v784 = vld [vmem:[%s7 + $0xc0] sm:$0xf]
    %v785 = vld [vmem:[%s7 + $0xc4] sm:$0xf]
    %v786 = vld [vmem:[%s7 + $0xc8] sm:$0xf]
    %v787 = vld [vmem:[%s7 + $0xcc] sm:$0xf]
    %v788 = vld [vmem:[%s7 + $0xd0] sm:$0xf]
    %v789 = vld [vmem:[%s7 + $0xd4] sm:$0xf]
    %v790 = vld [vmem:[%s7 + $0xd8] sm:$0xf]
    %v791 = vld [vmem:[%s7 + $0xdc] sm:$0xf]
    %v792 = vld [vmem:[%s7 + $0xe0] sm:$0xf]
    %v793 = vld [vmem:[%s7 + $0xe4] sm:$0xf]
    %v794 = vld [vmem:[%s7 + $0xe8] sm:$0xf]
    %v795 = vld [vmem:[%s7 + $0xec] sm:$0xf]
    %v796 = vld [vmem:[%s7 + $0xf0] sm:$0xf]
    %v797 = vld [vmem:[%s7 + $0xf4] sm:$0xf]
    %v798 = vld [vmem:[%s7 + $0xf8] sm:$0xf]
    %v799 = vld [vmem:[%s7 + $0xfc] sm:$0xf]
    %v800 = vld [vmem:[%s8] sm:$0x1]
    %v802 = vlaneseq
    %v803 = vshrl.u32 %v802, 7
    %v804 = vsub.s32 0, %v803
    %v805 = vrot.slane %v800, %v804
    %v871 = vunpack.c.l.b16 %v736
    %v872 = vunpack.c.l.b16 %v737
    %v873 = vunpack.c.l.b16 %v738
    %v874 = vunpack.c.l.b16 %v739
    %v875 = vunpack.c.l.b16 %v740
    %v876 = vunpack.c.l.b16 %v741
    %v877 = vunpack.c.l.b16 %v742
    %v878 = vunpack.c.l.b16 %v743
    %v879 = vunpack.c.l.b16 %v744
    %v880 = vunpack.c.l.b16 %v745
    %v881 = vunpack.c.l.b16 %v746
    %v882 = vunpack.c.l.b16 %v747
    %v883 = vunpack.c.l.b16 %v748
    %v884 = vunpack.c.l.b16 %v749
    %v885 = vunpack.c.l.b16 %v750
    %v886 = vunpack.c.l.b16 %v751
    %v887 = vunpack.c.l.b16 %v752
    %v888 = vunpack.c.l.b16 %v753
    %v889 = vunpack.c.l.b16 %v754
    %v890 = vunpack.c.l.b16 %v755
    %v891 = vunpack.c.l.b16 %v756
    %v892 = vunpack.c.l.b16 %v757
    %v893 = vunpack.c.l.b16 %v758
    %v894 = vunpack.c.l.b16 %v759
    %v895 = vunpack.c.l.b16 %v760
    %v896 = vunpack.c.l.b16 %v761
    %v897 = vunpack.c.l.b16 %v762
    %v898 = vunpack.c.l.b16 %v763
    %v899 = vunpack.c.l.b16 %v764
    %v900 = vunpack.c.l.b16 %v765
    %v901 = vunpack.c.l.b16 %v766
    %v902 = vunpack.c.l.b16 %v767
    %v903 = vunpack.c.l.b16 %v768
    %v904 = vunpack.c.l.b16 %v769
    %v905 = vunpack.c.l.b16 %v770
    %v906 = vunpack.c.l.b16 %v771
    %v907 = vunpack.c.l.b16 %v772
    %v908 = vunpack.c.l.b16 %v773
    %v909 = vunpack.c.l.b16 %v774
    %v910 = vunpack.c.l.b16 %v775
    %v911 = vunpack.c.l.b16 %v776
    %v912 = vunpack.c.l.b16 %v777
    %v913 = vunpack.c.l.b16 %v778
    %v914 = vunpack.c.l.b16 %v779
    %v915 = vunpack.c.l.b16 %v780
    %v916 = vunpack.c.l.b16 %v781
    %v917 = vunpack.c.l.b16 %v782
    %v918 = vunpack.c.l.b16 %v783
    %v919 = vunpack.c.l.b16 %v784
    %v920 = vunpack.c.l.b16 %v785
    %v921 = vunpack.c.l.b16 %v786
    %v922 = vunpack.c.l.b16 %v787
    %v923 = vunpack.c.l.b16 %v788
    %v924 = vunpack.c.l.b16 %v789
    %v925 = vunpack.c.l.b16 %v790
    %v926 = vunpack.c.l.b16 %v791
    %v927 = vunpack.c.l.b16 %v792
    %v928 = vunpack.c.l.b16 %v793
    %v929 = vunpack.c.l.b16 %v794
    %v930 = vunpack.c.l.b16 %v795
    %v931 = vunpack.c.l.b16 %v796
    %v932 = vunpack.c.l.b16 %v797
    %v933 = vunpack.c.l.b16 %v798
    %v934 = vunpack.c.l.b16 %v799
    %v935 = vpack.c.b16 %v872, %v871
    %v936 = vpack.c.b16 %v874, %v873
    %v937 = vpack.c.b16 %v876, %v875
    %v938 = vpack.c.b16 %v878, %v877
    %v939 = vpack.c.b16 %v880, %v879
    %v940 = vpack.c.b16 %v882, %v881
    %v941 = vpack.c.b16 %v884, %v883
    %v942 = vpack.c.b16 %v886, %v885
    %v943 = vpack.c.b16 %v888, %v887
    %v944 = vpack.c.b16 %v890, %v889
    %v945 = vpack.c.b16 %v892, %v891
    %v946 = vpack.c.b16 %v894, %v893
    %v947 = vpack.c.b16 %v896, %v895
    %v948 = vpack.c.b16 %v898, %v897
    %v949 = vpack.c.b16 %v900, %v899
    %v950 = vpack.c.b16 %v902, %v901
    %v951 = vpack.c.b16 %v904, %v903
    %v952 = vpack.c.b16 %v906, %v905
    %v953 = vpack.c.b16 %v908, %v907
    %v954 = vpack.c.b16 %v910, %v909
    %v955 = vpack.c.b16 %v912, %v911
    %v956 = vpack.c.b16 %v914, %v913
    %v957 = vpack.c.b16 %v916, %v915
    %v958 = vpack.c.b16 %v918, %v917
    %v959 = vpack.c.b16 %v920, %v919
    %v960 = vpack.c.b16 %v922, %v921
    %v961 = vpack.c.b16 %v924, %v923
    %v962 = vpack.c.b16 %v926, %v925
    %v963 = vpack.c.b16 %v928, %v927
    %v964 = vpack.c.b16 %v930, %v929
    %v965 = vpack.c.b16 %v932, %v931
    %v966 = vpack.c.b16 %v934, %v933
    %999 = vmatprep.subr.bf16.mxu0 0
    %1000 = vmatpush1.bf16.msra.mxu0 %v942
    %1001 = vmatprep.subr.bf16.mxu0 0
    %1002 = vmatpush1.bf16.msra.mxu0 %v941
    %1003 = vmatprep.subr.bf16.mxu0 0
    %1004 = vmatpush1.bf16.msra.mxu0 %v940
    %1005 = vmatprep.subr.bf16.mxu0 0
    %1006 = vmatpush1.bf16.msra.mxu0 %v939
    %1007 = vmatprep.subr.bf16.mxu0 0
    %1008 = vmatpush1.bf16.msra.mxu0 %v938
    %1009 = vmatprep.subr.bf16.mxu0 0
    %1010 = vmatpush1.bf16.msra.mxu0 %v937
    %1011 = vmatprep.subr.bf16.mxu0 0
    %1012 = vmatpush1.bf16.msra.mxu0 %v936
    %1013 = vmatprep.subr.bf16.mxu0 0
    %1014 = vmatpush1.bf16.msra.mxu0 %v935
    %1015 = vmatprep.subr.bf16.mxu0 0
    %1016 = vmatpush2.bf16.msra.mxu0 %v950
    %1017 = vmatprep.subr.bf16.mxu0 0
    %1018 = vmatpush2.bf16.msra.mxu0 %v949
    %1019 = vmatprep.subr.bf16.mxu0 0
    %1020 = vmatpush2.bf16.msra.mxu0 %v948
    %1021 = vmatprep.subr.bf16.mxu0 0
    %1022 = vmatpush2.bf16.msra.mxu0 %v947
    %1023 = vmatprep.subr.bf16.mxu0 0
    %1024 = vmatpush2.bf16.msra.mxu0 %v946
    %1025 = vmatprep.subr.bf16.mxu0 0
    %1026 = vmatpush2.bf16.msra.mxu0 %v945
    %1027 = vmatprep.subr.bf16.mxu0 0
    %1028 = vmatpush2.bf16.msra.mxu0 %v944
    %1029 = vmatprep.subr.bf16.mxu0 0
    %1030 = vmatpush2.bf16.msra.mxu0 %v943
    %1031 = vmatprep.mubr.bf16.mxu0 %v733
    %1032 = vmatmul.mubr.bf16.gmra.mxu0 %v732
    %v1033 = vpop.f32.mrf.mxu0
    %v1034 = vadd.f32 %v805, %v1033
    %v1035 = vpop.f32.mrf.mxu0
    %v1036 = vpop.f32.mrf.mxu0
    %v1037 = vadd.f32 %v805, %v1036
    %v1038 = vpop.f32.mrf.mxu0
    %1039 = vdwg.mxu0
    %1040 = vmatprep.subr.bf16.mxu0 0
    %1041 = vmatpush1.bf16.msra.mxu0 %v958
    %1042 = vmatprep.subr.bf16.mxu0 0
    %1043 = vmatpush1.bf16.msra.mxu0 %v957
    %1044 = vmatprep.subr.bf16.mxu0 0
    %1045 = vmatpush1.bf16.msra.mxu0 %v956
    %1046 = vmatprep.subr.bf16.mxu0 0
    %1047 = vmatpush1.bf16.msra.mxu0 %v955
    %1048 = vmatprep.subr.bf16.mxu0 0
    %1049 = vmatpush1.bf16.msra.mxu0 %v954
    %1050 = vmatprep.subr.bf16.mxu0 0
    %1051 = vmatpush1.bf16.msra.mxu0 %v953
    %1052 = vmatprep.subr.bf16.mxu0 0
    %1053 = vmatpush1.bf16.msra.mxu0 %v952
    %1054 = vmatprep.subr.bf16.mxu0 0
    %1055 = vmatpush1.bf16.msra.mxu0 %v951
    %1056 = vmatprep.subr.bf16.mxu0 0
    %1057 = vmatpush2.bf16.msra.mxu0 %v966
    %1058 = vmatprep.subr.bf16.mxu0 0
    %1059 = vmatpush2.bf16.msra.mxu0 %v965
    %1060 = vmatprep.subr.bf16.mxu0 0
    %1061 = vmatpush2.bf16.msra.mxu0 %v964
    %1062 = vmatprep.subr.bf16.mxu0 0
    %1063 = vmatpush2.bf16.msra.mxu0 %v963
    %1064 = vmatprep.subr.bf16.mxu0 0
    %1065 = vmatpush2.bf16.msra.mxu0 %v962
    %1066 = vmatprep.subr.bf16.mxu0 0
    %1067 = vmatpush2.bf16.msra.mxu0 %v961
    %1068 = vmatprep.subr.bf16.mxu0 0
    %1069 = vmatpush2.bf16.msra.mxu0 %v960
    %1070 = vmatprep.subr.bf16.mxu0 0
    %1071 = vmatpush2.bf16.msra.mxu0 %v959
    %1072 = vmatprep.mubr.bf16.mxu0 %v735
    %1073 = vmatmul.mubr.bf16.gmra.mxu0 %v734
    %v1074 = vpop.f32.mrf.mxu0
    %v1075 = vadd.f32 %v1034, %v1074
    %v1076 = vpop.f32.mrf.mxu0
    %v1077 = vpop.f32.mrf.mxu0
    %v1078 = vadd.f32 %v1037, %v1077
    %v1079 = vpop.f32.mrf.mxu0
    %1080 = vdwg.mxu0
    %v1081 = vmax.f32 %v1075, 0.0
    %v1082 = vmax.f32 %v1078, 0.0
    %v1083 = vpack.c.bf16 %v1082, %v1081
    %v1084 = vld [vmem:[%s9] sm:$0xf]
    %v1085 = vld [vmem:[%s9 + $0x4] sm:$0xf]
    %v1086 = vld [vmem:[%s9 + $0x8] sm:$0xf]
    %v1087 = vld [vmem:[%s9 + $0xc] sm:$0xf]
    %v1088 = vld [vmem:[%s10] sm:$0x1]
    %v1090 = vlaneseq
    %v1091 = vshrl.u32 %v1090, 7
    %v1092 = vsub.s32 0, %v1091
    %v1093 = vrot.slane %v1088, %v1092
    %v1099 = vunpack.c.l.b16 %v1084
    %v1100 = vunpack.c.l.b16 %v1085
    %v1101 = vunpack.c.l.b16 %v1086
    %v1102 = vunpack.c.l.b16 %v1087
    %v1103 = vpack.c.b16 %v1100, %v1099
    %v1104 = vpack.c.b16 %v1102, %v1101
    %v1108 = vsel %vm198, %v1083, 0
    %1110 = vmatprep.subr.bf16.mxu0 0
    %1111 = vmatpush1.bf16.msra.mxu0 0
    %1112 = vmatprep.subr.bf16.mxu0 0
    %1113 = vmatpush1.bf16.msra.mxu0 0
    %1114 = vmatprep.subr.bf16.mxu0 0
    %1115 = vmatpush1.bf16.msra.mxu0 0
    %1116 = vmatprep.subr.bf16.mxu0 0
    %1117 = vmatpush1.bf16.msra.mxu0 0
    %1118 = vmatprep.subr.bf16.mxu0 0
    %1119 = vmatpush1.bf16.msra.mxu0 0
    %1120 = vmatprep.subr.bf16.mxu0 0
    %1121 = vmatpush1.bf16.msra.mxu0 0
    %1122 = vmatprep.subr.bf16.mxu0 0
    %1123 = vmatpush1.bf16.msra.mxu0 %v1104
    %1124 = vmatprep.subr.bf16.mxu0 0
    %1125 = vmatpush1.bf16.msra.mxu0 %v1103
    %1126 = vmatprep.subr.bf16.mxu0 0
    %1127 = vmatpush2.bf16.msra.mxu0 0
    %1128 = vmatprep.subr.bf16.mxu0 0
    %1129 = vmatpush2.bf16.msra.mxu0 0
    %1130 = vmatprep.subr.bf16.mxu0 0
    %1131 = vmatpush2.bf16.msra.mxu0 0
    %1132 = vmatprep.subr.bf16.mxu0 0
    %1133 = vmatpush2.bf16.msra.mxu0 0
    %1134 = vmatprep.subr.bf16.mxu0 0
    %1135 = vmatpush2.bf16.msra.mxu0 0
    %1136 = vmatprep.subr.bf16.mxu0 0
    %1137 = vmatpush2.bf16.msra.mxu0 0
    %1138 = vmatprep.subr.bf16.mxu0 0
    %1139 = vmatpush2.bf16.msra.mxu0 0
    %1140 = vmatprep.subr.bf16.mxu0 0
    %1141 = vmatpush2.bf16.msra.mxu0 0
    %1142 = vmatprep.mubr.bf16.mxu0 0
    %1143 = vmatmul.mubr.bf16.gmra.mxu0 %v1108
    %v1144 = vpop.f32.mrf.mxu0
    %v1145 = vadd.f32 %v1093, %v1144
    %v1146 = vpop.f32.mrf.mxu0
    %v1147 = vpop.f32.mrf.mxu0
    %v1148 = vadd.f32 %v1093, %v1147
    %v1149 = vpop.f32.mrf.mxu0
    %1150 = vdwg.mxu0
    %1151 = vst [vmem:[%s20] sm:$0xff] %v1145
    %s1152 = scalar_lea.vmem %s20, 8
    %1153 = vst [vmem:[%s1152] sm:$0xff] %v1148
    %v1154 = vld [vmem:[%s1] sm:$0xff]
    %v1155 = vpack.c.bf16 %v1154, %v1154
    %v1156 = vld [vmem:[%s11] sm:$0xff]
    %v1157 = vld [vmem:[%s11 + $0x8] sm:$0xff]
    %v1158 = vld [vmem:[%s11 + $0x10] sm:$0xff]
    %v1159 = vld [vmem:[%s11 + $0x18] sm:$0xff]
    %v1160 = vld [vmem:[%s11 + $0x20] sm:$0xff]
    %v1161 = vld [vmem:[%s11 + $0x28] sm:$0xff]
    %v1162 = vld [vmem:[%s11 + $0x30] sm:$0xff]
    %v1163 = vld [vmem:[%s11 + $0x38] sm:$0xff]
    %v1164 = vld [vmem:[%s11 + $0x40] sm:$0xff]
    %v1165 = vld [vmem:[%s11 + $0x48] sm:$0xff]
    %v1166 = vld [vmem:[%s11 + $0x50] sm:$0xff]
    %v1167 = vld [vmem:[%s11 + $0x58] sm:$0xff]
    %v1168 = vld [vmem:[%s11 + $0x60] sm:$0xff]
    %v1169 = vld [vmem:[%s11 + $0x68] sm:$0xff]
    %v1170 = vld [vmem:[%s11 + $0x70] sm:$0xff]
    %v1171 = vld [vmem:[%s11 + $0x78] sm:$0xff]
    %v1172 = vld [vmem:[%s11 + $0x80] sm:$0xff]
    %v1173 = vld [vmem:[%s11 + $0x88] sm:$0xff]
    %v1174 = vld [vmem:[%s11 + $0x90] sm:$0xff]
    %v1175 = vld [vmem:[%s11 + $0x98] sm:$0xff]
    %v1176 = vld [vmem:[%s11 + $0xa0] sm:$0xff]
    %v1177 = vld [vmem:[%s11 + $0xa8] sm:$0xff]
    %v1178 = vld [vmem:[%s11 + $0xb0] sm:$0xff]
    %v1179 = vld [vmem:[%s11 + $0xb8] sm:$0xff]
    %v1180 = vld [vmem:[%s11 + $0xc0] sm:$0xff]
    %v1181 = vld [vmem:[%s11 + $0xc8] sm:$0xff]
    %v1182 = vld [vmem:[%s11 + $0xd0] sm:$0xff]
    %v1183 = vld [vmem:[%s11 + $0xd8] sm:$0xff]
    %v1184 = vld [vmem:[%s11 + $0xe0] sm:$0xff]
    %v1185 = vld [vmem:[%s11 + $0xe8] sm:$0xff]
    %v1186 = vld [vmem:[%s11 + $0xf0] sm:$0xff]
    %v1187 = vld [vmem:[%s11 + $0xf8] sm:$0xff]
    %v1188 = vld [vmem:[%s12] sm:$0xff]
    %v1190 = vlaneseq
    %v1191 = vshrl.u32 %v1190, 7
    %v1192 = vsub.s32 0, %v1191
    %v1193 = vrot.slane %v1188, %v1192
    %v1194 = vlaneseq
    %v1195 = vshrl.u32 %v1194, 7
    %v1196 = vsub.s32 1, %v1195
    %v1197 = vrot.slane %v1188, %v1196
    %v1198 = vlaneseq
    %v1199 = vshrl.u32 %v1198, 7
    %v1200 = vsub.s32 2, %v1199
    %v1201 = vrot.slane %v1188, %v1200
    %v1202 = vlaneseq
    %v1203 = vshrl.u32 %v1202, 7
    %v1204 = vsub.s32 3, %v1203
    %v1205 = vrot.slane %v1188, %v1204
    %v1206 = vlaneseq
    %v1207 = vshrl.u32 %v1206, 7
    %v1208 = vsub.s32 4, %v1207
    %v1209 = vrot.slane %v1188, %v1208
    %v1210 = vlaneseq
    %v1211 = vshrl.u32 %v1210, 7
    %v1212 = vsub.s32 5, %v1211
    %v1213 = vrot.slane %v1188, %v1212
    %v1214 = vlaneseq
    %v1215 = vshrl.u32 %v1214, 7
    %v1216 = vsub.s32 6, %v1215
    %v1217 = vrot.slane %v1188, %v1216
    %v1218 = vlaneseq
    %v1219 = vshrl.u32 %v1218, 7
    %v1220 = vsub.s32 7, %v1219
    %v1221 = vrot.slane %v1188, %v1220
    %v1262 = vunpack.c.l.b16 %v1156
    %v1263 = vunpack.c.h.b16 %v1156
    %v1264 = vunpack.c.l.b16 %v1157
    %v1265 = vunpack.c.h.b16 %v1157
    %v1266 = vunpack.c.l.b16 %v1158
    %v1267 = vunpack.c.h.b16 %v1158
    %v1268 = vunpack.c.l.b16 %v1159
    %v1269 = vunpack.c.h.b16 %v1159
    %v1270 = vunpack.c.l.b16 %v1160
    %v1271 = vunpack.c.h.b16 %v1160
    %v1272 = vunpack.c.l.b16 %v1161
    %v1273 = vunpack.c.h.b16 %v1161
    %v1274 = vunpack.c.l.b16 %v1162
    %v1275 = vunpack.c.h.b16 %v1162
    %v1276 = vunpack.c.l.b16 %v1163
    %v1277 = vunpack.c.h.b16 %v1163
    %v1278 = vunpack.c.l.b16 %v1164
    %v1279 = vunpack.c.h.b16 %v1164
    %v1280 = vunpack.c.l.b16 %v1165
    %v1281 = vunpack.c.h.b16 %v1165
    %v1282 = vunpack.c.l.b16 %v1166
    %v1283 = vunpack.c.h.b16 %v1166
    %v1284 = vunpack.c.l.b16 %v1167
    %v1285 = vunpack.c.h.b16 %v1167
    %v1286 = vunpack.c.l.b16 %v1168
    %v1287 = vunpack.c.h.b16 %v1168
    %v1288 = vunpack.c.l.b16 %v1169
    %v1289 = vunpack.c.h.b16 %v1169
    %v1290 = vunpack.c.l.b16 %v1170
    %v1291 = vunpack.c.h.b16 %v1170
    %v1292 = vunpack.c.l.b16 %v1171
    %v1293 = vunpack.c.h.b16 %v1171
    %v1294 = vunpack.c.l.b16 %v1172
    %v1295 = vunpack.c.h.b16 %v1172
    %v1296 = vunpack.c.l.b16 %v1173
    %v1297 = vunpack.c.h.b16 %v1173
    %v1298 = vunpack.c.l.b16 %v1174
    %v1299 = vunpack.c.h.b16 %v1174
    %v1300 = vunpack.c.l.b16 %v1175
    %v1301 = vunpack.c.h.b16 %v1175
    %v1302 = vunpack.c.l.b16 %v1176
    %v1303 = vunpack.c.h.b16 %v1176
    %v1304 = vunpack.c.l.b16 %v1177
    %v1305 = vunpack.c.h.b16 %v1177
    %v1306 = vunpack.c.l.b16 %v1178
    %v1307 = vunpack.c.h.b16 %v1178
    %v1308 = vunpack.c.l.b16 %v1179
    %v1309 = vunpack.c.h.b16 %v1179
    %v1310 = vunpack.c.l.b16 %v1180
    %v1311 = vunpack.c.h.b16 %v1180
    %v1312 = vunpack.c.l.b16 %v1181
    %v1313 = vunpack.c.h.b16 %v1181
    %v1314 = vunpack.c.l.b16 %v1182
    %v1315 = vunpack.c.h.b16 %v1182
    %v1316 = vunpack.c.l.b16 %v1183
    %v1317 = vunpack.c.h.b16 %v1183
    %v1318 = vunpack.c.l.b16 %v1184
    %v1319 = vunpack.c.h.b16 %v1184
    %v1320 = vunpack.c.l.b16 %v1185
    %v1321 = vunpack.c.h.b16 %v1185
    %v1322 = vunpack.c.l.b16 %v1186
    %v1323 = vunpack.c.h.b16 %v1186
    %v1324 = vunpack.c.l.b16 %v1187
    %v1325 = vunpack.c.h.b16 %v1187
    %v1326 = vpack.c.b16 %v1270, %v1262
    %v1327 = vpack.c.b16 %v1271, %v1263
    %v1328 = vpack.c.b16 %v1272, %v1264
    %v1329 = vpack.c.b16 %v1273, %v1265
    %v1330 = vpack.c.b16 %v1274, %v1266
    %v1331 = vpack.c.b16 %v1275, %v1267
    %v1332 = vpack.c.b16 %v1276, %v1268
    %v1333 = vpack.c.b16 %v1277, %v1269
    %v1334 = vpack.c.b16 %v1286, %v1278
    %v1335 = vpack.c.b16 %v1287, %v1279
    %v1336 = vpack.c.b16 %v1288, %v1280
    %v1337 = vpack.c.b16 %v1289, %v1281
    %v1338 = vpack.c.b16 %v1290, %v1282
    %v1339 = vpack.c.b16 %v1291, %v1283
    %v1340 = vpack.c.b16 %v1292, %v1284
    %v1341 = vpack.c.b16 %v1293, %v1285
    %v1342 = vpack.c.b16 %v1302, %v1294
    %v1343 = vpack.c.b16 %v1303, %v1295
    %v1344 = vpack.c.b16 %v1304, %v1296
    %v1345 = vpack.c.b16 %v1305, %v1297
    %v1346 = vpack.c.b16 %v1306, %v1298
    %v1347 = vpack.c.b16 %v1307, %v1299
    %v1348 = vpack.c.b16 %v1308, %v1300
    %v1349 = vpack.c.b16 %v1309, %v1301
    %v1350 = vpack.c.b16 %v1318, %v1310
    %v1351 = vpack.c.b16 %v1319, %v1311
    %v1352 = vpack.c.b16 %v1320, %v1312
    %v1353 = vpack.c.b16 %v1321, %v1313
    %v1354 = vpack.c.b16 %v1322, %v1314
    %v1355 = vpack.c.b16 %v1323, %v1315
    %v1356 = vpack.c.b16 %v1324, %v1316
    %v1357 = vpack.c.b16 %v1325, %v1317
    %vm1390 = vcmask 523264
    %v1392 = vsel %vm1390, %v1155, 0
    %1394 = vmatprep.subr.bf16.mxu0 0
    %1395 = vmatpush1.bf16.msra.mxu0 0
    %1396 = vmatprep.subr.bf16.mxu0 0
    %1397 = vmatpush1.bf16.msra.mxu0 0
    %1398 = vmatprep.subr.bf16.mxu0 0
    %1399 = vmatpush1.bf16.msra.mxu0 0
    %1400 = vmatprep.subr.bf16.mxu0 0
    %1401 = vmatpush1.bf16.msra.mxu0 0
    %1402 = vmatprep.subr.bf16.mxu0 %v1351
    %1403 = vmatpush1.bf16.msra.mxu0 %v1350
    %1404 = vmatprep.subr.bf16.mxu0 %v1343
    %1405 = vmatpush1.bf16.msra.mxu0 %v1342
    %1406 = vmatprep.subr.bf16.mxu0 %v1335
    %1407 = vmatpush1.bf16.msra.mxu0 %v1334
    %1408 = vmatprep.subr.bf16.mxu0 %v1327
    %1409 = vmatpush1.bf16.msra.mxu0 %v1326
    %1410 = vmatprep.subr.bf16.mxu0 0
    %1411 = vmatpush2.bf16.msra.mxu0 0
    %1412 = vmatprep.subr.bf16.mxu0 0
    %1413 = vmatpush2.bf16.msra.mxu0 0
    %1414 = vmatprep.subr.bf16.mxu0 0
    %1415 = vmatpush2.bf16.msra.mxu0 0
    %1416 = vmatprep.subr.bf16.mxu0 0
    %1417 = vmatpush2.bf16.msra.mxu0 0
    %1418 = vmatprep.subr.bf16.mxu0 0
    %1419 = vmatpush2.bf16.msra.mxu0 0
    %1420 = vmatprep.subr.bf16.mxu0 0
    %1421 = vmatpush2.bf16.msra.mxu0 0
    %1422 = vmatprep.subr.bf16.mxu0 0
    %1423 = vmatpush2.bf16.msra.mxu0 0
    %1424 = vmatprep.subr.bf16.mxu0 0
    %1425 = vmatpush2.bf16.msra.mxu0 0
    %1426 = vmatprep.mubr.bf16.mxu0 0
    %1427 = vmatmul.mubr.bf16.gmra.mxu0 %v1392
    %v1428 = vpop.f32.mrf.mxu0
    %v1429 = vadd.f32 %v1193, %v1428
    %v1430 = vpop.f32.mrf.mxu0
    %v1431 = vadd.f32 %v1197, %v1430
    %v1432 = vpop.f32.mrf.mxu0
    %v1433 = vpop.f32.mrf.mxu0
    %1434 = vdwg.mxu0
    %1435 = vmatprep.subr.bf16.mxu0 0
    %1436 = vmatpush1.bf16.msra.mxu0 0
    %1437 = vmatprep.subr.bf16.mxu0 0
    %1438 = vmatpush1.bf16.msra.mxu0 0
    %1439 = vmatprep.subr.bf16.mxu0 0
    %1440 = vmatpush1.bf16.msra.mxu0 0
    %1441 = vmatprep.subr.bf16.mxu0 0
    %1442 = vmatpush1.bf16.msra.mxu0 0
    %1443 = vmatprep.subr.bf16.mxu0 %v1353
    %1444 = vmatpush1.bf16.msra.mxu0 %v1352
    %1445 = vmatprep.subr.bf16.mxu0 %v1345
    %1446 = vmatpush1.bf16.msra.mxu0 %v1344
    %1447 = vmatprep.subr.bf16.mxu0 %v1337
    %1448 = vmatpush1.bf16.msra.mxu0 %v1336
    %1449 = vmatprep.subr.bf16.mxu0 %v1329
    %1450 = vmatpush1.bf16.msra.mxu0 %v1328
    %1451 = vmatprep.subr.bf16.mxu0 0
    %1452 = vmatpush2.bf16.msra.mxu0 0
    %1453 = vmatprep.subr.bf16.mxu0 0
    %1454 = vmatpush2.bf16.msra.mxu0 0
    %1455 = vmatprep.subr.bf16.mxu0 0
    %1456 = vmatpush2.bf16.msra.mxu0 0
    %1457 = vmatprep.subr.bf16.mxu0 0
    %1458 = vmatpush2.bf16.msra.mxu0 0
    %1459 = vmatprep.subr.bf16.mxu0 0
    %1460 = vmatpush2.bf16.msra.mxu0 0
    %1461 = vmatprep.subr.bf16.mxu0 0
    %1462 = vmatpush2.bf16.msra.mxu0 0
    %1463 = vmatprep.subr.bf16.mxu0 0
    %1464 = vmatpush2.bf16.msra.mxu0 0
    %1465 = vmatprep.subr.bf16.mxu0 0
    %1466 = vmatpush2.bf16.msra.mxu0 0
    %1467 = vmatprep.mubr.bf16.mxu0 0
    %1468 = vmatmul.mubr.bf16.gmra.mxu0 %v1392
    %v1469 = vpop.f32.mrf.mxu0
    %v1470 = vadd.f32 %v1201, %v1469
    %v1471 = vpop.f32.mrf.mxu0
    %v1472 = vadd.f32 %v1205, %v1471
    %v1473 = vpop.f32.mrf.mxu0
    %v1474 = vpop.f32.mrf.mxu0
    %1475 = vdwg.mxu0
    %1476 = vmatprep.subr.bf16.mxu0 0
    %1477 = vmatpush1.bf16.msra.mxu0 0
    %1478 = vmatprep.subr.bf16.mxu0 0
    %1479 = vmatpush1.bf16.msra.mxu0 0
    %1480 = vmatprep.subr.bf16.mxu0 0
    %1481 = vmatpush1.bf16.msra.mxu0 0
    %1482 = vmatprep.subr.bf16.mxu0 0
    %1483 = vmatpush1.bf16.msra.mxu0 0
    %1484 = vmatprep.subr.bf16.mxu0 %v1355
    %1485 = vmatpush1.bf16.msra.mxu0 %v1354
    %1486 = vmatprep.subr.bf16.mxu0 %v1347
    %1487 = vmatpush1.bf16.msra.mxu0 %v1346
    %1488 = vmatprep.subr.bf16.mxu0 %v1339
    %1489 = vmatpush1.bf16.msra.mxu0 %v1338
    %1490 = vmatprep.subr.bf16.mxu0 %v1331
    %1491 = vmatpush1.bf16.msra.mxu0 %v1330
    %1492 = vmatprep.subr.bf16.mxu0 0
    %1493 = vmatpush2.bf16.msra.mxu0 0
    %1494 = vmatprep.subr.bf16.mxu0 0
    %1495 = vmatpush2.bf16.msra.mxu0 0
    %1496 = vmatprep.subr.bf16.mxu0 0
    %1497 = vmatpush2.bf16.msra.mxu0 0
    %1498 = vmatprep.subr.bf16.mxu0 0
    %1499 = vmatpush2.bf16.msra.mxu0 0
    %1500 = vmatprep.subr.bf16.mxu0 0
    %1501 = vmatpush2.bf16.msra.mxu0 0
    %1502 = vmatprep.subr.bf16.mxu0 0
    %1503 = vmatpush2.bf16.msra.mxu0 0
    %1504 = vmatprep.subr.bf16.mxu0 0
    %1505 = vmatpush2.bf16.msra.mxu0 0
    %1506 = vmatprep.subr.bf16.mxu0 0
    %1507 = vmatpush2.bf16.msra.mxu0 0
    %1508 = vmatprep.mubr.bf16.mxu0 0
    %1509 = vmatmul.mubr.bf16.gmra.mxu0 %v1392
    %v1510 = vpop.f32.mrf.mxu0
    %v1511 = vadd.f32 %v1209, %v1510
    %v1512 = vpop.f32.mrf.mxu0
    %v1513 = vadd.f32 %v1213, %v1512
    %v1514 = vpop.f32.mrf.mxu0
    %v1515 = vpop.f32.mrf.mxu0
    %1516 = vdwg.mxu0
    %1517 = vmatprep.subr.bf16.mxu0 0
    %1518 = vmatpush1.bf16.msra.mxu0 0
    %1519 = vmatprep.subr.bf16.mxu0 0
    %1520 = vmatpush1.bf16.msra.mxu0 0
    %1521 = vmatprep.subr.bf16.mxu0 0
    %1522 = vmatpush1.bf16.msra.mxu0 0
    %1523 = vmatprep.subr.bf16.mxu0 0
    %1524 = vmatpush1.bf16.msra.mxu0 0
    %1525 = vmatprep.subr.bf16.mxu0 %v1357
    %1526 = vmatpush1.bf16.msra.mxu0 %v1356
    %1527 = vmatprep.subr.bf16.mxu0 %v1349
    %1528 = vmatpush1.bf16.msra.mxu0 %v1348
    %1529 = vmatprep.subr.bf16.mxu0 %v1341
    %1530 = vmatpush1.bf16.msra.mxu0 %v1340
    %1531 = vmatprep.subr.bf16.mxu0 %v1333
    %1532 = vmatpush1.bf16.msra.mxu0 %v1332
    %1533 = vmatprep.subr.bf16.mxu0 0
    %1534 = vmatpush2.bf16.msra.mxu0 0
    %1535 = vmatprep.subr.bf16.mxu0 0
    %1536 = vmatpush2.bf16.msra.mxu0 0
    %1537 = vmatprep.subr.bf16.mxu0 0
    %1538 = vmatpush2.bf16.msra.mxu0 0
    %1539 = vmatprep.subr.bf16.mxu0 0
    %1540 = vmatpush2.bf16.msra.mxu0 0
    %1541 = vmatprep.subr.bf16.mxu0 0
    %1542 = vmatpush2.bf16.msra.mxu0 0
    %1543 = vmatprep.subr.bf16.mxu0 0
    %1544 = vmatpush2.bf16.msra.mxu0 0
    %1545 = vmatprep.subr.bf16.mxu0 0
    %1546 = vmatpush2.bf16.msra.mxu0 0
    %1547 = vmatprep.subr.bf16.mxu0 0
    %1548 = vmatpush2.bf16.msra.mxu0 0
    %1549 = vmatprep.mubr.bf16.mxu0 0
    %1550 = vmatmul.mubr.bf16.gmra.mxu0 %v1392
    %v1551 = vpop.f32.mrf.mxu0
    %v1552 = vadd.f32 %v1217, %v1551
    %v1553 = vpop.f32.mrf.mxu0
    %v1554 = vadd.f32 %v1221, %v1553
    %v1555 = vpop.f32.mrf.mxu0
    %v1556 = vpop.f32.mrf.mxu0
    %1557 = vdwg.mxu0
    %v1558 = vmax.f32 %v1429, 0.0
    %v1559 = vmax.f32 %v1431, 0.0
    %v1560 = vmax.f32 %v1470, 0.0
    %v1561 = vmax.f32 %v1472, 0.0
    %v1562 = vmax.f32 %v1511, 0.0
    %v1563 = vmax.f32 %v1513, 0.0
    %v1564 = vmax.f32 %v1552, 0.0
    %v1565 = vmax.f32 %v1554, 0.0
    %v1566 = vpack.c.bf16 %v1558, %v1558
    %v1567 = vpack.c.bf16 %v1559, %v1559
    %v1568 = vpack.c.bf16 %v1560, %v1560
    %v1569 = vpack.c.bf16 %v1561, %v1561
    %v1570 = vpack.c.bf16 %v1562, %v1562
    %v1571 = vpack.c.bf16 %v1563, %v1563
    %v1572 = vpack.c.bf16 %v1564, %v1564
    %v1573 = vpack.c.bf16 %v1565, %v1565
    %s1574 = smul.u32 2, 128
    %s1575 = smul.u32 %s1574, 8
    %s1576 = sshll.u32 %s1575, 4
    %1577 = dma.done [#allocation3], %s1576
    %v1578 = vld [vmem:[#allocation2] sm:$0xff]
    %v1579 = vld [vmem:[#allocation2 + $0x8] sm:$0xff]
    %v1580 = vld [vmem:[#allocation2 + $0x10] sm:$0xff]
    %v1581 = vld [vmem:[#allocation2 + $0x18] sm:$0xff]
    %v1582 = vld [vmem:[#allocation2 + $0x20] sm:$0xff]
    %v1583 = vld [vmem:[#allocation2 + $0x28] sm:$0xff]
    %v1584 = vld [vmem:[#allocation2 + $0x30] sm:$0xff]
    %v1585 = vld [vmem:[#allocation2 + $0x38] sm:$0xff]
    %v1586 = vld [vmem:[#allocation2 + $0x40] sm:$0xff]
    %v1587 = vld [vmem:[#allocation2 + $0x48] sm:$0xff]
    %v1588 = vld [vmem:[#allocation2 + $0x50] sm:$0xff]
    %v1589 = vld [vmem:[#allocation2 + $0x58] sm:$0xff]
    %v1590 = vld [vmem:[#allocation2 + $0x60] sm:$0xff]
    %v1591 = vld [vmem:[#allocation2 + $0x68] sm:$0xff]
    %v1592 = vld [vmem:[#allocation2 + $0x70] sm:$0xff]
    %v1593 = vld [vmem:[#allocation2 + $0x78] sm:$0xff]
    %v1594 = vld [vmem:[#allocation2 + $0x80] sm:$0xff]
    %v1595 = vld [vmem:[#allocation2 + $0x88] sm:$0xff]
    %v1596 = vld [vmem:[#allocation2 + $0x90] sm:$0xff]
    %v1597 = vld [vmem:[#allocation2 + $0x98] sm:$0xff]
    %v1598 = vld [vmem:[#allocation2 + $0xa0] sm:$0xff]
    %v1599 = vld [vmem:[#allocation2 + $0xa8] sm:$0xff]
    %v1600 = vld [vmem:[#allocation2 + $0xb0] sm:$0xff]
    %v1601 = vld [vmem:[#allocation2 + $0xb8] sm:$0xff]
    %v1602 = vld [vmem:[#allocation2 + $0xc0] sm:$0xff]
    %v1603 = vld [vmem:[#allocation2 + $0xc8] sm:$0xff]
    %v1604 = vld [vmem:[#allocation2 + $0xd0] sm:$0xff]
    %v1605 = vld [vmem:[#allocation2 + $0xd8] sm:$0xff]
    %v1606 = vld [vmem:[#allocation2 + $0xe0] sm:$0xff]
    %v1607 = vld [vmem:[#allocation2 + $0xe8] sm:$0xff]
    %v1608 = vld [vmem:[#allocation2 + $0xf0] sm:$0xff]
    %v1609 = vld [vmem:[#allocation2 + $0xf8] sm:$0xff]
    %v1610 = vld [vmem:[#allocation2 + $0x100] sm:$0xff]
    %v1611 = vld [vmem:[#allocation2 + $0x108] sm:$0xff]
    %v1612 = vld [vmem:[#allocation2 + $0x110] sm:$0xff]
    %v1613 = vld [vmem:[#allocation2 + $0x118] sm:$0xff]
    %v1614 = vld [vmem:[#allocation2 + $0x120] sm:$0xff]
    %v1615 = vld [vmem:[#allocation2 + $0x128] sm:$0xff]
    %v1616 = vld [vmem:[#allocation2 + $0x130] sm:$0xff]
    %v1617 = vld [vmem:[#allocation2 + $0x138] sm:$0xff]
    %v1618 = vld [vmem:[#allocation2 + $0x140] sm:$0xff]
    %v1619 = vld [vmem:[#allocation2 + $0x148] sm:$0xff]
    %v1620 = vld [vmem:[#allocation2 + $0x150] sm:$0xff]
    %v1621 = vld [vmem:[#allocation2 + $0x158] sm:$0xff]
    %v1622 = vld [vmem:[#allocation2 + $0x160] sm:$0xff]
    %v1623 = vld [vmem:[#allocation2 + $0x168] sm:$0xff]
    %v1624 = vld [vmem:[#allocation2 + $0x170] sm:$0xff]
    %v1625 = vld [vmem:[#allocation2 + $0x178] sm:$0xff]
    %v1626 = vld [vmem:[#allocation2 + $0x180] sm:$0xff]
    %v1627 = vld [vmem:[#allocation2 + $0x188] sm:$0xff]
    %v1628 = vld [vmem:[#allocation2 + $0x190] sm:$0xff]
    %v1629 = vld [vmem:[#allocation2 + $0x198] sm:$0xff]
    %v1630 = vld [vmem:[#allocation2 + $0x1a0] sm:$0xff]
    %v1631 = vld [vmem:[#allocation2 + $0x1a8] sm:$0xff]
    %v1632 = vld [vmem:[#allocation2 + $0x1b0] sm:$0xff]
    %v1633 = vld [vmem:[#allocation2 + $0x1b8] sm:$0xff]
    %v1634 = vld [vmem:[#allocation2 + $0x1c0] sm:$0xff]
    %v1635 = vld [vmem:[#allocation2 + $0x1c8] sm:$0xff]
    %v1636 = vld [vmem:[#allocation2 + $0x1d0] sm:$0xff]
    %v1637 = vld [vmem:[#allocation2 + $0x1d8] sm:$0xff]
    %v1638 = vld [vmem:[#allocation2 + $0x1e0] sm:$0xff]
    %v1639 = vld [vmem:[#allocation2 + $0x1e8] sm:$0xff]
    %v1640 = vld [vmem:[#allocation2 + $0x1f0] sm:$0xff]
    %v1641 = vld [vmem:[#allocation2 + $0x1f8] sm:$0xff]
    %v1642 = vld [vmem:[#allocation2 + $0x200] sm:$0xff]
    %v1643 = vld [vmem:[#allocation2 + $0x208] sm:$0xff]
    %v1644 = vld [vmem:[#allocation2 + $0x210] sm:$0xff]
    %v1645 = vld [vmem:[#allocation2 + $0x218] sm:$0xff]
    %v1646 = vld [vmem:[#allocation2 + $0x220] sm:$0xff]
    %v1647 = vld [vmem:[#allocation2 + $0x228] sm:$0xff]
    %v1648 = vld [vmem:[#allocation2 + $0x230] sm:$0xff]
    %v1649 = vld [vmem:[#allocation2 + $0x238] sm:$0xff]
    %v1650 = vld [vmem:[#allocation2 + $0x240] sm:$0xff]
    %v1651 = vld [vmem:[#allocation2 + $0x248] sm:$0xff]
    %v1652 = vld [vmem:[#allocation2 + $0x250] sm:$0xff]
    %v1653 = vld [vmem:[#allocation2 + $0x258] sm:$0xff]
    %v1654 = vld [vmem:[#allocation2 + $0x260] sm:$0xff]
    %v1655 = vld [vmem:[#allocation2 + $0x268] sm:$0xff]
    %v1656 = vld [vmem:[#allocation2 + $0x270] sm:$0xff]
    %v1657 = vld [vmem:[#allocation2 + $0x278] sm:$0xff]
    %v1658 = vld [vmem:[#allocation2 + $0x280] sm:$0xff]
    %v1659 = vld [vmem:[#allocation2 + $0x288] sm:$0xff]
    %v1660 = vld [vmem:[#allocation2 + $0x290] sm:$0xff]
    %v1661 = vld [vmem:[#allocation2 + $0x298] sm:$0xff]
    %v1662 = vld [vmem:[#allocation2 + $0x2a0] sm:$0xff]
    %v1663 = vld [vmem:[#allocation2 + $0x2a8] sm:$0xff]
    %v1664 = vld [vmem:[#allocation2 + $0x2b0] sm:$0xff]
    %v1665 = vld [vmem:[#allocation2 + $0x2b8] sm:$0xff]
    %v1666 = vld [vmem:[#allocation2 + $0x2c0] sm:$0xff]
    %v1667 = vld [vmem:[#allocation2 + $0x2c8] sm:$0xff]
    %v1668 = vld [vmem:[#allocation2 + $0x2d0] sm:$0xff]
    %v1669 = vld [vmem:[#allocation2 + $0x2d8] sm:$0xff]
    %v1670 = vld [vmem:[#allocation2 + $0x2e0] sm:$0xff]
    %v1671 = vld [vmem:[#allocation2 + $0x2e8] sm:$0xff]
    %v1672 = vld [vmem:[#allocation2 + $0x2f0] sm:$0xff]
    %v1673 = vld [vmem:[#allocation2 + $0x2f8] sm:$0xff]
    %v1674 = vld [vmem:[#allocation2 + $0x300] sm:$0xff]
    %v1675 = vld [vmem:[#allocation2 + $0x308] sm:$0xff]
    %v1676 = vld [vmem:[#allocation2 + $0x310] sm:$0xff]
    %v1677 = vld [vmem:[#allocation2 + $0x318] sm:$0xff]
    %v1678 = vld [vmem:[#allocation2 + $0x320] sm:$0xff]
    %v1679 = vld [vmem:[#allocation2 + $0x328] sm:$0xff]
    %v1680 = vld [vmem:[#allocation2 + $0x330] sm:$0xff]
    %v1681 = vld [vmem:[#allocation2 + $0x338] sm:$0xff]
    %v1682 = vld [vmem:[#allocation2 + $0x340] sm:$0xff]
    %v1683 = vld [vmem:[#allocation2 + $0x348] sm:$0xff]
    %v1684 = vld [vmem:[#allocation2 + $0x350] sm:$0xff]
    %v1685 = vld [vmem:[#allocation2 + $0x358] sm:$0xff]
    %v1686 = vld [vmem:[#allocation2 + $0x360] sm:$0xff]
    %v1687 = vld [vmem:[#allocation2 + $0x368] sm:$0xff]
    %v1688 = vld [vmem:[#allocation2 + $0x370] sm:$0xff]
    %v1689 = vld [vmem:[#allocation2 + $0x378] sm:$0xff]
    %v1690 = vld [vmem:[#allocation2 + $0x380] sm:$0xff]
    %v1691 = vld [vmem:[#allocation2 + $0x388] sm:$0xff]
    %v1692 = vld [vmem:[#allocation2 + $0x390] sm:$0xff]
    %v1693 = vld [vmem:[#allocation2 + $0x398] sm:$0xff]
    %v1694 = vld [vmem:[#allocation2 + $0x3a0] sm:$0xff]
    %v1695 = vld [vmem:[#allocation2 + $0x3a8] sm:$0xff]
    %v1696 = vld [vmem:[#allocation2 + $0x3b0] sm:$0xff]
    %v1697 = vld [vmem:[#allocation2 + $0x3b8] sm:$0xff]
    %v1698 = vld [vmem:[#allocation2 + $0x3c0] sm:$0xff]
    %v1699 = vld [vmem:[#allocation2 + $0x3c8] sm:$0xff]
    %v1700 = vld [vmem:[#allocation2 + $0x3d0] sm:$0xff]
    %v1701 = vld [vmem:[#allocation2 + $0x3d8] sm:$0xff]
    %v1702 = vld [vmem:[#allocation2 + $0x3e0] sm:$0xff]
    %v1703 = vld [vmem:[#allocation2 + $0x3e8] sm:$0xff]
    %v1704 = vld [vmem:[#allocation2 + $0x3f0] sm:$0xff]
    %v1705 = vld [vmem:[#allocation2 + $0x3f8] sm:$0xff]
    %v1706 = vld [vmem:[#allocation2 + $0x400] sm:$0xff]
    %v1707 = vld [vmem:[#allocation2 + $0x408] sm:$0xff]
    %v1708 = vld [vmem:[#allocation2 + $0x410] sm:$0xff]
    %v1709 = vld [vmem:[#allocation2 + $0x418] sm:$0xff]
    %v1710 = vld [vmem:[#allocation2 + $0x420] sm:$0xff]
    %v1711 = vld [vmem:[#allocation2 + $0x428] sm:$0xff]
    %v1712 = vld [vmem:[#allocation2 + $0x430] sm:$0xff]
    %v1713 = vld [vmem:[#allocation2 + $0x438] sm:$0xff]
    %v1714 = vld [vmem:[#allocation2 + $0x440] sm:$0xff]
    %v1715 = vld [vmem:[#allocation2 + $0x448] sm:$0xff]
    %v1716 = vld [vmem:[#allocation2 + $0x450] sm:$0xff]
    %v1717 = vld [vmem:[#allocation2 + $0x458] sm:$0xff]
    %v1718 = vld [vmem:[#allocation2 + $0x460] sm:$0xff]
    %v1719 = vld [vmem:[#allocation2 + $0x468] sm:$0xff]
    %v1720 = vld [vmem:[#allocation2 + $0x470] sm:$0xff]
    %v1721 = vld [vmem:[#allocation2 + $0x478] sm:$0xff]
    %v1722 = vld [vmem:[#allocation2 + $0x480] sm:$0xff]
    %v1723 = vld [vmem:[#allocation2 + $0x488] sm:$0xff]
    %v1724 = vld [vmem:[#allocation2 + $0x490] sm:$0xff]
    %v1725 = vld [vmem:[#allocation2 + $0x498] sm:$0xff]
    %v1726 = vld [vmem:[#allocation2 + $0x4a0] sm:$0xff]
    %v1727 = vld [vmem:[#allocation2 + $0x4a8] sm:$0xff]
    %v1728 = vld [vmem:[#allocation2 + $0x4b0] sm:$0xff]
    %v1729 = vld [vmem:[#allocation2 + $0x4b8] sm:$0xff]
    %v1730 = vld [vmem:[#allocation2 + $0x4c0] sm:$0xff]
    %v1731 = vld [vmem:[#allocation2 + $0x4c8] sm:$0xff]
    %v1732 = vld [vmem:[#allocation2 + $0x4d0] sm:$0xff]
    %v1733 = vld [vmem:[#allocation2 + $0x4d8] sm:$0xff]
    %v1734 = vld [vmem:[#allocation2 + $0x4e0] sm:$0xff]
    %v1735 = vld [vmem:[#allocation2 + $0x4e8] sm:$0xff]
    %v1736 = vld [vmem:[#allocation2 + $0x4f0] sm:$0xff]
    %v1737 = vld [vmem:[#allocation2 + $0x4f8] sm:$0xff]
    %v1738 = vld [vmem:[#allocation2 + $0x500] sm:$0xff]
    %v1739 = vld [vmem:[#allocation2 + $0x508] sm:$0xff]
    %v1740 = vld [vmem:[#allocation2 + $0x510] sm:$0xff]
    %v1741 = vld [vmem:[#allocation2 + $0x518] sm:$0xff]
    %v1742 = vld [vmem:[#allocation2 + $0x520] sm:$0xff]
    %v1743 = vld [vmem:[#allocation2 + $0x528] sm:$0xff]
    %v1744 = vld [vmem:[#allocation2 + $0x530] sm:$0xff]
    %v1745 = vld [vmem:[#allocation2 + $0x538] sm:$0xff]
    %v1746 = vld [vmem:[#allocation2 + $0x540] sm:$0xff]
    %v1747 = vld [vmem:[#allocation2 + $0x548] sm:$0xff]
    %v1748 = vld [vmem:[#allocation2 + $0x550] sm:$0xff]
    %v1749 = vld [vmem:[#allocation2 + $0x558] sm:$0xff]
    %v1750 = vld [vmem:[#allocation2 + $0x560] sm:$0xff]
    %v1751 = vld [vmem:[#allocation2 + $0x568] sm:$0xff]
    %v1752 = vld [vmem:[#allocation2 + $0x570] sm:$0xff]
    %v1753 = vld [vmem:[#allocation2 + $0x578] sm:$0xff]
    %v1754 = vld [vmem:[#allocation2 + $0x580] sm:$0xff]
    %v1755 = vld [vmem:[#allocation2 + $0x588] sm:$0xff]
    %v1756 = vld [vmem:[#allocation2 + $0x590] sm:$0xff]
    %v1757 = vld [vmem:[#allocation2 + $0x598] sm:$0xff]
    %v1758 = vld [vmem:[#allocation2 + $0x5a0] sm:$0xff]
    %v1759 = vld [vmem:[#allocation2 + $0x5a8] sm:$0xff]
    %v1760 = vld [vmem:[#allocation2 + $0x5b0] sm:$0xff]
    %v1761 = vld [vmem:[#allocation2 + $0x5b8] sm:$0xff]
    %v1762 = vld [vmem:[#allocation2 + $0x5c0] sm:$0xff]
    %v1763 = vld [vmem:[#allocation2 + $0x5c8] sm:$0xff]
    %v1764 = vld [vmem:[#allocation2 + $0x5d0] sm:$0xff]
    %v1765 = vld [vmem:[#allocation2 + $0x5d8] sm:$0xff]
    %v1766 = vld [vmem:[#allocation2 + $0x5e0] sm:$0xff]
    %v1767 = vld [vmem:[#allocation2 + $0x5e8] sm:$0xff]
    %v1768 = vld [vmem:[#allocation2 + $0x5f0] sm:$0xff]
    %v1769 = vld [vmem:[#allocation2 + $0x5f8] sm:$0xff]
    %v1770 = vld [vmem:[#allocation2 + $0x600] sm:$0xff]
    %v1771 = vld [vmem:[#allocation2 + $0x608] sm:$0xff]
    %v1772 = vld [vmem:[#allocation2 + $0x610] sm:$0xff]
    %v1773 = vld [vmem:[#allocation2 + $0x618] sm:$0xff]
    %v1774 = vld [vmem:[#allocation2 + $0x620] sm:$0xff]
    %v1775 = vld [vmem:[#allocation2 + $0x628] sm:$0xff]
    %v1776 = vld [vmem:[#allocation2 + $0x630] sm:$0xff]
    %v1777 = vld [vmem:[#allocation2 + $0x638] sm:$0xff]
    %v1778 = vld [vmem:[#allocation2 + $0x640] sm:$0xff]
    %v1779 = vld [vmem:[#allocation2 + $0x648] sm:$0xff]
    %v1780 = vld [vmem:[#allocation2 + $0x650] sm:$0xff]
    %v1781 = vld [vmem:[#allocation2 + $0x658] sm:$0xff]
    %v1782 = vld [vmem:[#allocation2 + $0x660] sm:$0xff]
    %v1783 = vld [vmem:[#allocation2 + $0x668] sm:$0xff]
    %v1784 = vld [vmem:[#allocation2 + $0x670] sm:$0xff]
    %v1785 = vld [vmem:[#allocation2 + $0x678] sm:$0xff]
    %v1786 = vld [vmem:[#allocation2 + $0x680] sm:$0xff]
    %v1787 = vld [vmem:[#allocation2 + $0x688] sm:$0xff]
    %v1788 = vld [vmem:[#allocation2 + $0x690] sm:$0xff]
    %v1789 = vld [vmem:[#allocation2 + $0x698] sm:$0xff]
    %v1790 = vld [vmem:[#allocation2 + $0x6a0] sm:$0xff]
    %v1791 = vld [vmem:[#allocation2 + $0x6a8] sm:$0xff]
    %v1792 = vld [vmem:[#allocation2 + $0x6b0] sm:$0xff]
    %v1793 = vld [vmem:[#allocation2 + $0x6b8] sm:$0xff]
    %v1794 = vld [vmem:[#allocation2 + $0x6c0] sm:$0xff]
    %v1795 = vld [vmem:[#allocation2 + $0x6c8] sm:$0xff]
    %v1796 = vld [vmem:[#allocation2 + $0x6d0] sm:$0xff]
    %v1797 = vld [vmem:[#allocation2 + $0x6d8] sm:$0xff]
    %v1798 = vld [vmem:[#allocation2 + $0x6e0] sm:$0xff]
    %v1799 = vld [vmem:[#allocation2 + $0x6e8] sm:$0xff]
    %v1800 = vld [vmem:[#allocation2 + $0x6f0] sm:$0xff]
    %v1801 = vld [vmem:[#allocation2 + $0x6f8] sm:$0xff]
    %v1802 = vld [vmem:[#allocation2 + $0x700] sm:$0xff]
    %v1803 = vld [vmem:[#allocation2 + $0x708] sm:$0xff]
    %v1804 = vld [vmem:[#allocation2 + $0x710] sm:$0xff]
    %v1805 = vld [vmem:[#allocation2 + $0x718] sm:$0xff]
    %v1806 = vld [vmem:[#allocation2 + $0x720] sm:$0xff]
    %v1807 = vld [vmem:[#allocation2 + $0x728] sm:$0xff]
    %v1808 = vld [vmem:[#allocation2 + $0x730] sm:$0xff]
    %v1809 = vld [vmem:[#allocation2 + $0x738] sm:$0xff]
    %v1810 = vld [vmem:[#allocation2 + $0x740] sm:$0xff]
    %v1811 = vld [vmem:[#allocation2 + $0x748] sm:$0xff]
    %v1812 = vld [vmem:[#allocation2 + $0x750] sm:$0xff]
    %v1813 = vld [vmem:[#allocation2 + $0x758] sm:$0xff]
    %v1814 = vld [vmem:[#allocation2 + $0x760] sm:$0xff]
    %v1815 = vld [vmem:[#allocation2 + $0x768] sm:$0xff]
    %v1816 = vld [vmem:[#allocation2 + $0x770] sm:$0xff]
    %v1817 = vld [vmem:[#allocation2 + $0x778] sm:$0xff]
    %v1818 = vld [vmem:[#allocation2 + $0x780] sm:$0xff]
    %v1819 = vld [vmem:[#allocation2 + $0x788] sm:$0xff]
    %v1820 = vld [vmem:[#allocation2 + $0x790] sm:$0xff]
    %v1821 = vld [vmem:[#allocation2 + $0x798] sm:$0xff]
    %v1822 = vld [vmem:[#allocation2 + $0x7a0] sm:$0xff]
    %v1823 = vld [vmem:[#allocation2 + $0x7a8] sm:$0xff]
    %v1824 = vld [vmem:[#allocation2 + $0x7b0] sm:$0xff]
    %v1825 = vld [vmem:[#allocation2 + $0x7b8] sm:$0xff]
    %v1826 = vld [vmem:[#allocation2 + $0x7c0] sm:$0xff]
    %v1827 = vld [vmem:[#allocation2 + $0x7c8] sm:$0xff]
    %v1828 = vld [vmem:[#allocation2 + $0x7d0] sm:$0xff]
    %v1829 = vld [vmem:[#allocation2 + $0x7d8] sm:$0xff]
    %v1830 = vld [vmem:[#allocation2 + $0x7e0] sm:$0xff]
    %v1831 = vld [vmem:[#allocation2 + $0x7e8] sm:$0xff]
    %v1832 = vld [vmem:[#allocation2 + $0x7f0] sm:$0xff]
    %v1833 = vld [vmem:[#allocation2 + $0x7f8] sm:$0xff]
    %v1834 = vunpack.c.l.s8.bf16 %v1578
    %v1835 = vunpack.c.l.s8.bf16 %v1579
    %v1836 = vunpack.c.l.s8.bf16 %v1580
    %v1837 = vunpack.c.l.s8.bf16 %v1581
    %v1838 = vunpack.c.l.s8.bf16 %v1582
    %v1839 = vunpack.c.l.s8.bf16 %v1583
    %v1840 = vunpack.c.l.s8.bf16 %v1584
    %v1841 = vunpack.c.l.s8.bf16 %v1585
    %v1842 = vunpack.c.h.s8.bf16 %v1578
    %v1843 = vunpack.c.h.s8.bf16 %v1579
    %v1844 = vunpack.c.h.s8.bf16 %v1580
    %v1845 = vunpack.c.h.s8.bf16 %v1581
    %v1846 = vunpack.c.h.s8.bf16 %v1582
    %v1847 = vunpack.c.h.s8.bf16 %v1583
    %v1848 = vunpack.c.h.s8.bf16 %v1584
    %v1849 = vunpack.c.h.s8.bf16 %v1585
    %v1850 = vunpack.c.l.s8.bf16 %v1586
    %v1851 = vunpack.c.l.s8.bf16 %v1587
    %v1852 = vunpack.c.l.s8.bf16 %v1588
    %v1853 = vunpack.c.l.s8.bf16 %v1589
    %v1854 = vunpack.c.l.s8.bf16 %v1590
    %v1855 = vunpack.c.l.s8.bf16 %v1591
    %v1856 = vunpack.c.l.s8.bf16 %v1592
    %v1857 = vunpack.c.l.s8.bf16 %v1593
    %v1858 = vunpack.c.h.s8.bf16 %v1586
    %v1859 = vunpack.c.h.s8.bf16 %v1587
    %v1860 = vunpack.c.h.s8.bf16 %v1588
    %v1861 = vunpack.c.h.s8.bf16 %v1589
    %v1862 = vunpack.c.h.s8.bf16 %v1590
    %v1863 = vunpack.c.h.s8.bf16 %v1591
    %v1864 = vunpack.c.h.s8.bf16 %v1592
    %v1865 = vunpack.c.h.s8.bf16 %v1593
    %v1866 = vunpack.c.l.s8.bf16 %v1594
    %v1867 = vunpack.c.l.s8.bf16 %v1595
    %v1868 = vunpack.c.l.s8.bf16 %v1596
    %v1869 = vunpack.c.l.s8.bf16 %v1597
    %v1870 = vunpack.c.l.s8.bf16 %v1598
    %v1871 = vunpack.c.l.s8.bf16 %v1599
    %v1872 = vunpack.c.l.s8.bf16 %v1600
    %v1873 = vunpack.c.l.s8.bf16 %v1601
    %v1874 = vunpack.c.h.s8.bf16 %v1594
    %v1875 = vunpack.c.h.s8.bf16 %v1595
    %v1876 = vunpack.c.h.s8.bf16 %v1596
    %v1877 = vunpack.c.h.s8.bf16 %v1597
    %v1878 = vunpack.c.h.s8.bf16 %v1598
    %v1879 = vunpack.c.h.s8.bf16 %v1599
    %v1880 = vunpack.c.h.s8.bf16 %v1600
    %v1881 = vunpack.c.h.s8.bf16 %v1601
    %v1882 = vunpack.c.l.s8.bf16 %v1602
    %v1883 = vunpack.c.l.s8.bf16 %v1603
    %v1884 = vunpack.c.l.s8.bf16 %v1604
    %v1885 = vunpack.c.l.s8.bf16 %v1605
    %v1886 = vunpack.c.l.s8.bf16 %v1606
    %v1887 = vunpack.c.l.s8.bf16 %v1607
    %v1888 = vunpack.c.l.s8.bf16 %v1608
    %v1889 = vunpack.c.l.s8.bf16 %v1609
    %v1890 = vunpack.c.h.s8.bf16 %v1602
    %v1891 = vunpack.c.h.s8.bf16 %v1603
    %v1892 = vunpack.c.h.s8.bf16 %v1604
    %v1893 = vunpack.c.h.s8.bf16 %v1605
    %v1894 = vunpack.c.h.s8.bf16 %v1606
    %v1895 = vunpack.c.h.s8.bf16 %v1607
    %v1896 = vunpack.c.h.s8.bf16 %v1608
    %v1897 = vunpack.c.h.s8.bf16 %v1609
    %v1898 = vunpack.c.l.s8.bf16 %v1610
    %v1899 = vunpack.c.l.s8.bf16 %v1611
    %v1900 = vunpack.c.l.s8.bf16 %v1612
    %v1901 = vunpack.c.l.s8.bf16 %v1613
    %v1902 = vunpack.c.l.s8.bf16 %v1614
    %v1903 = vunpack.c.l.s8.bf16 %v1615
    %v1904 = vunpack.c.l.s8.bf16 %v1616
    %v1905 = vunpack.c.l.s8.bf16 %v1617
    %v1906 = vunpack.c.h.s8.bf16 %v1610
    %v1907 = vunpack.c.h.s8.bf16 %v1611
    %v1908 = vunpack.c.h.s8.bf16 %v1612
    %v1909 = vunpack.c.h.s8.bf16 %v1613
    %v1910 = vunpack.c.h.s8.bf16 %v1614
    %v1911 = vunpack.c.h.s8.bf16 %v1615
    %v1912 = vunpack.c.h.s8.bf16 %v1616
    %v1913 = vunpack.c.h.s8.bf16 %v1617
    %v1914 = vunpack.c.l.s8.bf16 %v1618
    %v1915 = vunpack.c.l.s8.bf16 %v1619
    %v1916 = vunpack.c.l.s8.bf16 %v1620
    %v1917 = vunpack.c.l.s8.bf16 %v1621
    %v1918 = vunpack.c.l.s8.bf16 %v1622
    %v1919 = vunpack.c.l.s8.bf16 %v1623
    %v1920 = vunpack.c.l.s8.bf16 %v1624
    %v1921 = vunpack.c.l.s8.bf16 %v1625
    %v1922 = vunpack.c.h.s8.bf16 %v1618
    %v1923 = vunpack.c.h.s8.bf16 %v1619
    %v1924 = vunpack.c.h.s8.bf16 %v1620
    %v1925 = vunpack.c.h.s8.bf16 %v1621
    %v1926 = vunpack.c.h.s8.bf16 %v1622
    %v1927 = vunpack.c.h.s8.bf16 %v1623
    %v1928 = vunpack.c.h.s8.bf16 %v1624
    %v1929 = vunpack.c.h.s8.bf16 %v1625
    %v1930 = vunpack.c.l.s8.bf16 %v1626
    %v1931 = vunpack.c.l.s8.bf16 %v1627
    %v1932 = vunpack.c.l.s8.bf16 %v1628
    %v1933 = vunpack.c.l.s8.bf16 %v1629
    %v1934 = vunpack.c.l.s8.bf16 %v1630
    %v1935 = vunpack.c.l.s8.bf16 %v1631
    %v1936 = vunpack.c.l.s8.bf16 %v1632
    %v1937 = vunpack.c.l.s8.bf16 %v1633
    %v1938 = vunpack.c.h.s8.bf16 %v1626
    %v1939 = vunpack.c.h.s8.bf16 %v1627
    %v1940 = vunpack.c.h.s8.bf16 %v1628
    %v1941 = vunpack.c.h.s8.bf16 %v1629
    %v1942 = vunpack.c.h.s8.bf16 %v1630
    %v1943 = vunpack.c.h.s8.bf16 %v1631
    %v1944 = vunpack.c.h.s8.bf16 %v1632
    %v1945 = vunpack.c.h.s8.bf16 %v1633
    %v1946 = vunpack.c.l.s8.bf16 %v1634
    %v1947 = vunpack.c.l.s8.bf16 %v1635
    %v1948 = vunpack.c.l.s8.bf16 %v1636
    %v1949 = vunpack.c.l.s8.bf16 %v1637
    %v1950 = vunpack.c.l.s8.bf16 %v1638
    %v1951 = vunpack.c.l.s8.bf16 %v1639
    %v1952 = vunpack.c.l.s8.bf16 %v1640
    %v1953 = vunpack.c.l.s8.bf16 %v1641
    %v1954 = vunpack.c.h.s8.bf16 %v1634
    %v1955 = vunpack.c.h.s8.bf16 %v1635
    %v1956 = vunpack.c.h.s8.bf16 %v1636
    %v1957 = vunpack.c.h.s8.bf16 %v1637
    %v1958 = vunpack.c.h.s8.bf16 %v1638
    %v1959 = vunpack.c.h.s8.bf16 %v1639
    %v1960 = vunpack.c.h.s8.bf16 %v1640
    %v1961 = vunpack.c.h.s8.bf16 %v1641
    %v1962 = vunpack.c.l.s8.bf16 %v1642
    %v1963 = vunpack.c.l.s8.bf16 %v1643
    %v1964 = vunpack.c.l.s8.bf16 %v1644
    %v1965 = vunpack.c.l.s8.bf16 %v1645
    %v1966 = vunpack.c.l.s8.bf16 %v1646
    %v1967 = vunpack.c.l.s8.bf16 %v1647
    %v1968 = vunpack.c.l.s8.bf16 %v1648
    %v1969 = vunpack.c.l.s8.bf16 %v1649
    %v1970 = vunpack.c.h.s8.bf16 %v1642
    %v1971 = vunpack.c.h.s8.bf16 %v1643
    %v1972 = vunpack.c.h.s8.bf16 %v1644
    %v1973 = vunpack.c.h.s8.bf16 %v1645
    %v1974 = vunpack.c.h.s8.bf16 %v1646
    %v1975 = vunpack.c.h.s8.bf16 %v1647
    %v1976 = vunpack.c.h.s8.bf16 %v1648
    %v1977 = vunpack.c.h.s8.bf16 %v1649
    %v1978 = vunpack.c.l.s8.bf16 %v1650
    %v1979 = vunpack.c.l.s8.bf16 %v1651
    %v1980 = vunpack.c.l.s8.bf16 %v1652
    %v1981 = vunpack.c.l.s8.bf16 %v1653
    %v1982 = vunpack.c.l.s8.bf16 %v1654
    %v1983 = vunpack.c.l.s8.bf16 %v1655
    %v1984 = vunpack.c.l.s8.bf16 %v1656
    %v1985 = vunpack.c.l.s8.bf16 %v1657
    %v1986 = vunpack.c.h.s8.bf16 %v1650
    %v1987 = vunpack.c.h.s8.bf16 %v1651
    %v1988 = vunpack.c.h.s8.bf16 %v1652
    %v1989 = vunpack.c.h.s8.bf16 %v1653
    %v1990 = vunpack.c.h.s8.bf16 %v1654
    %v1991 = vunpack.c.h.s8.bf16 %v1655
    %v1992 = vunpack.c.h.s8.bf16 %v1656
    %v1993 = vunpack.c.h.s8.bf16 %v1657
    %v1994 = vunpack.c.l.s8.bf16 %v1658
    %v1995 = vunpack.c.l.s8.bf16 %v1659
    %v1996 = vunpack.c.l.s8.bf16 %v1660
    %v1997 = vunpack.c.l.s8.bf16 %v1661
    %v1998 = vunpack.c.l.s8.bf16 %v1662
    %v1999 = vunpack.c.l.s8.bf16 %v1663
    %v2000 = vunpack.c.l.s8.bf16 %v1664
    %v2001 = vunpack.c.l.s8.bf16 %v1665
    %v2002 = vunpack.c.h.s8.bf16 %v1658
    %v2003 = vunpack.c.h.s8.bf16 %v1659
    %v2004 = vunpack.c.h.s8.bf16 %v1660
    %v2005 = vunpack.c.h.s8.bf16 %v1661
    %v2006 = vunpack.c.h.s8.bf16 %v1662
    %v2007 = vunpack.c.h.s8.bf16 %v1663
    %v2008 = vunpack.c.h.s8.bf16 %v1664
    %v2009 = vunpack.c.h.s8.bf16 %v1665
    %v2010 = vunpack.c.l.s8.bf16 %v1666
    %v2011 = vunpack.c.l.s8.bf16 %v1667
    %v2012 = vunpack.c.l.s8.bf16 %v1668
    %v2013 = vunpack.c.l.s8.bf16 %v1669
    %v2014 = vunpack.c.l.s8.bf16 %v1670
    %v2015 = vunpack.c.l.s8.bf16 %v1671
    %v2016 = vunpack.c.l.s8.bf16 %v1672
    %v2017 = vunpack.c.l.s8.bf16 %v1673
    %v2018 = vunpack.c.h.s8.bf16 %v1666
    %v2019 = vunpack.c.h.s8.bf16 %v1667
    %v2020 = vunpack.c.h.s8.bf16 %v1668
    %v2021 = vunpack.c.h.s8.bf16 %v1669
    %v2022 = vunpack.c.h.s8.bf16 %v1670
    %v2023 = vunpack.c.h.s8.bf16 %v1671
    %v2024 = vunpack.c.h.s8.bf16 %v1672
    %v2025 = vunpack.c.h.s8.bf16 %v1673
    %v2026 = vunpack.c.l.s8.bf16 %v1674
    %v2027 = vunpack.c.l.s8.bf16 %v1675
    %v2028 = vunpack.c.l.s8.bf16 %v1676
    %v2029 = vunpack.c.l.s8.bf16 %v1677
    %v2030 = vunpack.c.l.s8.bf16 %v1678
    %v2031 = vunpack.c.l.s8.bf16 %v1679
    %v2032 = vunpack.c.l.s8.bf16 %v1680
    %v2033 = vunpack.c.l.s8.bf16 %v1681
    %v2034 = vunpack.c.h.s8.bf16 %v1674
    %v2035 = vunpack.c.h.s8.bf16 %v1675
    %v2036 = vunpack.c.h.s8.bf16 %v1676
    %v2037 = vunpack.c.h.s8.bf16 %v1677
    %v2038 = vunpack.c.h.s8.bf16 %v1678
    %v2039 = vunpack.c.h.s8.bf16 %v1679
    %v2040 = vunpack.c.h.s8.bf16 %v1680
    %v2041 = vunpack.c.h.s8.bf16 %v1681
    %v2042 = vunpack.c.l.s8.bf16 %v1682
    %v2043 = vunpack.c.l.s8.bf16 %v1683
    %v2044 = vunpack.c.l.s8.bf16 %v1684
    %v2045 = vunpack.c.l.s8.bf16 %v1685
    %v2046 = vunpack.c.l.s8.bf16 %v1686
    %v2047 = vunpack.c.l.s8.bf16 %v1687
    %v2048 = vunpack.c.l.s8.bf16 %v1688
    %v2049 = vunpack.c.l.s8.bf16 %v1689
    %v2050 = vunpack.c.h.s8.bf16 %v1682
    %v2051 = vunpack.c.h.s8.bf16 %v1683
    %v2052 = vunpack.c.h.s8.bf16 %v1684
    %v2053 = vunpack.c.h.s8.bf16 %v1685
    %v2054 = vunpack.c.h.s8.bf16 %v1686
    %v2055 = vunpack.c.h.s8.bf16 %v1687
    %v2056 = vunpack.c.h.s8.bf16 %v1688
    %v2057 = vunpack.c.h.s8.bf16 %v1689
    %v2058 = vunpack.c.l.s8.bf16 %v1690
    %v2059 = vunpack.c.l.s8.bf16 %v1691
    %v2060 = vunpack.c.l.s8.bf16 %v1692
    %v2061 = vunpack.c.l.s8.bf16 %v1693
    %v2062 = vunpack.c.l.s8.bf16 %v1694
    %v2063 = vunpack.c.l.s8.bf16 %v1695
    %v2064 = vunpack.c.l.s8.bf16 %v1696
    %v2065 = vunpack.c.l.s8.bf16 %v1697
    %v2066 = vunpack.c.h.s8.bf16 %v1690
    %v2067 = vunpack.c.h.s8.bf16 %v1691
    %v2068 = vunpack.c.h.s8.bf16 %v1692
    %v2069 = vunpack.c.h.s8.bf16 %v1693
    %v2070 = vunpack.c.h.s8.bf16 %v1694
    %v2071 = vunpack.c.h.s8.bf16 %v1695
    %v2072 = vunpack.c.h.s8.bf16 %v1696
    %v2073 = vunpack.c.h.s8.bf16 %v1697
    %v2074 = vunpack.c.l.s8.bf16 %v1698
    %v2075 = vunpack.c.l.s8.bf16 %v1699
    %v2076 = vunpack.c.l.s8.bf16 %v1700
    %v2077 = vunpack.c.l.s8.bf16 %v1701
    %v2078 = vunpack.c.l.s8.bf16 %v1702
    %v2079 = vunpack.c.l.s8.bf16 %v1703
    %v2080 = vunpack.c.l.s8.bf16 %v1704
    %v2081 = vunpack.c.l.s8.bf16 %v1705
    %v2082 = vunpack.c.h.s8.bf16 %v1698
    %v2083 = vunpack.c.h.s8.bf16 %v1699
    %v2084 = vunpack.c.h.s8.bf16 %v1700
    %v2085 = vunpack.c.h.s8.bf16 %v1701
    %v2086 = vunpack.c.h.s8.bf16 %v1702
    %v2087 = vunpack.c.h.s8.bf16 %v1703
    %v2088 = vunpack.c.h.s8.bf16 %v1704
    %v2089 = vunpack.c.h.s8.bf16 %v1705
    %v2090 = vunpack.c.l.s8.bf16 %v1706
    %v2091 = vunpack.c.l.s8.bf16 %v1707
    %v2092 = vunpack.c.l.s8.bf16 %v1708
    %v2093 = vunpack.c.l.s8.bf16 %v1709
    %v2094 = vunpack.c.l.s8.bf16 %v1710
    %v2095 = vunpack.c.l.s8.bf16 %v1711
    %v2096 = vunpack.c.l.s8.bf16 %v1712
    %v2097 = vunpack.c.l.s8.bf16 %v1713
    %v2098 = vunpack.c.h.s8.bf16 %v1706
    %v2099 = vunpack.c.h.s8.bf16 %v1707
    %v2100 = vunpack.c.h.s8.bf16 %v1708
    %v2101 = vunpack.c.h.s8.bf16 %v1709
    %v2102 = vunpack.c.h.s8.bf16 %v1710
    %v2103 = vunpack.c.h.s8.bf16 %v1711
    %v2104 = vunpack.c.h.s8.bf16 %v1712
    %v2105 = vunpack.c.h.s8.bf16 %v1713
    %v2106 = vunpack.c.l.s8.bf16 %v1714
    %v2107 = vunpack.c.l.s8.bf16 %v1715
    %v2108 = vunpack.c.l.s8.bf16 %v1716
    %v2109 = vunpack.c.l.s8.bf16 %v1717
    %v2110 = vunpack.c.l.s8.bf16 %v1718
    %v2111 = vunpack.c.l.s8.bf16 %v1719
    %v2112 = vunpack.c.l.s8.bf16 %v1720
    %v2113 = vunpack.c.l.s8.bf16 %v1721
    %v2114 = vunpack.c.h.s8.bf16 %v1714
    %v2115 = vunpack.c.h.s8.bf16 %v1715
    %v2116 = vunpack.c.h.s8.bf16 %v1716
    %v2117 = vunpack.c.h.s8.bf16 %v1717
    %v2118 = vunpack.c.h.s8.bf16 %v1718
    %v2119 = vunpack.c.h.s8.bf16 %v1719
    %v2120 = vunpack.c.h.s8.bf16 %v1720
    %v2121 = vunpack.c.h.s8.bf16 %v1721
    %v2122 = vunpack.c.l.s8.bf16 %v1722
    %v2123 = vunpack.c.l.s8.bf16 %v1723
    %v2124 = vunpack.c.l.s8.bf16 %v1724
    %v2125 = vunpack.c.l.s8.bf16 %v1725
    %v2126 = vunpack.c.l.s8.bf16 %v1726
    %v2127 = vunpack.c.l.s8.bf16 %v1727
    %v2128 = vunpack.c.l.s8.bf16 %v1728
    %v2129 = vunpack.c.l.s8.bf16 %v1729
    %v2130 = vunpack.c.h.s8.bf16 %v1722
    %v2131 = vunpack.c.h.s8.bf16 %v1723
    %v2132 = vunpack.c.h.s8.bf16 %v1724
    %v2133 = vunpack.c.h.s8.bf16 %v1725
    %v2134 = vunpack.c.h.s8.bf16 %v1726
    %v2135 = vunpack.c.h.s8.bf16 %v1727
    %v2136 = vunpack.c.h.s8.bf16 %v1728
    %v2137 = vunpack.c.h.s8.bf16 %v1729
    %v2138 = vunpack.c.l.s8.bf16 %v1730
    %v2139 = vunpack.c.l.s8.bf16 %v1731
    %v2140 = vunpack.c.l.s8.bf16 %v1732
    %v2141 = vunpack.c.l.s8.bf16 %v1733
    %v2142 = vunpack.c.l.s8.bf16 %v1734
    %v2143 = vunpack.c.l.s8.bf16 %v1735
    %v2144 = vunpack.c.l.s8.bf16 %v1736
    %v2145 = vunpack.c.l.s8.bf16 %v1737
    %v2146 = vunpack.c.h.s8.bf16 %v1730
    %v2147 = vunpack.c.h.s8.bf16 %v1731
    %v2148 = vunpack.c.h.s8.bf16 %v1732
    %v2149 = vunpack.c.h.s8.bf16 %v1733
    %v2150 = vunpack.c.h.s8.bf16 %v1734
    %v2151 = vunpack.c.h.s8.bf16 %v1735
    %v2152 = vunpack.c.h.s8.bf16 %v1736
    %v2153 = vunpack.c.h.s8.bf16 %v1737
    %v2154 = vunpack.c.l.s8.bf16 %v1738
    %v2155 = vunpack.c.l.s8.bf16 %v1739
    %v2156 = vunpack.c.l.s8.bf16 %v1740
    %v2157 = vunpack.c.l.s8.bf16 %v1741
    %v2158 = vunpack.c.l.s8.bf16 %v1742
    %v2159 = vunpack.c.l.s8.bf16 %v1743
    %v2160 = vunpack.c.l.s8.bf16 %v1744
    %v2161 = vunpack.c.l.s8.bf16 %v1745
    %v2162 = vunpack.c.h.s8.bf16 %v1738
    %v2163 = vunpack.c.h.s8.bf16 %v1739
    %v2164 = vunpack.c.h.s8.bf16 %v1740
    %v2165 = vunpack.c.h.s8.bf16 %v1741
    %v2166 = vunpack.c.h.s8.bf16 %v1742
    %v2167 = vunpack.c.h.s8.bf16 %v1743
    %v2168 = vunpack.c.h.s8.bf16 %v1744
    %v2169 = vunpack.c.h.s8.bf16 %v1745
    %v2170 = vunpack.c.l.s8.bf16 %v1746
    %v2171 = vunpack.c.l.s8.bf16 %v1747
    %v2172 = vunpack.c.l.s8.bf16 %v1748
    %v2173 = vunpack.c.l.s8.bf16 %v1749
    %v2174 = vunpack.c.l.s8.bf16 %v1750
    %v2175 = vunpack.c.l.s8.bf16 %v1751
    %v2176 = vunpack.c.l.s8.bf16 %v1752
    %v2177 = vunpack.c.l.s8.bf16 %v1753
    %v2178 = vunpack.c.h.s8.bf16 %v1746
    %v2179 = vunpack.c.h.s8.bf16 %v1747
    %v2180 = vunpack.c.h.s8.bf16 %v1748
    %v2181 = vunpack.c.h.s8.bf16 %v1749
    %v2182 = vunpack.c.h.s8.bf16 %v1750
    %v2183 = vunpack.c.h.s8.bf16 %v1751
    %v2184 = vunpack.c.h.s8.bf16 %v1752
    %v2185 = vunpack.c.h.s8.bf16 %v1753
    %v2186 = vunpack.c.l.s8.bf16 %v1754
    %v2187 = vunpack.c.l.s8.bf16 %v1755
    %v2188 = vunpack.c.l.s8.bf16 %v1756
    %v2189 = vunpack.c.l.s8.bf16 %v1757
    %v2190 = vunpack.c.l.s8.bf16 %v1758
    %v2191 = vunpack.c.l.s8.bf16 %v1759
    %v2192 = vunpack.c.l.s8.bf16 %v1760
    %v2193 = vunpack.c.l.s8.bf16 %v1761
    %v2194 = vunpack.c.h.s8.bf16 %v1754
    %v2195 = vunpack.c.h.s8.bf16 %v1755
    %v2196 = vunpack.c.h.s8.bf16 %v1756
    %v2197 = vunpack.c.h.s8.bf16 %v1757
    %v2198 = vunpack.c.h.s8.bf16 %v1758
    %v2199 = vunpack.c.h.s8.bf16 %v1759
    %v2200 = vunpack.c.h.s8.bf16 %v1760
    %v2201 = vunpack.c.h.s8.bf16 %v1761
    %v2202 = vunpack.c.l.s8.bf16 %v1762
    %v2203 = vunpack.c.l.s8.bf16 %v1763
    %v2204 = vunpack.c.l.s8.bf16 %v1764
    %v2205 = vunpack.c.l.s8.bf16 %v1765
    %v2206 = vunpack.c.l.s8.bf16 %v1766
    %v2207 = vunpack.c.l.s8.bf16 %v1767
    %v2208 = vunpack.c.l.s8.bf16 %v1768
    %v2209 = vunpack.c.l.s8.bf16 %v1769
    %v2210 = vunpack.c.h.s8.bf16 %v1762
    %v2211 = vunpack.c.h.s8.bf16 %v1763
    %v2212 = vunpack.c.h.s8.bf16 %v1764
    %v2213 = vunpack.c.h.s8.bf16 %v1765
    %v2214 = vunpack.c.h.s8.bf16 %v1766
    %v2215 = vunpack.c.h.s8.bf16 %v1767
    %v2216 = vunpack.c.h.s8.bf16 %v1768
    %v2217 = vunpack.c.h.s8.bf16 %v1769
    %v2218 = vunpack.c.l.s8.bf16 %v1770
    %v2219 = vunpack.c.l.s8.bf16 %v1771
    %v2220 = vunpack.c.l.s8.bf16 %v1772
    %v2221 = vunpack.c.l.s8.bf16 %v1773
    %v2222 = vunpack.c.l.s8.bf16 %v1774
    %v2223 = vunpack.c.l.s8.bf16 %v1775
    %v2224 = vunpack.c.l.s8.bf16 %v1776
    %v2225 = vunpack.c.l.s8.bf16 %v1777
    %v2226 = vunpack.c.h.s8.bf16 %v1770
    %v2227 = vunpack.c.h.s8.bf16 %v1771
    %v2228 = vunpack.c.h.s8.bf16 %v1772
    %v2229 = vunpack.c.h.s8.bf16 %v1773
    %v2230 = vunpack.c.h.s8.bf16 %v1774
    %v2231 = vunpack.c.h.s8.bf16 %v1775
    %v2232 = vunpack.c.h.s8.bf16 %v1776
    %v2233 = vunpack.c.h.s8.bf16 %v1777
    %v2234 = vunpack.c.l.s8.bf16 %v1778
    %v2235 = vunpack.c.l.s8.bf16 %v1779
    %v2236 = vunpack.c.l.s8.bf16 %v1780
    %v2237 = vunpack.c.l.s8.bf16 %v1781
    %v2238 = vunpack.c.l.s8.bf16 %v1782
    %v2239 = vunpack.c.l.s8.bf16 %v1783
    %v2240 = vunpack.c.l.s8.bf16 %v1784
    %v2241 = vunpack.c.l.s8.bf16 %v1785
    %v2242 = vunpack.c.h.s8.bf16 %v1778
    %v2243 = vunpack.c.h.s8.bf16 %v1779
    %v2244 = vunpack.c.h.s8.bf16 %v1780
    %v2245 = vunpack.c.h.s8.bf16 %v1781
    %v2246 = vunpack.c.h.s8.bf16 %v1782
    %v2247 = vunpack.c.h.s8.bf16 %v1783
    %v2248 = vunpack.c.h.s8.bf16 %v1784
    %v2249 = vunpack.c.h.s8.bf16 %v1785
    %v2250 = vunpack.c.l.s8.bf16 %v1786
    %v2251 = vunpack.c.l.s8.bf16 %v1787
    %v2252 = vunpack.c.l.s8.bf16 %v1788
    %v2253 = vunpack.c.l.s8.bf16 %v1789
    %v2254 = vunpack.c.l.s8.bf16 %v1790
    %v2255 = vunpack.c.l.s8.bf16 %v1791
    %v2256 = vunpack.c.l.s8.bf16 %v1792
    %v2257 = vunpack.c.l.s8.bf16 %v1793
    %v2258 = vunpack.c.h.s8.bf16 %v1786
    %v2259 = vunpack.c.h.s8.bf16 %v1787
    %v2260 = vunpack.c.h.s8.bf16 %v1788
    %v2261 = vunpack.c.h.s8.bf16 %v1789
    %v2262 = vunpack.c.h.s8.bf16 %v1790
    %v2263 = vunpack.c.h.s8.bf16 %v1791
    %v2264 = vunpack.c.h.s8.bf16 %v1792
    %v2265 = vunpack.c.h.s8.bf16 %v1793
    %v2266 = vunpack.c.l.s8.bf16 %v1794
    %v2267 = vunpack.c.l.s8.bf16 %v1795
    %v2268 = vunpack.c.l.s8.bf16 %v1796
    %v2269 = vunpack.c.l.s8.bf16 %v1797
    %v2270 = vunpack.c.l.s8.bf16 %v1798
    %v2271 = vunpack.c.l.s8.bf16 %v1799
    %v2272 = vunpack.c.l.s8.bf16 %v1800
    %v2273 = vunpack.c.l.s8.bf16 %v1801
    %v2274 = vunpack.c.h.s8.bf16 %v1794
    %v2275 = vunpack.c.h.s8.bf16 %v1795
    %v2276 = vunpack.c.h.s8.bf16 %v1796
    %v2277 = vunpack.c.h.s8.bf16 %v1797
    %v2278 = vunpack.c.h.s8.bf16 %v1798
    %v2279 = vunpack.c.h.s8.bf16 %v1799
    %v2280 = vunpack.c.h.s8.bf16 %v1800
    %v2281 = vunpack.c.h.s8.bf16 %v1801
    %v2282 = vunpack.c.l.s8.bf16 %v1802
    %v2283 = vunpack.c.l.s8.bf16 %v1803
    %v2284 = vunpack.c.l.s8.bf16 %v1804
    %v2285 = vunpack.c.l.s8.bf16 %v1805
    %v2286 = vunpack.c.l.s8.bf16 %v1806
    %v2287 = vunpack.c.l.s8.bf16 %v1807
    %v2288 = vunpack.c.l.s8.bf16 %v1808
    %v2289 = vunpack.c.l.s8.bf16 %v1809
    %v2290 = vunpack.c.h.s8.bf16 %v1802
    %v2291 = vunpack.c.h.s8.bf16 %v1803
    %v2292 = vunpack.c.h.s8.bf16 %v1804
    %v2293 = vunpack.c.h.s8.bf16 %v1805
    %v2294 = vunpack.c.h.s8.bf16 %v1806
    %v2295 = vunpack.c.h.s8.bf16 %v1807
    %v2296 = vunpack.c.h.s8.bf16 %v1808
    %v2297 = vunpack.c.h.s8.bf16 %v1809
    %v2298 = vunpack.c.l.s8.bf16 %v1810
    %v2299 = vunpack.c.l.s8.bf16 %v1811
    %v2300 = vunpack.c.l.s8.bf16 %v1812
    %v2301 = vunpack.c.l.s8.bf16 %v1813
    %v2302 = vunpack.c.l.s8.bf16 %v1814
    %v2303 = vunpack.c.l.s8.bf16 %v1815
    %v2304 = vunpack.c.l.s8.bf16 %v1816
    %v2305 = vunpack.c.l.s8.bf16 %v1817
    %v2306 = vunpack.c.h.s8.bf16 %v1810
    %v2307 = vunpack.c.h.s8.bf16 %v1811
    %v2308 = vunpack.c.h.s8.bf16 %v1812
    %v2309 = vunpack.c.h.s8.bf16 %v1813
    %v2310 = vunpack.c.h.s8.bf16 %v1814
    %v2311 = vunpack.c.h.s8.bf16 %v1815
    %v2312 = vunpack.c.h.s8.bf16 %v1816
    %v2313 = vunpack.c.h.s8.bf16 %v1817
    %v2314 = vunpack.c.l.s8.bf16 %v1818
    %v2315 = vunpack.c.l.s8.bf16 %v1819
    %v2316 = vunpack.c.l.s8.bf16 %v1820
    %v2317 = vunpack.c.l.s8.bf16 %v1821
    %v2318 = vunpack.c.l.s8.bf16 %v1822
    %v2319 = vunpack.c.l.s8.bf16 %v1823
    %v2320 = vunpack.c.l.s8.bf16 %v1824
    %v2321 = vunpack.c.l.s8.bf16 %v1825
    %v2322 = vunpack.c.h.s8.bf16 %v1818
    %v2323 = vunpack.c.h.s8.bf16 %v1819
    %v2324 = vunpack.c.h.s8.bf16 %v1820
    %v2325 = vunpack.c.h.s8.bf16 %v1821
    %v2326 = vunpack.c.h.s8.bf16 %v1822
    %v2327 = vunpack.c.h.s8.bf16 %v1823
    %v2328 = vunpack.c.h.s8.bf16 %v1824
    %v2329 = vunpack.c.h.s8.bf16 %v1825
    %v2330 = vunpack.c.l.s8.bf16 %v1826
    %v2331 = vunpack.c.l.s8.bf16 %v1827
    %v2332 = vunpack.c.l.s8.bf16 %v1828
    %v2333 = vunpack.c.l.s8.bf16 %v1829
    %v2334 = vunpack.c.l.s8.bf16 %v1830
    %v2335 = vunpack.c.l.s8.bf16 %v1831
    %v2336 = vunpack.c.l.s8.bf16 %v1832
    %v2337 = vunpack.c.l.s8.bf16 %v1833
    %v2338 = vunpack.c.h.s8.bf16 %v1826
    %v2339 = vunpack.c.h.s8.bf16 %v1827
    %v2340 = vunpack.c.h.s8.bf16 %v1828
    %v2341 = vunpack.c.h.s8.bf16 %v1829
    %v2342 = vunpack.c.h.s8.bf16 %v1830
    %v2343 = vunpack.c.h.s8.bf16 %v1831
    %v2344 = vunpack.c.h.s8.bf16 %v1832
    %v2345 = vunpack.c.h.s8.bf16 %v1833
    %2346 = vmatprep.subr.bf16.mxu0 %v1891
    %2347 = vmatpush1.bf16.msra.mxu0 %v1890
    %2348 = vmatprep.subr.bf16.mxu0 %v1883
    %2349 = vmatpush1.bf16.msra.mxu0 %v1882
    %2350 = vmatprep.subr.bf16.mxu0 %v1875
    %2351 = vmatpush1.bf16.msra.mxu0 %v1874
    %2352 = vmatprep.subr.bf16.mxu0 %v1867
    %2353 = vmatpush1.bf16.msra.mxu0 %v1866
    %2354 = vmatprep.subr.bf16.mxu0 %v1859
    %2355 = vmatpush1.bf16.msra.mxu0 %v1858
    %2356 = vmatprep.subr.bf16.mxu0 %v1851
    %2357 = vmatpush1.bf16.msra.mxu0 %v1850
    %2358 = vmatprep.subr.bf16.mxu0 %v1843
    %2359 = vmatpush1.bf16.msra.mxu0 %v1842
    %2360 = vmatprep.subr.bf16.mxu0 %v1835
    %2361 = vmatpush1.bf16.msra.mxu0 %v1834
    %2362 = vmatprep.subr.bf16.mxu0 %v1955
    %2363 = vmatpush2.bf16.msra.mxu0 %v1954
    %2364 = vmatprep.subr.bf16.mxu0 %v1947
    %2365 = vmatpush2.bf16.msra.mxu0 %v1946
    %2366 = vmatprep.subr.bf16.mxu0 %v1939
    %2367 = vmatpush2.bf16.msra.mxu0 %v1938
    %2368 = vmatprep.subr.bf16.mxu0 %v1931
    %2369 = vmatpush2.bf16.msra.mxu0 %v1930
    %2370 = vmatprep.subr.bf16.mxu0 %v1923
    %2371 = vmatpush2.bf16.msra.mxu0 %v1922
    %2372 = vmatprep.subr.bf16.mxu0 %v1915
    %2373 = vmatpush2.bf16.msra.mxu0 %v1914
    %2374 = vmatprep.subr.bf16.mxu0 %v1907
    %2375 = vmatpush2.bf16.msra.mxu0 %v1906
    %2376 = vmatprep.subr.bf16.mxu0 %v1899
    %2377 = vmatpush2.bf16.msra.mxu0 %v1898
    %2378 = vmatprep.mubr.bf16.mxu0 %v1567
    %2379 = vmatmul.mubr.bf16.gmra.mxu0 %v1566
    %v2380 = vpop.f32.mrf.mxu0
    %v2381 = vadd.f32 0.0, %v2380
    %v2382 = vpop.f32.mrf.mxu0
    %v2383 = vadd.f32 0.0, %v2382
    %v2384 = vpop.f32.mrf.mxu0
    %v2385 = vpop.f32.mrf.mxu0
    %2386 = vdwg.mxu0
    %2387 = vmatprep.subr.bf16.mxu0 %v2019
    %2388 = vmatpush1.bf16.msra.mxu0 %v2018
    %2389 = vmatprep.subr.bf16.mxu0 %v2011
    %2390 = vmatpush1.bf16.msra.mxu0 %v2010
    %2391 = vmatprep.subr.bf16.mxu0 %v2003
    %2392 = vmatpush1.bf16.msra.mxu0 %v2002
    %2393 = vmatprep.subr.bf16.mxu0 %v1995
    %2394 = vmatpush1.bf16.msra.mxu0 %v1994
    %2395 = vmatprep.subr.bf16.mxu0 %v1987
    %2396 = vmatpush1.bf16.msra.mxu0 %v1986
    %2397 = vmatprep.subr.bf16.mxu0 %v1979
    %2398 = vmatpush1.bf16.msra.mxu0 %v1978
    %2399 = vmatprep.subr.bf16.mxu0 %v1971
    %2400 = vmatpush1.bf16.msra.mxu0 %v1970
    %2401 = vmatprep.subr.bf16.mxu0 %v1963
    %2402 = vmatpush1.bf16.msra.mxu0 %v1962
    %2403 = vmatprep.subr.bf16.mxu0 %v2083
    %2404 = vmatpush2.bf16.msra.mxu0 %v2082
    %2405 = vmatprep.subr.bf16.mxu0 %v2075
    %2406 = vmatpush2.bf16.msra.mxu0 %v2074
    %2407 = vmatprep.subr.bf16.mxu0 %v2067
    %2408 = vmatpush2.bf16.msra.mxu0 %v2066
    %2409 = vmatprep.subr.bf16.mxu0 %v2059
    %2410 = vmatpush2.bf16.msra.mxu0 %v2058
    %2411 = vmatprep.subr.bf16.mxu0 %v2051
    %2412 = vmatpush2.bf16.msra.mxu0 %v2050
    %2413 = vmatprep.subr.bf16.mxu0 %v2043
    %2414 = vmatpush2.bf16.msra.mxu0 %v2042
    %2415 = vmatprep.subr.bf16.mxu0 %v2035
    %2416 = vmatpush2.bf16.msra.mxu0 %v2034
    %2417 = vmatprep.subr.bf16.mxu0 %v2027
    %2418 = vmatpush2.bf16.msra.mxu0 %v2026
    %2419 = vmatprep.mubr.bf16.mxu0 %v1569
    %2420 = vmatmul.mubr.bf16.gmra.mxu0 %v1568
    %v2421 = vpop.f32.mrf.mxu0
    %v2422 = vadd.f32 %v2381, %v2421
    %v2423 = vpop.f32.mrf.mxu0
    %v2424 = vadd.f32 %v2383, %v2423
    %v2425 = vpop.f32.mrf.mxu0
    %v2426 = vpop.f32.mrf.mxu0
    %2427 = vdwg.mxu0
    %2428 = vmatprep.subr.bf16.mxu0 %v2147
    %2429 = vmatpush1.bf16.msra.mxu0 %v2146
    %2430 = vmatprep.subr.bf16.mxu0 %v2139
    %2431 = vmatpush1.bf16.msra.mxu0 %v2138
    %2432 = vmatprep.subr.bf16.mxu0 %v2131
    %2433 = vmatpush1.bf16.msra.mxu0 %v2130
    %2434 = vmatprep.subr.bf16.mxu0 %v2123
    %2435 = vmatpush1.bf16.msra.mxu0 %v2122
    %2436 = vmatprep.subr.bf16.mxu0 %v2115
    %2437 = vmatpush1.bf16.msra.mxu0 %v2114
    %2438 = vmatprep.subr.bf16.mxu0 %v2107
    %2439 = vmatpush1.bf16.msra.mxu0 %v2106
    %2440 = vmatprep.subr.bf16.mxu0 %v2099
    %2441 = vmatpush1.bf16.msra.mxu0 %v2098
    %2442 = vmatprep.subr.bf16.mxu0 %v2091
    %2443 = vmatpush1.bf16.msra.mxu0 %v2090
    %2444 = vmatprep.subr.bf16.mxu0 %v2211
    %2445 = vmatpush2.bf16.msra.mxu0 %v2210
    %2446 = vmatprep.subr.bf16.mxu0 %v2203
    %2447 = vmatpush2.bf16.msra.mxu0 %v2202
    %2448 = vmatprep.subr.bf16.mxu0 %v2195
    %2449 = vmatpush2.bf16.msra.mxu0 %v2194
    %2450 = vmatprep.subr.bf16.mxu0 %v2187
    %2451 = vmatpush2.bf16.msra.mxu0 %v2186
    %2452 = vmatprep.subr.bf16.mxu0 %v2179
    %2453 = vmatpush2.bf16.msra.mxu0 %v2178
    %2454 = vmatprep.subr.bf16.mxu0 %v2171
    %2455 = vmatpush2.bf16.msra.mxu0 %v2170
    %2456 = vmatprep.subr.bf16.mxu0 %v2163
    %2457 = vmatpush2.bf16.msra.mxu0 %v2162
    %2458 = vmatprep.subr.bf16.mxu0 %v2155
    %2459 = vmatpush2.bf16.msra.mxu0 %v2154
    %2460 = vmatprep.mubr.bf16.mxu0 %v1571
    %2461 = vmatmul.mubr.bf16.gmra.mxu0 %v1570
    %v2462 = vpop.f32.mrf.mxu0
    %v2463 = vadd.f32 %v2422, %v2462
    %v2464 = vpop.f32.mrf.mxu0
    %v2465 = vadd.f32 %v2424, %v2464
    %v2466 = vpop.f32.mrf.mxu0
    %v2467 = vpop.f32.mrf.mxu0
    %2468 = vdwg.mxu0
    %2469 = vmatprep.subr.bf16.mxu0 %v2275
    %2470 = vmatpush1.bf16.msra.mxu0 %v2274
    %2471 = vmatprep.subr.bf16.mxu0 %v2267
    %2472 = vmatpush1.bf16.msra.mxu0 %v2266
    %2473 = vmatprep.subr.bf16.mxu0 %v2259
    %2474 = vmatpush1.bf16.msra.mxu0 %v2258
    %2475 = vmatprep.subr.bf16.mxu0 %v2251
    %2476 = vmatpush1.bf16.msra.mxu0 %v2250
    %2477 = vmatprep.subr.bf16.mxu0 %v2243
    %2478 = vmatpush1.bf16.msra.mxu0 %v2242
    %2479 = vmatprep.subr.bf16.mxu0 %v2235
    %2480 = vmatpush1.bf16.msra.mxu0 %v2234
    %2481 = vmatprep.subr.bf16.mxu0 %v2227
    %2482 = vmatpush1.bf16.msra.mxu0 %v2226
    %2483 = vmatprep.subr.bf16.mxu0 %v2219
    %2484 = vmatpush1.bf16.msra.mxu0 %v2218
    %2485 = vmatprep.subr.bf16.mxu0 %v2339
    %2486 = vmatpush2.bf16.msra.mxu0 %v2338
    %2487 = vmatprep.subr.bf16.mxu0 %v2331
    %2488 = vmatpush2.bf16.msra.mxu0 %v2330
    %2489 = vmatprep.subr.bf16.mxu0 %v2323
    %2490 = vmatpush2.bf16.msra.mxu0 %v2322
    %2491 = vmatprep.subr.bf16.mxu0 %v2315
    %2492 = vmatpush2.bf16.msra.mxu0 %v2314
    %2493 = vmatprep.subr.bf16.mxu0 %v2307
    %2494 = vmatpush2.bf16.msra.mxu0 %v2306
    %2495 = vmatprep.subr.bf16.mxu0 %v2299
    %2496 = vmatpush2.bf16.msra.mxu0 %v2298
    %2497 = vmatprep.subr.bf16.mxu0 %v2291
    %2498 = vmatpush2.bf16.msra.mxu0 %v2290
    %2499 = vmatprep.subr.bf16.mxu0 %v2283
    %2500 = vmatpush2.bf16.msra.mxu0 %v2282
    %2501 = vmatprep.mubr.bf16.mxu0 %v1573
    %2502 = vmatmul.mubr.bf16.gmra.mxu0 %v1572
    %v2503 = vpop.f32.mrf.mxu0
    %v2504 = vadd.f32 %v2463, %v2503
    %v2505 = vpop.f32.mrf.mxu0
    %v2506 = vadd.f32 %v2465, %v2505
    %v2507 = vpop.f32.mrf.mxu0
    %v2508 = vpop.f32.mrf.mxu0
    %2509 = vdwg.mxu0
    %2510 = vmatprep.subr.bf16.mxu0 %v1893
    %2511 = vmatpush1.bf16.msra.mxu0 %v1892
    %2512 = vmatprep.subr.bf16.mxu0 %v1885
    %2513 = vmatpush1.bf16.msra.mxu0 %v1884
    %2514 = vmatprep.subr.bf16.mxu0 %v1877
    %2515 = vmatpush1.bf16.msra.mxu0 %v1876
    %2516 = vmatprep.subr.bf16.mxu0 %v1869
    %2517 = vmatpush1.bf16.msra.mxu0 %v1868
    %2518 = vmatprep.subr.bf16.mxu0 %v1861
    %2519 = vmatpush1.bf16.msra.mxu0 %v1860
    %2520 = vmatprep.subr.bf16.mxu0 %v1853
    %2521 = vmatpush1.bf16.msra.mxu0 %v1852
    %2522 = vmatprep.subr.bf16.mxu0 %v1845
    %2523 = vmatpush1.bf16.msra.mxu0 %v1844
    %2524 = vmatprep.subr.bf16.mxu0 %v1837
    %2525 = vmatpush1.bf16.msra.mxu0 %v1836
    %2526 = vmatprep.subr.bf16.mxu0 %v1957
    %2527 = vmatpush2.bf16.msra.mxu0 %v1956
    %2528 = vmatprep.subr.bf16.mxu0 %v1949
    %2529 = vmatpush2.bf16.msra.mxu0 %v1948
    %2530 = vmatprep.subr.bf16.mxu0 %v1941
    %2531 = vmatpush2.bf16.msra.mxu0 %v1940
    %2532 = vmatprep.subr.bf16.mxu0 %v1933
    %2533 = vmatpush2.bf16.msra.mxu0 %v1932
    %2534 = vmatprep.subr.bf16.mxu0 %v1925
    %2535 = vmatpush2.bf16.msra.mxu0 %v1924
    %2536 = vmatprep.subr.bf16.mxu0 %v1917
    %2537 = vmatpush2.bf16.msra.mxu0 %v1916
    %2538 = vmatprep.subr.bf16.mxu0 %v1909
    %2539 = vmatpush2.bf16.msra.mxu0 %v1908
    %2540 = vmatprep.subr.bf16.mxu0 %v1901
    %2541 = vmatpush2.bf16.msra.mxu0 %v1900
    %2542 = vmatprep.mubr.bf16.mxu0 %v1567
    %2543 = vmatmul.mubr.bf16.gmra.mxu0 %v1566
    %v2544 = vpop.f32.mrf.mxu0
    %v2545 = vadd.f32 0.0, %v2544
    %v2546 = vpop.f32.mrf.mxu0
    %v2547 = vadd.f32 0.0, %v2546
    %v2548 = vpop.f32.mrf.mxu0
    %v2549 = vpop.f32.mrf.mxu0
    %2550 = vdwg.mxu0
    %2551 = vmatprep.subr.bf16.mxu0 %v2021
    %2552 = vmatpush1.bf16.msra.mxu0 %v2020
    %2553 = vmatprep.subr.bf16.mxu0 %v2013
    %2554 = vmatpush1.bf16.msra.mxu0 %v2012
    %2555 = vmatprep.subr.bf16.mxu0 %v2005
    %2556 = vmatpush1.bf16.msra.mxu0 %v2004
    %2557 = vmatprep.subr.bf16.mxu0 %v1997
    %2558 = vmatpush1.bf16.msra.mxu0 %v1996
    %2559 = vmatprep.subr.bf16.mxu0 %v1989
    %2560 = vmatpush1.bf16.msra.mxu0 %v1988
    %2561 = vmatprep.subr.bf16.mxu0 %v1981
    %2562 = vmatpush1.bf16.msra.mxu0 %v1980
    %2563 = vmatprep.subr.bf16.mxu0 %v1973
    %2564 = vmatpush1.bf16.msra.mxu0 %v1972
    %2565 = vmatprep.subr.bf16.mxu0 %v1965
    %2566 = vmatpush1.bf16.msra.mxu0 %v1964
    %2567 = vmatprep.subr.bf16.mxu0 %v2085
    %2568 = vmatpush2.bf16.msra.mxu0 %v2084
    %2569 = vmatprep.subr.bf16.mxu0 %v2077
    %2570 = vmatpush2.bf16.msra.mxu0 %v2076
    %2571 = vmatprep.subr.bf16.mxu0 %v2069
    %2572 = vmatpush2.bf16.msra.mxu0 %v2068
    %2573 = vmatprep.subr.bf16.mxu0 %v2061
    %2574 = vmatpush2.bf16.msra.mxu0 %v2060
    %2575 = vmatprep.subr.bf16.mxu0 %v2053
    %2576 = vmatpush2.bf16.msra.mxu0 %v2052
    %2577 = vmatprep.subr.bf16.mxu0 %v2045
    %2578 = vmatpush2.bf16.msra.mxu0 %v2044
    %2579 = vmatprep.subr.bf16.mxu0 %v2037
    %2580 = vmatpush2.bf16.msra.mxu0 %v2036
    %2581 = vmatprep.subr.bf16.mxu0 %v2029
    %2582 = vmatpush2.bf16.msra.mxu0 %v2028
    %2583 = vmatprep.mubr.bf16.mxu0 %v1569
    %2584 = vmatmul.mubr.bf16.gmra.mxu0 %v1568
    %v2585 = vpop.f32.mrf.mxu0
    %v2586 = vadd.f32 %v2545, %v2585
    %v2587 = vpop.f32.mrf.mxu0
    %v2588 = vadd.f32 %v2547, %v2587
    %v2589 = vpop.f32.mrf.mxu0
    %v2590 = vpop.f32.mrf.mxu0
    %2591 = vdwg.mxu0
    %2592 = vmatprep.subr.bf16.mxu0 %v2149
    %2593 = vmatpush1.bf16.msra.mxu0 %v2148
    %2594 = vmatprep.subr.bf16.mxu0 %v2141
    %2595 = vmatpush1.bf16.msra.mxu0 %v2140
    %2596 = vmatprep.subr.bf16.mxu0 %v2133
    %2597 = vmatpush1.bf16.msra.mxu0 %v2132
    %2598 = vmatprep.subr.bf16.mxu0 %v2125
    %2599 = vmatpush1.bf16.msra.mxu0 %v2124
    %2600 = vmatprep.subr.bf16.mxu0 %v2117
    %2601 = vmatpush1.bf16.msra.mxu0 %v2116
    %2602 = vmatprep.subr.bf16.mxu0 %v2109
    %2603 = vmatpush1.bf16.msra.mxu0 %v2108
    %2604 = vmatprep.subr.bf16.mxu0 %v2101
    %2605 = vmatpush1.bf16.msra.mxu0 %v2100
    %2606 = vmatprep.subr.bf16.mxu0 %v2093
    %2607 = vmatpush1.bf16.msra.mxu0 %v2092
    %2608 = vmatprep.subr.bf16.mxu0 %v2213
    %2609 = vmatpush2.bf16.msra.mxu0 %v2212
    %2610 = vmatprep.subr.bf16.mxu0 %v2205
    %2611 = vmatpush2.bf16.msra.mxu0 %v2204
    %2612 = vmatprep.subr.bf16.mxu0 %v2197
    %2613 = vmatpush2.bf16.msra.mxu0 %v2196
    %2614 = vmatprep.subr.bf16.mxu0 %v2189
    %2615 = vmatpush2.bf16.msra.mxu0 %v2188
    %2616 = vmatprep.subr.bf16.mxu0 %v2181
    %2617 = vmatpush2.bf16.msra.mxu0 %v2180
    %2618 = vmatprep.subr.bf16.mxu0 %v2173
    %2619 = vmatpush2.bf16.msra.mxu0 %v2172
    %2620 = vmatprep.subr.bf16.mxu0 %v2165
    %2621 = vmatpush2.bf16.msra.mxu0 %v2164
    %2622 = vmatprep.subr.bf16.mxu0 %v2157
    %2623 = vmatpush2.bf16.msra.mxu0 %v2156
    %2624 = vmatprep.mubr.bf16.mxu0 %v1571
    %2625 = vmatmul.mubr.bf16.gmra.mxu0 %v1570
    %v2626 = vpop.f32.mrf.mxu0
    %v2627 = vadd.f32 %v2586, %v2626
    %v2628 = vpop.f32.mrf.mxu0
    %v2629 = vadd.f32 %v2588, %v2628
    %v2630 = vpop.f32.mrf.mxu0
    %v2631 = vpop.f32.mrf.mxu0
    %2632 = vdwg.mxu0
    %2633 = vmatprep.subr.bf16.mxu0 %v2277
    %2634 = vmatpush1.bf16.msra.mxu0 %v2276
    %2635 = vmatprep.subr.bf16.mxu0 %v2269
    %2636 = vmatpush1.bf16.msra.mxu0 %v2268
    %2637 = vmatprep.subr.bf16.mxu0 %v2261
    %2638 = vmatpush1.bf16.msra.mxu0 %v2260
    %2639 = vmatprep.subr.bf16.mxu0 %v2253
    %2640 = vmatpush1.bf16.msra.mxu0 %v2252
    %2641 = vmatprep.subr.bf16.mxu0 %v2245
    %2642 = vmatpush1.bf16.msra.mxu0 %v2244
    %2643 = vmatprep.subr.bf16.mxu0 %v2237
    %2644 = vmatpush1.bf16.msra.mxu0 %v2236
    %2645 = vmatprep.subr.bf16.mxu0 %v2229
    %2646 = vmatpush1.bf16.msra.mxu0 %v2228
    %2647 = vmatprep.subr.bf16.mxu0 %v2221
    %2648 = vmatpush1.bf16.msra.mxu0 %v2220
    %2649 = vmatprep.subr.bf16.mxu0 %v2341
    %2650 = vmatpush2.bf16.msra.mxu0 %v2340
    %2651 = vmatprep.subr.bf16.mxu0 %v2333
    %2652 = vmatpush2.bf16.msra.mxu0 %v2332
    %2653 = vmatprep.subr.bf16.mxu0 %v2325
    %2654 = vmatpush2.bf16.msra.mxu0 %v2324
    %2655 = vmatprep.subr.bf16.mxu0 %v2317
    %2656 = vmatpush2.bf16.msra.mxu0 %v2316
    %2657 = vmatprep.subr.bf16.mxu0 %v2309
    %2658 = vmatpush2.bf16.msra.mxu0 %v2308
    %2659 = vmatprep.subr.bf16.mxu0 %v2301
    %2660 = vmatpush2.bf16.msra.mxu0 %v2300
    %2661 = vmatprep.subr.bf16.mxu0 %v2293
    %2662 = vmatpush2.bf16.msra.mxu0 %v2292
    %2663 = vmatprep.subr.bf16.mxu0 %v2285
    %2664 = vmatpush2.bf16.msra.mxu0 %v2284
    %2665 = vmatprep.mubr.bf16.mxu0 %v1573
    %2666 = vmatmul.mubr.bf16.gmra.mxu0 %v1572
    %v2667 = vpop.f32.mrf.mxu0
    %v2668 = vadd.f32 %v2627, %v2667
    %v2669 = vpop.f32.mrf.mxu0
    %v2670 = vadd.f32 %v2629, %v2669
    %v2671 = vpop.f32.mrf.mxu0
    %v2672 = vpop.f32.mrf.mxu0
    %2673 = vdwg.mxu0
    %2674 = vmatprep.subr.bf16.mxu0 %v1895
    %2675 = vmatpush1.bf16.msra.mxu0 %v1894
    %2676 = vmatprep.subr.bf16.mxu0 %v1887
    %2677 = vmatpush1.bf16.msra.mxu0 %v1886
    %2678 = vmatprep.subr.bf16.mxu0 %v1879
    %2679 = vmatpush1.bf16.msra.mxu0 %v1878
    %2680 = vmatprep.subr.bf16.mxu0 %v1871
    %2681 = vmatpush1.bf16.msra.mxu0 %v1870
    %2682 = vmatprep.subr.bf16.mxu0 %v1863
    %2683 = vmatpush1.bf16.msra.mxu0 %v1862
    %2684 = vmatprep.subr.bf16.mxu0 %v1855
    %2685 = vmatpush1.bf16.msra.mxu0 %v1854
    %2686 = vmatprep.subr.bf16.mxu0 %v1847
    %2687 = vmatpush1.bf16.msra.mxu0 %v1846
    %2688 = vmatprep.subr.bf16.mxu0 %v1839
    %2689 = vmatpush1.bf16.msra.mxu0 %v1838
    %2690 = vmatprep.subr.bf16.mxu0 %v1959
    %2691 = vmatpush2.bf16.msra.mxu0 %v1958
    %2692 = vmatprep.subr.bf16.mxu0 %v1951
    %2693 = vmatpush2.bf16.msra.mxu0 %v1950
    %2694 = vmatprep.subr.bf16.mxu0 %v1943
    %2695 = vmatpush2.bf16.msra.mxu0 %v1942
    %2696 = vmatprep.subr.bf16.mxu0 %v1935
    %2697 = vmatpush2.bf16.msra.mxu0 %v1934
    %2698 = vmatprep.subr.bf16.mxu0 %v1927
    %2699 = vmatpush2.bf16.msra.mxu0 %v1926
    %2700 = vmatprep.subr.bf16.mxu0 %v1919
    %2701 = vmatpush2.bf16.msra.mxu0 %v1918
    %2702 = vmatprep.subr.bf16.mxu0 %v1911
    %2703 = vmatpush2.bf16.msra.mxu0 %v1910
    %2704 = vmatprep.subr.bf16.mxu0 %v1903
    %2705 = vmatpush2.bf16.msra.mxu0 %v1902
    %2706 = vmatprep.mubr.bf16.mxu0 %v1567
    %2707 = vmatmul.mubr.bf16.gmra.mxu0 %v1566
    %v2708 = vpop.f32.mrf.mxu0
    %v2709 = vadd.f32 0.0, %v2708
    %v2710 = vpop.f32.mrf.mxu0
    %v2711 = vadd.f32 0.0, %v2710
    %v2712 = vpop.f32.mrf.mxu0
    %v2713 = vpop.f32.mrf.mxu0
    %2714 = vdwg.mxu0
    %2715 = vmatprep.subr.bf16.mxu0 %v2023
    %2716 = vmatpush1.bf16.msra.mxu0 %v2022
    %2717 = vmatprep.subr.bf16.mxu0 %v2015
    %2718 = vmatpush1.bf16.msra.mxu0 %v2014
    %2719 = vmatprep.subr.bf16.mxu0 %v2007
    %2720 = vmatpush1.bf16.msra.mxu0 %v2006
    %2721 = vmatprep.subr.bf16.mxu0 %v1999
    %2722 = vmatpush1.bf16.msra.mxu0 %v1998
    %2723 = vmatprep.subr.bf16.mxu0 %v1991
    %2724 = vmatpush1.bf16.msra.mxu0 %v1990
    %2725 = vmatprep.subr.bf16.mxu0 %v1983
    %2726 = vmatpush1.bf16.msra.mxu0 %v1982
    %2727 = vmatprep.subr.bf16.mxu0 %v1975
    %2728 = vmatpush1.bf16.msra.mxu0 %v1974
    %2729 = vmatprep.subr.bf16.mxu0 %v1967
    %2730 = vmatpush1.bf16.msra.mxu0 %v1966
    %2731 = vmatprep.subr.bf16.mxu0 %v2087
    %2732 = vmatpush2.bf16.msra.mxu0 %v2086
    %2733 = vmatprep.subr.bf16.mxu0 %v2079
    %2734 = vmatpush2.bf16.msra.mxu0 %v2078
    %2735 = vmatprep.subr.bf16.mxu0 %v2071
    %2736 = vmatpush2.bf16.msra.mxu0 %v2070
    %2737 = vmatprep.subr.bf16.mxu0 %v2063
    %2738 = vmatpush2.bf16.msra.mxu0 %v2062
    %2739 = vmatprep.subr.bf16.mxu0 %v2055
    %2740 = vmatpush2.bf16.msra.mxu0 %v2054
    %2741 = vmatprep.subr.bf16.mxu0 %v2047
    %2742 = vmatpush2.bf16.msra.mxu0 %v2046
    %2743 = vmatprep.subr.bf16.mxu0 %v2039
    %2744 = vmatpush2.bf16.msra.mxu0 %v2038
    %2745 = vmatprep.subr.bf16.mxu0 %v2031
    %2746 = vmatpush2.bf16.msra.mxu0 %v2030
    %2747 = vmatprep.mubr.bf16.mxu0 %v1569
    %2748 = vmatmul.mubr.bf16.gmra.mxu0 %v1568
    %v2749 = vpop.f32.mrf.mxu0
    %v2750 = vadd.f32 %v2709, %v2749
    %v2751 = vpop.f32.mrf.mxu0
    %v2752 = vadd.f32 %v2711, %v2751
    %v2753 = vpop.f32.mrf.mxu0
    %v2754 = vpop.f32.mrf.mxu0
    %2755 = vdwg.mxu0
    %2756 = vmatprep.subr.bf16.mxu0 %v2151
    %2757 = vmatpush1.bf16.msra.mxu0 %v2150
    %2758 = vmatprep.subr.bf16.mxu0 %v2143
    %2759 = vmatpush1.bf16.msra.mxu0 %v2142
    %2760 = vmatprep.subr.bf16.mxu0 %v2135
    %2761 = vmatpush1.bf16.msra.mxu0 %v2134
    %2762 = vmatprep.subr.bf16.mxu0 %v2127
    %2763 = vmatpush1.bf16.msra.mxu0 %v2126
    %2764 = vmatprep.subr.bf16.mxu0 %v2119
    %2765 = vmatpush1.bf16.msra.mxu0 %v2118
    %2766 = vmatprep.subr.bf16.mxu0 %v2111
    %2767 = vmatpush1.bf16.msra.mxu0 %v2110
    %2768 = vmatprep.subr.bf16.mxu0 %v2103
    %2769 = vmatpush1.bf16.msra.mxu0 %v2102
    %2770 = vmatprep.subr.bf16.mxu0 %v2095
    %2771 = vmatpush1.bf16.msra.mxu0 %v2094
    %2772 = vmatprep.subr.bf16.mxu0 %v2215
    %2773 = vmatpush2.bf16.msra.mxu0 %v2214
    %2774 = vmatprep.subr.bf16.mxu0 %v2207
    %2775 = vmatpush2.bf16.msra.mxu0 %v2206
    %2776 = vmatprep.subr.bf16.mxu0 %v2199
    %2777 = vmatpush2.bf16.msra.mxu0 %v2198
    %2778 = vmatprep.subr.bf16.mxu0 %v2191
    %2779 = vmatpush2.bf16.msra.mxu0 %v2190
    %2780 = vmatprep.subr.bf16.mxu0 %v2183
    %2781 = vmatpush2.bf16.msra.mxu0 %v2182
    %2782 = vmatprep.subr.bf16.mxu0 %v2175
    %2783 = vmatpush2.bf16.msra.mxu0 %v2174
    %2784 = vmatprep.subr.bf16.mxu0 %v2167
    %2785 = vmatpush2.bf16.msra.mxu0 %v2166
    %2786 = vmatprep.subr.bf16.mxu0 %v2159
    %2787 = vmatpush2.bf16.msra.mxu0 %v2158
    %2788 = vmatprep.mubr.bf16.mxu0 %v1571
    %2789 = vmatmul.mubr.bf16.gmra.mxu0 %v1570
    %v2790 = vpop.f32.mrf.mxu0
    %v2791 = vadd.f32 %v2750, %v2790
    %v2792 = vpop.f32.mrf.mxu0
    %v2793 = vadd.f32 %v2752, %v2792
    %v2794 = vpop.f32.mrf.mxu0
    %v2795 = vpop.f32.mrf.mxu0
    %2796 = vdwg.mxu0
    %2797 = vmatprep.subr.bf16.mxu0 %v2279
    %2798 = vmatpush1.bf16.msra.mxu0 %v2278
    %2799 = vmatprep.subr.bf16.mxu0 %v2271
    %2800 = vmatpush1.bf16.msra.mxu0 %v2270
    %2801 = vmatprep.subr.bf16.mxu0 %v2263
    %2802 = vmatpush1.bf16.msra.mxu0 %v2262
    %2803 = vmatprep.subr.bf16.mxu0 %v2255
    %2804 = vmatpush1.bf16.msra.mxu0 %v2254
    %2805 = vmatprep.subr.bf16.mxu0 %v2247
    %2806 = vmatpush1.bf16.msra.mxu0 %v2246
    %2807 = vmatprep.subr.bf16.mxu0 %v2239
    %2808 = vmatpush1.bf16.msra.mxu0 %v2238
    %2809 = vmatprep.subr.bf16.mxu0 %v2231
    %2810 = vmatpush1.bf16.msra.mxu0 %v2230
    %2811 = vmatprep.subr.bf16.mxu0 %v2223
    %2812 = vmatpush1.bf16.msra.mxu0 %v2222
    %2813 = vmatprep.subr.bf16.mxu0 %v2343
    %2814 = vmatpush2.bf16.msra.mxu0 %v2342
    %2815 = vmatprep.subr.bf16.mxu0 %v2335
    %2816 = vmatpush2.bf16.msra.mxu0 %v2334
    %2817 = vmatprep.subr.bf16.mxu0 %v2327
    %2818 = vmatpush2.bf16.msra.mxu0 %v2326
    %2819 = vmatprep.subr.bf16.mxu0 %v2319
    %2820 = vmatpush2.bf16.msra.mxu0 %v2318
    %2821 = vmatprep.subr.bf16.mxu0 %v2311
    %2822 = vmatpush2.bf16.msra.mxu0 %v2310
    %2823 = vmatprep.subr.bf16.mxu0 %v2303
    %2824 = vmatpush2.bf16.msra.mxu0 %v2302
    %2825 = vmatprep.subr.bf16.mxu0 %v2295
    %2826 = vmatpush2.bf16.msra.mxu0 %v2294
    %2827 = vmatprep.subr.bf16.mxu0 %v2287
    %2828 = vmatpush2.bf16.msra.mxu0 %v2286
    %2829 = vmatprep.mubr.bf16.mxu0 %v1573
    %2830 = vmatmul.mubr.bf16.gmra.mxu0 %v1572
    %v2831 = vpop.f32.mrf.mxu0
    %v2832 = vadd.f32 %v2791, %v2831
    %v2833 = vpop.f32.mrf.mxu0
    %v2834 = vadd.f32 %v2793, %v2833
    %v2835 = vpop.f32.mrf.mxu0
    %v2836 = vpop.f32.mrf.mxu0
    %2837 = vdwg.mxu0
    %2838 = vmatprep.subr.bf16.mxu0 %v1897
    %2839 = vmatpush1.bf16.msra.mxu0 %v1896
    %2840 = vmatprep.subr.bf16.mxu0 %v1889
    %2841 = vmatpush1.bf16.msra.mxu0 %v1888
    %2842 = vmatprep.subr.bf16.mxu0 %v1881
    %2843 = vmatpush1.bf16.msra.mxu0 %v1880
    %2844 = vmatprep.subr.bf16.mxu0 %v1873
    %2845 = vmatpush1.bf16.msra.mxu0 %v1872
    %2846 = vmatprep.subr.bf16.mxu0 %v1865
    %2847 = vmatpush1.bf16.msra.mxu0 %v1864
    %2848 = vmatprep.subr.bf16.mxu0 %v1857
    %2849 = vmatpush1.bf16.msra.mxu0 %v1856
    %2850 = vmatprep.subr.bf16.mxu0 %v1849
    %2851 = vmatpush1.bf16.msra.mxu0 %v1848
    %2852 = vmatprep.subr.bf16.mxu0 %v1841
    %2853 = vmatpush1.bf16.msra.mxu0 %v1840
    %2854 = vmatprep.subr.bf16.mxu0 %v1961
    %2855 = vmatpush2.bf16.msra.mxu0 %v1960
    %2856 = vmatprep.subr.bf16.mxu0 %v1953
    %2857 = vmatpush2.bf16.msra.mxu0 %v1952
    %2858 = vmatprep.subr.bf16.mxu0 %v1945
    %2859 = vmatpush2.bf16.msra.mxu0 %v1944
    %2860 = vmatprep.subr.bf16.mxu0 %v1937
    %2861 = vmatpush2.bf16.msra.mxu0 %v1936
    %2862 = vmatprep.subr.bf16.mxu0 %v1929
    %2863 = vmatpush2.bf16.msra.mxu0 %v1928
    %2864 = vmatprep.subr.bf16.mxu0 %v1921
    %2865 = vmatpush2.bf16.msra.mxu0 %v1920
    %2866 = vmatprep.subr.bf16.mxu0 %v1913
    %2867 = vmatpush2.bf16.msra.mxu0 %v1912
    %2868 = vmatprep.subr.bf16.mxu0 %v1905
    %2869 = vmatpush2.bf16.msra.mxu0 %v1904
    %2870 = vmatprep.mubr.bf16.mxu0 %v1567
    %2871 = vmatmul.mubr.bf16.gmra.mxu0 %v1566
    %v2872 = vpop.f32.mrf.mxu0
    %v2873 = vadd.f32 0.0, %v2872
    %v2874 = vpop.f32.mrf.mxu0
    %v2875 = vadd.f32 0.0, %v2874
    %v2876 = vpop.f32.mrf.mxu0
    %v2877 = vpop.f32.mrf.mxu0
    %2878 = vdwg.mxu0
    %2879 = vmatprep.subr.bf16.mxu0 %v2025
    %2880 = vmatpush1.bf16.msra.mxu0 %v2024
    %2881 = vmatprep.subr.bf16.mxu0 %v2017
    %2882 = vmatpush1.bf16.msra.mxu0 %v2016
    %2883 = vmatprep.subr.bf16.mxu0 %v2009
    %2884 = vmatpush1.bf16.msra.mxu0 %v2008
    %2885 = vmatprep.subr.bf16.mxu0 %v2001
    %2886 = vmatpush1.bf16.msra.mxu0 %v2000
    %2887 = vmatprep.subr.bf16.mxu0 %v1993
    %2888 = vmatpush1.bf16.msra.mxu0 %v1992
    %2889 = vmatprep.subr.bf16.mxu0 %v1985
    %2890 = vmatpush1.bf16.msra.mxu0 %v1984
    %2891 = vmatprep.subr.bf16.mxu0 %v1977
    %2892 = vmatpush1.bf16.msra.mxu0 %v1976
    %2893 = vmatprep.subr.bf16.mxu0 %v1969
    %2894 = vmatpush1.bf16.msra.mxu0 %v1968
    %2895 = vmatprep.subr.bf16.mxu0 %v2089
    %2896 = vmatpush2.bf16.msra.mxu0 %v2088
    %2897 = vmatprep.subr.bf16.mxu0 %v2081
    %2898 = vmatpush2.bf16.msra.mxu0 %v2080
    %2899 = vmatprep.subr.bf16.mxu0 %v2073
    %2900 = vmatpush2.bf16.msra.mxu0 %v2072
    %2901 = vmatprep.subr.bf16.mxu0 %v2065
    %2902 = vmatpush2.bf16.msra.mxu0 %v2064
    %2903 = vmatprep.subr.bf16.mxu0 %v2057
    %2904 = vmatpush2.bf16.msra.mxu0 %v2056
    %2905 = vmatprep.subr.bf16.mxu0 %v2049
    %2906 = vmatpush2.bf16.msra.mxu0 %v2048
    %2907 = vmatprep.subr.bf16.mxu0 %v2041
    %2908 = vmatpush2.bf16.msra.mxu0 %v2040
    %2909 = vmatprep.subr.bf16.mxu0 %v2033
    %2910 = vmatpush2.bf16.msra.mxu0 %v2032
    %2911 = vmatprep.mubr.bf16.mxu0 %v1569
    %2912 = vmatmul.mubr.bf16.gmra.mxu0 %v1568
    %v2913 = vpop.f32.mrf.mxu0
    %v2914 = vadd.f32 %v2873, %v2913
    %v2915 = vpop.f32.mrf.mxu0
    %v2916 = vadd.f32 %v2875, %v2915
    %v2917 = vpop.f32.mrf.mxu0
    %v2918 = vpop.f32.mrf.mxu0
    %2919 = vdwg.mxu0
    %2920 = vmatprep.subr.bf16.mxu0 %v2153
    %2921 = vmatpush1.bf16.msra.mxu0 %v2152
    %2922 = vmatprep.subr.bf16.mxu0 %v2145
    %2923 = vmatpush1.bf16.msra.mxu0 %v2144
    %2924 = vmatprep.subr.bf16.mxu0 %v2137
    %2925 = vmatpush1.bf16.msra.mxu0 %v2136
    %2926 = vmatprep.subr.bf16.mxu0 %v2129
    %2927 = vmatpush1.bf16.msra.mxu0 %v2128
    %2928 = vmatprep.subr.bf16.mxu0 %v2121
    %2929 = vmatpush1.bf16.msra.mxu0 %v2120
    %2930 = vmatprep.subr.bf16.mxu0 %v2113
    %2931 = vmatpush1.bf16.msra.mxu0 %v2112
    %2932 = vmatprep.subr.bf16.mxu0 %v2105
    %2933 = vmatpush1.bf16.msra.mxu0 %v2104
    %2934 = vmatprep.subr.bf16.mxu0 %v2097
    %2935 = vmatpush1.bf16.msra.mxu0 %v2096
    %2936 = vmatprep.subr.bf16.mxu0 %v2217
    %2937 = vmatpush2.bf16.msra.mxu0 %v2216
    %2938 = vmatprep.subr.bf16.mxu0 %v2209
    %2939 = vmatpush2.bf16.msra.mxu0 %v2208
    %2940 = vmatprep.subr.bf16.mxu0 %v2201
    %2941 = vmatpush2.bf16.msra.mxu0 %v2200
    %2942 = vmatprep.subr.bf16.mxu0 %v2193
    %2943 = vmatpush2.bf16.msra.mxu0 %v2192
    %2944 = vmatprep.subr.bf16.mxu0 %v2185
    %2945 = vmatpush2.bf16.msra.mxu0 %v2184
    %2946 = vmatprep.subr.bf16.mxu0 %v2177
    %2947 = vmatpush2.bf16.msra.mxu0 %v2176
    %2948 = vmatprep.subr.bf16.mxu0 %v2169
    %2949 = vmatpush2.bf16.msra.mxu0 %v2168
    %2950 = vmatprep.subr.bf16.mxu0 %v2161
    %2951 = vmatpush2.bf16.msra.mxu0 %v2160
    %2952 = vmatprep.mubr.bf16.mxu0 %v1571
    %2953 = vmatmul.mubr.bf16.gmra.mxu0 %v1570
    %v2954 = vpop.f32.mrf.mxu0
    %v2955 = vadd.f32 %v2914, %v2954
    %v2956 = vpop.f32.mrf.mxu0
    %v2957 = vadd.f32 %v2916, %v2956
    %v2958 = vpop.f32.mrf.mxu0
    %v2959 = vpop.f32.mrf.mxu0
    %2960 = vdwg.mxu0
    %2961 = vmatprep.subr.bf16.mxu0 %v2281
    %2962 = vmatpush1.bf16.msra.mxu0 %v2280
    %2963 = vmatprep.subr.bf16.mxu0 %v2273
    %2964 = vmatpush1.bf16.msra.mxu0 %v2272
    %2965 = vmatprep.subr.bf16.mxu0 %v2265
    %2966 = vmatpush1.bf16.msra.mxu0 %v2264
    %2967 = vmatprep.subr.bf16.mxu0 %v2257
    %2968 = vmatpush1.bf16.msra.mxu0 %v2256
    %2969 = vmatprep.subr.bf16.mxu0 %v2249
    %2970 = vmatpush1.bf16.msra.mxu0 %v2248
    %2971 = vmatprep.subr.bf16.mxu0 %v2241
    %2972 = vmatpush1.bf16.msra.mxu0 %v2240
    %2973 = vmatprep.subr.bf16.mxu0 %v2233
    %2974 = vmatpush1.bf16.msra.mxu0 %v2232
    %2975 = vmatprep.subr.bf16.mxu0 %v2225
    %2976 = vmatpush1.bf16.msra.mxu0 %v2224
    %2977 = vmatprep.subr.bf16.mxu0 %v2345
    %2978 = vmatpush2.bf16.msra.mxu0 %v2344
    %2979 = vmatprep.subr.bf16.mxu0 %v2337
    %2980 = vmatpush2.bf16.msra.mxu0 %v2336
    %2981 = vmatprep.subr.bf16.mxu0 %v2329
    %2982 = vmatpush2.bf16.msra.mxu0 %v2328
    %2983 = vmatprep.subr.bf16.mxu0 %v2321
    %2984 = vmatpush2.bf16.msra.mxu0 %v2320
    %2985 = vmatprep.subr.bf16.mxu0 %v2313
    %2986 = vmatpush2.bf16.msra.mxu0 %v2312
    %2987 = vmatprep.subr.bf16.mxu0 %v2305
    %2988 = vmatpush2.bf16.msra.mxu0 %v2304
    %2989 = vmatprep.subr.bf16.mxu0 %v2297
    %2990 = vmatpush2.bf16.msra.mxu0 %v2296
    %2991 = vmatprep.subr.bf16.mxu0 %v2289
    %2992 = vmatpush2.bf16.msra.mxu0 %v2288
    %2993 = vmatprep.mubr.bf16.mxu0 %v1573
    %2994 = vmatmul.mubr.bf16.gmra.mxu0 %v1572
    %v2995 = vpop.f32.mrf.mxu0
    %v2996 = vadd.f32 %v2955, %v2995
    %v2997 = vpop.f32.mrf.mxu0
    %v2998 = vadd.f32 %v2957, %v2997
    %v2999 = vpop.f32.mrf.mxu0
    %v3000 = vpop.f32.mrf.mxu0
    %3001 = vdwg.mxu0
    %v3002 = vld [vmem:[%s14] sm:$0xff]
    %v3004 = vlaneseq
    %v3005 = vshrl.u32 %v3004, 7
    %v3006 = vsub.s32 0, %v3005
    %v3007 = vrot.slane %v3002, %v3006
    %v3008 = vlaneseq
    %v3009 = vshrl.u32 %v3008, 7
    %v3010 = vsub.s32 1, %v3009
    %v3011 = vrot.slane %v3002, %v3010
    %v3012 = vlaneseq
    %v3013 = vshrl.u32 %v3012, 7
    %v3014 = vsub.s32 2, %v3013
    %v3015 = vrot.slane %v3002, %v3014
    %v3016 = vlaneseq
    %v3017 = vshrl.u32 %v3016, 7
    %v3018 = vsub.s32 3, %v3017
    %v3019 = vrot.slane %v3002, %v3018
    %v3020 = vlaneseq
    %v3021 = vshrl.u32 %v3020, 7
    %v3022 = vsub.s32 4, %v3021
    %v3023 = vrot.slane %v3002, %v3022
    %v3024 = vlaneseq
    %v3025 = vshrl.u32 %v3024, 7
    %v3026 = vsub.s32 5, %v3025
    %v3027 = vrot.slane %v3002, %v3026
    %v3028 = vlaneseq
    %v3029 = vshrl.u32 %v3028, 7
    %v3030 = vsub.s32 6, %v3029
    %v3031 = vrot.slane %v3002, %v3030
    %v3032 = vlaneseq
    %v3033 = vshrl.u32 %v3032, 7
    %v3034 = vsub.s32 7, %v3033
    %v3035 = vrot.slane %v3002, %v3034
    %v3044 = vmul.f32 %v2504, %v3007
    %v3045 = vmul.f32 %v2506, %v3011
    %v3046 = vmul.f32 %v2668, %v3015
    %v3047 = vmul.f32 %v2670, %v3019
    %v3048 = vmul.f32 %v2832, %v3023
    %v3049 = vmul.f32 %v2834, %v3027
    %v3050 = vmul.f32 %v2996, %v3031
    %v3051 = vmul.f32 %v2998, %v3035
    %v3052 = vld [vmem:[#allocation9] sm:$0xff]
    %v3054 = vlaneseq
    %v3055 = vshrl.u32 %v3054, 7
    %v3056 = vsub.s32 0, %v3055
    %v3057 = vrot.slane %v3052, %v3056
    %v3058 = vlaneseq
    %v3059 = vshrl.u32 %v3058, 7
    %v3060 = vsub.s32 1, %v3059
    %v3061 = vrot.slane %v3052, %v3060
    %v3062 = vlaneseq
    %v3063 = vshrl.u32 %v3062, 7
    %v3064 = vsub.s32 2, %v3063
    %v3065 = vrot.slane %v3052, %v3064
    %v3066 = vlaneseq
    %v3067 = vshrl.u32 %v3066, 7
    %v3068 = vsub.s32 3, %v3067
    %v3069 = vrot.slane %v3052, %v3068
    %v3070 = vlaneseq
    %v3071 = vshrl.u32 %v3070, 7
    %v3072 = vsub.s32 4, %v3071
    %v3073 = vrot.slane %v3052, %v3072
    %v3074 = vlaneseq
    %v3075 = vshrl.u32 %v3074, 7
    %v3076 = vsub.s32 5, %v3075
    %v3077 = vrot.slane %v3052, %v3076
    %v3078 = vlaneseq
    %v3079 = vshrl.u32 %v3078, 7
    %v3080 = vsub.s32 6, %v3079
    %v3081 = vrot.slane %v3052, %v3080
    %v3082 = vlaneseq
    %v3083 = vshrl.u32 %v3082, 7
    %v3084 = vsub.s32 7, %v3083
    %v3085 = vrot.slane %v3052, %v3084
    %v3094 = vadd.f32 %v3044, %v3057
    %v3095 = vadd.f32 %v3045, %v3061
    %v3096 = vadd.f32 %v3046, %v3065
    %v3097 = vadd.f32 %v3047, %v3069
    %v3098 = vadd.f32 %v3048, %v3073
    %v3099 = vadd.f32 %v3049, %v3077
    %v3100 = vadd.f32 %v3050, %v3081
    %v3101 = vadd.f32 %v3051, %v3085
    %v3102 = vmax.f32 %v3094, 0.0
    %v3103 = vmax.f32 %v3095, 0.0
    %v3104 = vmax.f32 %v3096, 0.0
    %v3105 = vmax.f32 %v3097, 0.0
    %v3106 = vmax.f32 %v3098, 0.0
    %v3107 = vmax.f32 %v3099, 0.0
    %v3108 = vmax.f32 %v3100, 0.0
    %v3109 = vmax.f32 %v3101, 0.0
    %v3110 = vpack.c.bf16 %v3102, %v3102
    %v3111 = vpack.c.bf16 %v3103, %v3103
    %v3112 = vpack.c.bf16 %v3104, %v3104
    %v3113 = vpack.c.bf16 %v3105, %v3105
    %v3114 = vpack.c.bf16 %v3106, %v3106
    %v3115 = vpack.c.bf16 %v3107, %v3107
    %v3116 = vpack.c.bf16 %v3108, %v3108
    %v3117 = vpack.c.bf16 %v3109, %v3109
    %v3118 = vld [vmem:[%s16] sm:$0xf]
    %v3119 = vld [vmem:[%s16 + $0x4] sm:$0xf]
    %v3120 = vld [vmem:[%s16 + $0x8] sm:$0xf]
    %v3121 = vld [vmem:[%s16 + $0xc] sm:$0xf]
    %v3122 = vld [vmem:[%s16 + $0x10] sm:$0xf]
    %v3123 = vld [vmem:[%s16 + $0x14] sm:$0xf]
    %v3124 = vld [vmem:[%s16 + $0x18] sm:$0xf]
    %v3125 = vld [vmem:[%s16 + $0x1c] sm:$0xf]
    %v3126 = vld [vmem:[%s16 + $0x20] sm:$0xf]
    %v3127 = vld [vmem:[%s16 + $0x24] sm:$0xf]
    %v3128 = vld [vmem:[%s16 + $0x28] sm:$0xf]
    %v3129 = vld [vmem:[%s16 + $0x2c] sm:$0xf]
    %v3130 = vld [vmem:[%s16 + $0x30] sm:$0xf]
    %v3131 = vld [vmem:[%s16 + $0x34] sm:$0xf]
    %v3132 = vld [vmem:[%s16 + $0x38] sm:$0xf]
    %v3133 = vld [vmem:[%s16 + $0x3c] sm:$0xf]
    %v3134 = vld [vmem:[%s16 + $0x40] sm:$0xf]
    %v3135 = vld [vmem:[%s16 + $0x44] sm:$0xf]
    %v3136 = vld [vmem:[%s16 + $0x48] sm:$0xf]
    %v3137 = vld [vmem:[%s16 + $0x4c] sm:$0xf]
    %v3138 = vld [vmem:[%s16 + $0x50] sm:$0xf]
    %v3139 = vld [vmem:[%s16 + $0x54] sm:$0xf]
    %v3140 = vld [vmem:[%s16 + $0x58] sm:$0xf]
    %v3141 = vld [vmem:[%s16 + $0x5c] sm:$0xf]
    %v3142 = vld [vmem:[%s16 + $0x60] sm:$0xf]
    %v3143 = vld [vmem:[%s16 + $0x64] sm:$0xf]
    %v3144 = vld [vmem:[%s16 + $0x68] sm:$0xf]
    %v3145 = vld [vmem:[%s16 + $0x6c] sm:$0xf]
    %v3146 = vld [vmem:[%s16 + $0x70] sm:$0xf]
    %v3147 = vld [vmem:[%s16 + $0x74] sm:$0xf]
    %v3148 = vld [vmem:[%s16 + $0x78] sm:$0xf]
    %v3149 = vld [vmem:[%s16 + $0x7c] sm:$0xf]
    %v3150 = vld [vmem:[%s16 + $0x80] sm:$0xf]
    %v3151 = vld [vmem:[%s16 + $0x84] sm:$0xf]
    %v3152 = vld [vmem:[%s16 + $0x88] sm:$0xf]
    %v3153 = vld [vmem:[%s16 + $0x8c] sm:$0xf]
    %v3154 = vld [vmem:[%s16 + $0x90] sm:$0xf]
    %v3155 = vld [vmem:[%s16 + $0x94] sm:$0xf]
    %v3156 = vld [vmem:[%s16 + $0x98] sm:$0xf]
    %v3157 = vld [vmem:[%s16 + $0x9c] sm:$0xf]
    %v3158 = vld [vmem:[%s16 + $0xa0] sm:$0xf]
    %v3159 = vld [vmem:[%s16 + $0xa4] sm:$0xf]
    %v3160 = vld [vmem:[%s16 + $0xa8] sm:$0xf]
    %v3161 = vld [vmem:[%s16 + $0xac] sm:$0xf]
    %v3162 = vld [vmem:[%s16 + $0xb0] sm:$0xf]
    %v3163 = vld [vmem:[%s16 + $0xb4] sm:$0xf]
    %v3164 = vld [vmem:[%s16 + $0xb8] sm:$0xf]
    %v3165 = vld [vmem:[%s16 + $0xbc] sm:$0xf]
    %v3166 = vld [vmem:[%s16 + $0xc0] sm:$0xf]
    %v3167 = vld [vmem:[%s16 + $0xc4] sm:$0xf]
    %v3168 = vld [vmem:[%s16 + $0xc8] sm:$0xf]
    %v3169 = vld [vmem:[%s16 + $0xcc] sm:$0xf]
    %v3170 = vld [vmem:[%s16 + $0xd0] sm:$0xf]
    %v3171 = vld [vmem:[%s16 + $0xd4] sm:$0xf]
    %v3172 = vld [vmem:[%s16 + $0xd8] sm:$0xf]
    %v3173 = vld [vmem:[%s16 + $0xdc] sm:$0xf]
    %v3174 = vld [vmem:[%s16 + $0xe0] sm:$0xf]
    %v3175 = vld [vmem:[%s16 + $0xe4] sm:$0xf]
    %v3176 = vld [vmem:[%s16 + $0xe8] sm:$0xf]
    %v3177 = vld [vmem:[%s16 + $0xec] sm:$0xf]
    %v3178 = vld [vmem:[%s16 + $0xf0] sm:$0xf]
    %v3179 = vld [vmem:[%s16 + $0xf4] sm:$0xf]
    %v3180 = vld [vmem:[%s16 + $0xf8] sm:$0xf]
    %v3181 = vld [vmem:[%s16 + $0xfc] sm:$0xf]
    %v3182 = vld [vmem:[%s16 + $0x100] sm:$0xf]
    %v3183 = vld [vmem:[%s16 + $0x104] sm:$0xf]
    %v3184 = vld [vmem:[%s16 + $0x108] sm:$0xf]
    %v3185 = vld [vmem:[%s16 + $0x10c] sm:$0xf]
    %v3186 = vld [vmem:[%s16 + $0x110] sm:$0xf]
    %v3187 = vld [vmem:[%s16 + $0x114] sm:$0xf]
    %v3188 = vld [vmem:[%s16 + $0x118] sm:$0xf]
    %v3189 = vld [vmem:[%s16 + $0x11c] sm:$0xf]
    %v3190 = vld [vmem:[%s16 + $0x120] sm:$0xf]
    %v3191 = vld [vmem:[%s16 + $0x124] sm:$0xf]
    %v3192 = vld [vmem:[%s16 + $0x128] sm:$0xf]
    %v3193 = vld [vmem:[%s16 + $0x12c] sm:$0xf]
    %v3194 = vld [vmem:[%s16 + $0x130] sm:$0xf]
    %v3195 = vld [vmem:[%s16 + $0x134] sm:$0xf]
    %v3196 = vld [vmem:[%s16 + $0x138] sm:$0xf]
    %v3197 = vld [vmem:[%s16 + $0x13c] sm:$0xf]
    %v3198 = vld [vmem:[%s16 + $0x140] sm:$0xf]
    %v3199 = vld [vmem:[%s16 + $0x144] sm:$0xf]
    %v3200 = vld [vmem:[%s16 + $0x148] sm:$0xf]
    %v3201 = vld [vmem:[%s16 + $0x14c] sm:$0xf]
    %v3202 = vld [vmem:[%s16 + $0x150] sm:$0xf]
    %v3203 = vld [vmem:[%s16 + $0x154] sm:$0xf]
    %v3204 = vld [vmem:[%s16 + $0x158] sm:$0xf]
    %v3205 = vld [vmem:[%s16 + $0x15c] sm:$0xf]
    %v3206 = vld [vmem:[%s16 + $0x160] sm:$0xf]
    %v3207 = vld [vmem:[%s16 + $0x164] sm:$0xf]
    %v3208 = vld [vmem:[%s16 + $0x168] sm:$0xf]
    %v3209 = vld [vmem:[%s16 + $0x16c] sm:$0xf]
    %v3210 = vld [vmem:[%s16 + $0x170] sm:$0xf]
    %v3211 = vld [vmem:[%s16 + $0x174] sm:$0xf]
    %v3212 = vld [vmem:[%s16 + $0x178] sm:$0xf]
    %v3213 = vld [vmem:[%s16 + $0x17c] sm:$0xf]
    %v3214 = vld [vmem:[%s16 + $0x180] sm:$0xf]
    %v3215 = vld [vmem:[%s16 + $0x184] sm:$0xf]
    %v3216 = vld [vmem:[%s16 + $0x188] sm:$0xf]
    %v3217 = vld [vmem:[%s16 + $0x18c] sm:$0xf]
    %v3218 = vld [vmem:[%s16 + $0x190] sm:$0xf]
    %v3219 = vld [vmem:[%s16 + $0x194] sm:$0xf]
    %v3220 = vld [vmem:[%s16 + $0x198] sm:$0xf]
    %v3221 = vld [vmem:[%s16 + $0x19c] sm:$0xf]
    %v3222 = vld [vmem:[%s16 + $0x1a0] sm:$0xf]
    %v3223 = vld [vmem:[%s16 + $0x1a4] sm:$0xf]
    %v3224 = vld [vmem:[%s16 + $0x1a8] sm:$0xf]
    %v3225 = vld [vmem:[%s16 + $0x1ac] sm:$0xf]
    %v3226 = vld [vmem:[%s16 + $0x1b0] sm:$0xf]
    %v3227 = vld [vmem:[%s16 + $0x1b4] sm:$0xf]
    %v3228 = vld [vmem:[%s16 + $0x1b8] sm:$0xf]
    %v3229 = vld [vmem:[%s16 + $0x1bc] sm:$0xf]
    %v3230 = vld [vmem:[%s16 + $0x1c0] sm:$0xf]
    %v3231 = vld [vmem:[%s16 + $0x1c4] sm:$0xf]
    %v3232 = vld [vmem:[%s16 + $0x1c8] sm:$0xf]
    %v3233 = vld [vmem:[%s16 + $0x1cc] sm:$0xf]
    %v3234 = vld [vmem:[%s16 + $0x1d0] sm:$0xf]
    %v3235 = vld [vmem:[%s16 + $0x1d4] sm:$0xf]
    %v3236 = vld [vmem:[%s16 + $0x1d8] sm:$0xf]
    %v3237 = vld [vmem:[%s16 + $0x1dc] sm:$0xf]
    %v3238 = vld [vmem:[%s16 + $0x1e0] sm:$0xf]
    %v3239 = vld [vmem:[%s16 + $0x1e4] sm:$0xf]
    %v3240 = vld [vmem:[%s16 + $0x1e8] sm:$0xf]
    %v3241 = vld [vmem:[%s16 + $0x1ec] sm:$0xf]
    %v3242 = vld [vmem:[%s16 + $0x1f0] sm:$0xf]
    %v3243 = vld [vmem:[%s16 + $0x1f4] sm:$0xf]
    %v3244 = vld [vmem:[%s16 + $0x1f8] sm:$0xf]
    %v3245 = vld [vmem:[%s16 + $0x1fc] sm:$0xf]
    %v3246 = vld [vmem:[%s17] sm:$0x1]
    %v3248 = vlaneseq
    %v3249 = vshrl.u32 %v3248, 7
    %v3250 = vsub.s32 0, %v3249
    %v3251 = vrot.slane %v3246, %v3250
    %v3381 = vunpack.c.l.b16 %v3118
    %v3382 = vunpack.c.l.b16 %v3119
    %v3383 = vunpack.c.l.b16 %v3120
    %v3384 = vunpack.c.l.b16 %v3121
    %v3385 = vunpack.c.l.b16 %v3122
    %v3386 = vunpack.c.l.b16 %v3123
    %v3387 = vunpack.c.l.b16 %v3124
    %v3388 = vunpack.c.l.b16 %v3125
    %v3389 = vunpack.c.l.b16 %v3126
    %v3390 = vunpack.c.l.b16 %v3127
    %v3391 = vunpack.c.l.b16 %v3128
    %v3392 = vunpack.c.l.b16 %v3129
    %v3393 = vunpack.c.l.b16 %v3130
    %v3394 = vunpack.c.l.b16 %v3131
    %v3395 = vunpack.c.l.b16 %v3132
    %v3396 = vunpack.c.l.b16 %v3133
    %v3397 = vunpack.c.l.b16 %v3134
    %v3398 = vunpack.c.l.b16 %v3135
    %v3399 = vunpack.c.l.b16 %v3136
    %v3400 = vunpack.c.l.b16 %v3137
    %v3401 = vunpack.c.l.b16 %v3138
    %v3402 = vunpack.c.l.b16 %v3139
    %v3403 = vunpack.c.l.b16 %v3140
    %v3404 = vunpack.c.l.b16 %v3141
    %v3405 = vunpack.c.l.b16 %v3142
    %v3406 = vunpack.c.l.b16 %v3143
    %v3407 = vunpack.c.l.b16 %v3144
    %v3408 = vunpack.c.l.b16 %v3145
    %v3409 = vunpack.c.l.b16 %v3146
    %v3410 = vunpack.c.l.b16 %v3147
    %v3411 = vunpack.c.l.b16 %v3148
    %v3412 = vunpack.c.l.b16 %v3149
    %v3413 = vunpack.c.l.b16 %v3150
    %v3414 = vunpack.c.l.b16 %v3151
    %v3415 = vunpack.c.l.b16 %v3152
    %v3416 = vunpack.c.l.b16 %v3153
    %v3417 = vunpack.c.l.b16 %v3154
    %v3418 = vunpack.c.l.b16 %v3155
    %v3419 = vunpack.c.l.b16 %v3156
    %v3420 = vunpack.c.l.b16 %v3157
    %v3421 = vunpack.c.l.b16 %v3158
    %v3422 = vunpack.c.l.b16 %v3159
    %v3423 = vunpack.c.l.b16 %v3160
    %v3424 = vunpack.c.l.b16 %v3161
    %v3425 = vunpack.c.l.b16 %v3162
    %v3426 = vunpack.c.l.b16 %v3163
    %v3427 = vunpack.c.l.b16 %v3164
    %v3428 = vunpack.c.l.b16 %v3165
    %v3429 = vunpack.c.l.b16 %v3166
    %v3430 = vunpack.c.l.b16 %v3167
    %v3431 = vunpack.c.l.b16 %v3168
    %v3432 = vunpack.c.l.b16 %v3169
    %v3433 = vunpack.c.l.b16 %v3170
    %v3434 = vunpack.c.l.b16 %v3171
    %v3435 = vunpack.c.l.b16 %v3172
    %v3436 = vunpack.c.l.b16 %v3173
    %v3437 = vunpack.c.l.b16 %v3174
    %v3438 = vunpack.c.l.b16 %v3175
    %v3439 = vunpack.c.l.b16 %v3176
    %v3440 = vunpack.c.l.b16 %v3177
    %v3441 = vunpack.c.l.b16 %v3178
    %v3442 = vunpack.c.l.b16 %v3179
    %v3443 = vunpack.c.l.b16 %v3180
    %v3444 = vunpack.c.l.b16 %v3181
    %v3445 = vunpack.c.l.b16 %v3182
    %v3446 = vunpack.c.l.b16 %v3183
    %v3447 = vunpack.c.l.b16 %v3184
    %v3448 = vunpack.c.l.b16 %v3185
    %v3449 = vunpack.c.l.b16 %v3186
    %v3450 = vunpack.c.l.b16 %v3187
    %v3451 = vunpack.c.l.b16 %v3188
    %v3452 = vunpack.c.l.b16 %v3189
    %v3453 = vunpack.c.l.b16 %v3190
    %v3454 = vunpack.c.l.b16 %v3191
    %v3455 = vunpack.c.l.b16 %v3192
    %v3456 = vunpack.c.l.b16 %v3193
    %v3457 = vunpack.c.l.b16 %v3194
    %v3458 = vunpack.c.l.b16 %v3195
    %v3459 = vunpack.c.l.b16 %v3196
    %v3460 = vunpack.c.l.b16 %v3197
    %v3461 = vunpack.c.l.b16 %v3198
    %v3462 = vunpack.c.l.b16 %v3199
    %v3463 = vunpack.c.l.b16 %v3200
    %v3464 = vunpack.c.l.b16 %v3201
    %v3465 = vunpack.c.l.b16 %v3202
    %v3466 = vunpack.c.l.b16 %v3203
    %v3467 = vunpack.c.l.b16 %v3204
    %v3468 = vunpack.c.l.b16 %v3205
    %v3469 = vunpack.c.l.b16 %v3206
    %v3470 = vunpack.c.l.b16 %v3207
    %v3471 = vunpack.c.l.b16 %v3208
    %v3472 = vunpack.c.l.b16 %v3209
    %v3473 = vunpack.c.l.b16 %v3210
    %v3474 = vunpack.c.l.b16 %v3211
    %v3475 = vunpack.c.l.b16 %v3212
    %v3476 = vunpack.c.l.b16 %v3213
    %v3477 = vunpack.c.l.b16 %v3214
    %v3478 = vunpack.c.l.b16 %v3215
    %v3479 = vunpack.c.l.b16 %v3216
    %v3480 = vunpack.c.l.b16 %v3217
    %v3481 = vunpack.c.l.b16 %v3218
    %v3482 = vunpack.c.l.b16 %v3219
    %v3483 = vunpack.c.l.b16 %v3220
    %v3484 = vunpack.c.l.b16 %v3221
    %v3485 = vunpack.c.l.b16 %v3222
    %v3486 = vunpack.c.l.b16 %v3223
    %v3487 = vunpack.c.l.b16 %v3224
    %v3488 = vunpack.c.l.b16 %v3225
    %v3489 = vunpack.c.l.b16 %v3226
    %v3490 = vunpack.c.l.b16 %v3227
    %v3491 = vunpack.c.l.b16 %v3228
    %v3492 = vunpack.c.l.b16 %v3229
    %v3493 = vunpack.c.l.b16 %v3230
    %v3494 = vunpack.c.l.b16 %v3231
    %v3495 = vunpack.c.l.b16 %v3232
    %v3496 = vunpack.c.l.b16 %v3233
    %v3497 = vunpack.c.l.b16 %v3234
    %v3498 = vunpack.c.l.b16 %v3235
    %v3499 = vunpack.c.l.b16 %v3236
    %v3500 = vunpack.c.l.b16 %v3237
    %v3501 = vunpack.c.l.b16 %v3238
    %v3502 = vunpack.c.l.b16 %v3239
    %v3503 = vunpack.c.l.b16 %v3240
    %v3504 = vunpack.c.l.b16 %v3241
    %v3505 = vunpack.c.l.b16 %v3242
    %v3506 = vunpack.c.l.b16 %v3243
    %v3507 = vunpack.c.l.b16 %v3244
    %v3508 = vunpack.c.l.b16 %v3245
    %v3509 = vpack.c.b16 %v3382, %v3381
    %v3510 = vpack.c.b16 %v3384, %v3383
    %v3511 = vpack.c.b16 %v3386, %v3385
    %v3512 = vpack.c.b16 %v3388, %v3387
    %v3513 = vpack.c.b16 %v3390, %v3389
    %v3514 = vpack.c.b16 %v3392, %v3391
    %v3515 = vpack.c.b16 %v3394, %v3393
    %v3516 = vpack.c.b16 %v3396, %v3395
    %v3517 = vpack.c.b16 %v3398, %v3397
    %v3518 = vpack.c.b16 %v3400, %v3399
    %v3519 = vpack.c.b16 %v3402, %v3401
    %v3520 = vpack.c.b16 %v3404, %v3403
    %v3521 = vpack.c.b16 %v3406, %v3405
    %v3522 = vpack.c.b16 %v3408, %v3407
    %v3523 = vpack.c.b16 %v3410, %v3409
    %v3524 = vpack.c.b16 %v3412, %v3411
    %v3525 = vpack.c.b16 %v3414, %v3413
    %v3526 = vpack.c.b16 %v3416, %v3415
    %v3527 = vpack.c.b16 %v3418, %v3417
    %v3528 = vpack.c.b16 %v3420, %v3419
    %v3529 = vpack.c.b16 %v3422, %v3421
    %v3530 = vpack.c.b16 %v3424, %v3423
    %v3531 = vpack.c.b16 %v3426, %v3425
    %v3532 = vpack.c.b16 %v3428, %v3427
    %v3533 = vpack.c.b16 %v3430, %v3429
    %v3534 = vpack.c.b16 %v3432, %v3431
    %v3535 = vpack.c.b16 %v3434, %v3433
    %v3536 = vpack.c.b16 %v3436, %v3435
    %v3537 = vpack.c.b16 %v3438, %v3437
    %v3538 = vpack.c.b16 %v3440, %v3439
    %v3539 = vpack.c.b16 %v3442, %v3441
    %v3540 = vpack.c.b16 %v3444, %v3443
    %v3541 = vpack.c.b16 %v3446, %v3445
    %v3542 = vpack.c.b16 %v3448, %v3447
    %v3543 = vpack.c.b16 %v3450, %v3449
    %v3544 = vpack.c.b16 %v3452, %v3451
    %v3545 = vpack.c.b16 %v3454, %v3453
    %v3546 = vpack.c.b16 %v3456, %v3455
    %v3547 = vpack.c.b16 %v3458, %v3457
    %v3548 = vpack.c.b16 %v3460, %v3459
    %v3549 = vpack.c.b16 %v3462, %v3461
    %v3550 = vpack.c.b16 %v3464, %v3463
    %v3551 = vpack.c.b16 %v3466, %v3465
    %v3552 = vpack.c.b16 %v3468, %v3467
    %v3553 = vpack.c.b16 %v3470, %v3469
    %v3554 = vpack.c.b16 %v3472, %v3471
    %v3555 = vpack.c.b16 %v3474, %v3473
    %v3556 = vpack.c.b16 %v3476, %v3475
    %v3557 = vpack.c.b16 %v3478, %v3477
    %v3558 = vpack.c.b16 %v3480, %v3479
    %v3559 = vpack.c.b16 %v3482, %v3481
    %v3560 = vpack.c.b16 %v3484, %v3483
    %v3561 = vpack.c.b16 %v3486, %v3485
    %v3562 = vpack.c.b16 %v3488, %v3487
    %v3563 = vpack.c.b16 %v3490, %v3489
    %v3564 = vpack.c.b16 %v3492, %v3491
    %v3565 = vpack.c.b16 %v3494, %v3493
    %v3566 = vpack.c.b16 %v3496, %v3495
    %v3567 = vpack.c.b16 %v3498, %v3497
    %v3568 = vpack.c.b16 %v3500, %v3499
    %v3569 = vpack.c.b16 %v3502, %v3501
    %v3570 = vpack.c.b16 %v3504, %v3503
    %v3571 = vpack.c.b16 %v3506, %v3505
    %v3572 = vpack.c.b16 %v3508, %v3507
    %3637 = vmatprep.subr.bf16.mxu0 0
    %3638 = vmatpush1.bf16.msra.mxu0 %v3516
    %3639 = vmatprep.subr.bf16.mxu0 0
    %3640 = vmatpush1.bf16.msra.mxu0 %v3515
    %3641 = vmatprep.subr.bf16.mxu0 0
    %3642 = vmatpush1.bf16.msra.mxu0 %v3514
    %3643 = vmatprep.subr.bf16.mxu0 0
    %3644 = vmatpush1.bf16.msra.mxu0 %v3513
    %3645 = vmatprep.subr.bf16.mxu0 0
    %3646 = vmatpush1.bf16.msra.mxu0 %v3512
    %3647 = vmatprep.subr.bf16.mxu0 0
    %3648 = vmatpush1.bf16.msra.mxu0 %v3511
    %3649 = vmatprep.subr.bf16.mxu0 0
    %3650 = vmatpush1.bf16.msra.mxu0 %v3510
    %3651 = vmatprep.subr.bf16.mxu0 0
    %3652 = vmatpush1.bf16.msra.mxu0 %v3509
    %3653 = vmatprep.subr.bf16.mxu0 0
    %3654 = vmatpush2.bf16.msra.mxu0 %v3524
    %3655 = vmatprep.subr.bf16.mxu0 0
    %3656 = vmatpush2.bf16.msra.mxu0 %v3523
    %3657 = vmatprep.subr.bf16.mxu0 0
    %3658 = vmatpush2.bf16.msra.mxu0 %v3522
    %3659 = vmatprep.subr.bf16.mxu0 0
    %3660 = vmatpush2.bf16.msra.mxu0 %v3521
    %3661 = vmatprep.subr.bf16.mxu0 0
    %3662 = vmatpush2.bf16.msra.mxu0 %v3520
    %3663 = vmatprep.subr.bf16.mxu0 0
    %3664 = vmatpush2.bf16.msra.mxu0 %v3519
    %3665 = vmatprep.subr.bf16.mxu0 0
    %3666 = vmatpush2.bf16.msra.mxu0 %v3518
    %3667 = vmatprep.subr.bf16.mxu0 0
    %3668 = vmatpush2.bf16.msra.mxu0 %v3517
    %3669 = vmatprep.mubr.bf16.mxu0 %v3111
    %3670 = vmatmul.mubr.bf16.gmra.mxu0 %v3110
    %v3671 = vpop.f32.mrf.mxu0
    %v3672 = vadd.f32 %v3251, %v3671
    %v3673 = vpop.f32.mrf.mxu0
    %v3674 = vpop.f32.mrf.mxu0
    %v3675 = vpop.f32.mrf.mxu0
    %3676 = vdwg.mxu0
    %3677 = vmatprep.subr.bf16.mxu0 0
    %3678 = vmatpush1.bf16.msra.mxu0 %v3532
    %3679 = vmatprep.subr.bf16.mxu0 0
    %3680 = vmatpush1.bf16.msra.mxu0 %v3531
    %3681 = vmatprep.subr.bf16.mxu0 0
    %3682 = vmatpush1.bf16.msra.mxu0 %v3530
    %3683 = vmatprep.subr.bf16.mxu0 0
    %3684 = vmatpush1.bf16.msra.mxu0 %v3529
    %3685 = vmatprep.subr.bf16.mxu0 0
    %3686 = vmatpush1.bf16.msra.mxu0 %v3528
    %3687 = vmatprep.subr.bf16.mxu0 0
    %3688 = vmatpush1.bf16.msra.mxu0 %v3527
    %3689 = vmatprep.subr.bf16.mxu0 0
    %3690 = vmatpush1.bf16.msra.mxu0 %v3526
    %3691 = vmatprep.subr.bf16.mxu0 0
    %3692 = vmatpush1.bf16.msra.mxu0 %v3525
    %3693 = vmatprep.subr.bf16.mxu0 0
    %3694 = vmatpush2.bf16.msra.mxu0 %v3540
    %3695 = vmatprep.subr.bf16.mxu0 0
    %3696 = vmatpush2.bf16.msra.mxu0 %v3539
    %3697 = vmatprep.subr.bf16.mxu0 0
    %3698 = vmatpush2.bf16.msra.mxu0 %v3538
    %3699 = vmatprep.subr.bf16.mxu0 0
    %3700 = vmatpush2.bf16.msra.mxu0 %v3537
    %3701 = vmatprep.subr.bf16.mxu0 0
    %3702 = vmatpush2.bf16.msra.mxu0 %v3536
    %3703 = vmatprep.subr.bf16.mxu0 0
    %3704 = vmatpush2.bf16.msra.mxu0 %v3535
    %3705 = vmatprep.subr.bf16.mxu0 0
    %3706 = vmatpush2.bf16.msra.mxu0 %v3534
    %3707 = vmatprep.subr.bf16.mxu0 0
    %3708 = vmatpush2.bf16.msra.mxu0 %v3533
    %3709 = vmatprep.mubr.bf16.mxu0 %v3113
    %3710 = vmatmul.mubr.bf16.gmra.mxu0 %v3112
    %v3711 = vpop.f32.mrf.mxu0
    %v3712 = vadd.f32 %v3672, %v3711
    %v3713 = vpop.f32.mrf.mxu0
    %v3714 = vpop.f32.mrf.mxu0
    %v3715 = vpop.f32.mrf.mxu0
    %3716 = vdwg.mxu0
    %3717 = vmatprep.subr.bf16.mxu0 0
    %3718 = vmatpush1.bf16.msra.mxu0 %v3548
    %3719 = vmatprep.subr.bf16.mxu0 0
    %3720 = vmatpush1.bf16.msra.mxu0 %v3547
    %3721 = vmatprep.subr.bf16.mxu0 0
    %3722 = vmatpush1.bf16.msra.mxu0 %v3546
    %3723 = vmatprep.subr.bf16.mxu0 0
    %3724 = vmatpush1.bf16.msra.mxu0 %v3545
    %3725 = vmatprep.subr.bf16.mxu0 0
    %3726 = vmatpush1.bf16.msra.mxu0 %v3544
    %3727 = vmatprep.subr.bf16.mxu0 0
    %3728 = vmatpush1.bf16.msra.mxu0 %v3543
    %3729 = vmatprep.subr.bf16.mxu0 0
    %3730 = vmatpush1.bf16.msra.mxu0 %v3542
    %3731 = vmatprep.subr.bf16.mxu0 0
    %3732 = vmatpush1.bf16.msra.mxu0 %v3541
    %3733 = vmatprep.subr.bf16.mxu0 0
    %3734 = vmatpush2.bf16.msra.mxu0 %v3556
    %3735 = vmatprep.subr.bf16.mxu0 0
    %3736 = vmatpush2.bf16.msra.mxu0 %v3555
    %3737 = vmatprep.subr.bf16.mxu0 0
    %3738 = vmatpush2.bf16.msra.mxu0 %v3554
    %3739 = vmatprep.subr.bf16.mxu0 0
    %3740 = vmatpush2.bf16.msra.mxu0 %v3553
    %3741 = vmatprep.subr.bf16.mxu0 0
    %3742 = vmatpush2.bf16.msra.mxu0 %v3552
    %3743 = vmatprep.subr.bf16.mxu0 0
    %3744 = vmatpush2.bf16.msra.mxu0 %v3551
    %3745 = vmatprep.subr.bf16.mxu0 0
    %3746 = vmatpush2.bf16.msra.mxu0 %v3550
    %3747 = vmatprep.subr.bf16.mxu0 0
    %3748 = vmatpush2.bf16.msra.mxu0 %v3549
    %3749 = vmatprep.mubr.bf16.mxu0 %v3115
    %3750 = vmatmul.mubr.bf16.gmra.mxu0 %v3114
    %v3751 = vpop.f32.mrf.mxu0
    %v3752 = vadd.f32 %v3712, %v3751
    %v3753 = vpop.f32.mrf.mxu0
    %v3754 = vpop.f32.mrf.mxu0
    %v3755 = vpop.f32.mrf.mxu0
    %3756 = vdwg.mxu0
    %3757 = vmatprep.subr.bf16.mxu0 0
    %3758 = vmatpush1.bf16.msra.mxu0 %v3564
    %3759 = vmatprep.subr.bf16.mxu0 0
    %3760 = vmatpush1.bf16.msra.mxu0 %v3563
    %3761 = vmatprep.subr.bf16.mxu0 0
    %3762 = vmatpush1.bf16.msra.mxu0 %v3562
    %3763 = vmatprep.subr.bf16.mxu0 0
    %3764 = vmatpush1.bf16.msra.mxu0 %v3561
    %3765 = vmatprep.subr.bf16.mxu0 0
    %3766 = vmatpush1.bf16.msra.mxu0 %v3560
    %3767 = vmatprep.subr.bf16.mxu0 0
    %3768 = vmatpush1.bf16.msra.mxu0 %v3559
    %3769 = vmatprep.subr.bf16.mxu0 0
    %3770 = vmatpush1.bf16.msra.mxu0 %v3558
    %3771 = vmatprep.subr.bf16.mxu0 0
    %3772 = vmatpush1.bf16.msra.mxu0 %v3557
    %3773 = vmatprep.subr.bf16.mxu0 0
    %3774 = vmatpush2.bf16.msra.mxu0 %v3572
    %3775 = vmatprep.subr.bf16.mxu0 0
    %3776 = vmatpush2.bf16.msra.mxu0 %v3571
    %3777 = vmatprep.subr.bf16.mxu0 0
    %3778 = vmatpush2.bf16.msra.mxu0 %v3570
    %3779 = vmatprep.subr.bf16.mxu0 0
    %3780 = vmatpush2.bf16.msra.mxu0 %v3569
    %3781 = vmatprep.subr.bf16.mxu0 0
    %3782 = vmatpush2.bf16.msra.mxu0 %v3568
    %3783 = vmatprep.subr.bf16.mxu0 0
    %3784 = vmatpush2.bf16.msra.mxu0 %v3567
    %3785 = vmatprep.subr.bf16.mxu0 0
    %3786 = vmatpush2.bf16.msra.mxu0 %v3566
    %3787 = vmatprep.subr.bf16.mxu0 0
    %3788 = vmatpush2.bf16.msra.mxu0 %v3565
    %3789 = vmatprep.mubr.bf16.mxu0 %v3117
    %3790 = vmatmul.mubr.bf16.gmra.mxu0 %v3116
    %v3791 = vpop.f32.mrf.mxu0
    %v3792 = vadd.f32 %v3752, %v3791
    %v3793 = vpop.f32.mrf.mxu0
    %v3794 = vpop.f32.mrf.mxu0
    %v3795 = vpop.f32.mrf.mxu0
    %3796 = vdwg.mxu0
    %v3797 = vmax.f32 %v3792, 0.0
    %v3798 = vpack.c.bf16 %v3797, %v3797
    %v3799 = vld [vmem:[%s18] sm:$0xf]
    %v3800 = vld [vmem:[%s18 + $0x4] sm:$0xf]
    %v3801 = vld [vmem:[%s18 + $0x8] sm:$0xf]
    %v3802 = vld [vmem:[%s18 + $0xc] sm:$0xf]
    %v3803 = vld [vmem:[%s18 + $0x10] sm:$0xf]
    %v3804 = vld [vmem:[%s18 + $0x14] sm:$0xf]
    %v3805 = vld [vmem:[%s18 + $0x18] sm:$0xf]
    %v3806 = vld [vmem:[%s18 + $0x1c] sm:$0xf]
    %v3807 = vld [vmem:[#allocation10] sm:$0x1]
    %v3809 = vlaneseq
    %v3810 = vshrl.u32 %v3809, 7
    %v3811 = vsub.s32 0, %v3810
    %v3812 = vrot.slane %v3807, %v3811
    %v3822 = vunpack.c.l.b16 %v3799
    %v3823 = vunpack.c.l.b16 %v3800
    %v3824 = vunpack.c.l.b16 %v3801
    %v3825 = vunpack.c.l.b16 %v3802
    %v3826 = vunpack.c.l.b16 %v3803
    %v3827 = vunpack.c.l.b16 %v3804
    %v3828 = vunpack.c.l.b16 %v3805
    %v3829 = vunpack.c.l.b16 %v3806
    %v3830 = vpack.c.b16 %v3823, %v3822
    %v3831 = vpack.c.b16 %v3825, %v3824
    %v3832 = vpack.c.b16 %v3827, %v3826
    %v3833 = vpack.c.b16 %v3829, %v3828
    %v3839 = vsel %vm1390, %v3798, 0
    %3841 = vmatprep.subr.bf16.mxu0 0
    %3842 = vmatpush1.bf16.msra.mxu0 0
    %3843 = vmatprep.subr.bf16.mxu0 0
    %3844 = vmatpush1.bf16.msra.mxu0 0
    %3845 = vmatprep.subr.bf16.mxu0 0
    %3846 = vmatpush1.bf16.msra.mxu0 0
    %3847 = vmatprep.subr.bf16.mxu0 0
    %3848 = vmatpush1.bf16.msra.mxu0 0
    %3849 = vmatprep.subr.bf16.mxu0 0
    %3850 = vmatpush1.bf16.msra.mxu0 %v3833
    %3851 = vmatprep.subr.bf16.mxu0 0
    %3852 = vmatpush1.bf16.msra.mxu0 %v3832
    %3853 = vmatprep.subr.bf16.mxu0 0
    %3854 = vmatpush1.bf16.msra.mxu0 %v3831
    %3855 = vmatprep.subr.bf16.mxu0 0
    %3856 = vmatpush1.bf16.msra.mxu0 %v3830
    %3857 = vmatprep.subr.bf16.mxu0 0
    %3858 = vmatpush2.bf16.msra.mxu0 0
    %3859 = vmatprep.subr.bf16.mxu0 0
    %3860 = vmatpush2.bf16.msra.mxu0 0
    %3861 = vmatprep.subr.bf16.mxu0 0
    %3862 = vmatpush2.bf16.msra.mxu0 0
    %3863 = vmatprep.subr.bf16.mxu0 0
    %3864 = vmatpush2.bf16.msra.mxu0 0
    %3865 = vmatprep.subr.bf16.mxu0 0
    %3866 = vmatpush2.bf16.msra.mxu0 0
    %3867 = vmatprep.subr.bf16.mxu0 0
    %3868 = vmatpush2.bf16.msra.mxu0 0
    %3869 = vmatprep.subr.bf16.mxu0 0
    %3870 = vmatpush2.bf16.msra.mxu0 0
    %3871 = vmatprep.subr.bf16.mxu0 0
    %3872 = vmatpush2.bf16.msra.mxu0 0
    %3873 = vmatprep.mubr.bf16.mxu0 0
    %3874 = vmatmul.mubr.bf16.gmra.mxu0 %v3839
    %v3875 = vpop.f32.mrf.mxu0
    %v3876 = vadd.f32 %v3812, %v3875
    %v3877 = vpop.f32.mrf.mxu0
    %v3878 = vpop.f32.mrf.mxu0
    %v3879 = vpop.f32.mrf.mxu0
    %3880 = vdwg.mxu0
    %3881 = vst [vmem:[#allocation12] sm:$0xff] %v3876
    // Predicated region
    $region98: #{headnet_imgtext_fused_forward.1} parent=1 // pred_check
      _
    $region99: #{headnet_imgtext_fused_forward.1} parent=1 // pred_check_branch
      %3883 = sbr.rel (0) target = $region101
    $region100: #{headnet_imgtext_fused_forward.1} parent=1 // pred_region
      _
    $region101: #{headnet_imgtext_fused_forward.1} parent=1 // pred_fallthru
      _
    // Predicated region
    $region102: #{headnet_imgtext_fused_forward.1} parent=1 // pred_check
      _
    $region103: #{headnet_imgtext_fused_forward.1} parent=1 // pred_check_branch
      %3885 = sbr.rel (0) target = $region105
    $region104: #{headnet_imgtext_fused_forward.1} parent=1 // pred_region
      %s3887 = ssub.s32 128, 128
      %3888 = vsyncadd [#allocation6], %s3887
      %s3890 = sshll.u32 [#allocation12], 4
      %s3891 = int_to_ptr.vmem [resolvable:$true] %s3890
      %3893 = dma.vmem_to_hbm [thread:$0]  %s3891, 128, %s21, [#allocation6]
    $region105: #{headnet_imgtext_fused_forward.1} parent=1 // pred_fallthru
      _
    // Predicated region
    $region106: #{headnet_imgtext_fused_forward.1} parent=1 // pred_check
      _
    $region107: #{headnet_imgtext_fused_forward.1} parent=1 // pred_check_branch
      %3895 = sbr.rel (0) target = $region109
    $region108: #{headnet_imgtext_fused_forward.1} parent=1 // pred_region
      _
    $region109: #{headnet_imgtext_fused_forward.1} parent=1 // pred_fallthru
      _
    // Predicated region
    $region110: #{headnet_imgtext_fused_forward.1} parent=1 // pred_check
      _
    $region111: #{headnet_imgtext_fused_forward.1} parent=1 // pred_check_branch
      %3897 = sbr.rel (0) target = $region113
    $region112: #{headnet_imgtext_fused_forward.1} parent=1 // pred_region
      %3898 = dma.done [#allocation6], 128
    $region113: #{headnet_imgtext_fused_forward.1} parent=1 // pred_fallthru
      _
    %3899 = vsyncpa [#allocation5], 1
    %3900 = vsyncpa [#allocation8], 1
    %3901 = vsyncpa [#allocation11], 1
    %3902 = vsyncpa [#allocation6], 1
  %3903 = vsyncmov [#allocation3]
  %s3904 = vpop.sfrf %3903
  %p3905 = scmp.eq.s32.totalorder %s3904, 0
  %p3906 = pneg %p3905
  %3908 = shalt.err (%p3906)

</llo_original>
